<compile_context>
chip_gen: v5e
topology: v5e:2x2
jax: 0.10.0
libtpu: 0.0.40
codegen_flags: <defaults>
</compile_context>

<pallas_src>
import math

import jax
import jax.numpy as jnp
from jax import lax
from jax.experimental import pallas as pl
from jax.experimental.pallas import tpu as pltpu


def _round_up(x, m):
    return ((x + m - 1) // m) * m


def _make_encoder_kernel(num_layers, T, Bp, Hp):
    """Single-invocation kernel: register-carried GRU recurrence, fused dots."""

    def kernel(last_t_ref, x_ref, *rest):
        # rest layout: per layer (W_fused, b_fused), then out_ref.
        w_refs = [rest[2 * l] for l in range(num_layers)]
        b_refs = [rest[2 * l + 1] for l in range(num_layers)]
        out_ref = rest[2 * num_layers]          # (Bp, Hp) VMEM output

        last_t = last_t_ref[...]                # (Bp, 1) int32, seq_len - 1

        # Hoist bias broadcasts out of the time loop (one (Bp, 4Hp) value/layer).
        biases = [jnp.broadcast_to(b_refs[l][...], (Bp, 4 * Hp))
                  for l in range(num_layers)]

        def step(t, carry):
            hs, out = carry                     # hs: tuple of (Bp, Hp) per layer
            layer_in = x_ref[t]                 # (Bp, Ip) for l=0, (Bp, Hp) after
            new_hs = []
            for l in range(num_layers):
                h_prev = hs[l]
                # One fused MXU dot: columns = [r | z | n_x | n_h].
                xh = jnp.concatenate([layer_in, h_prev], axis=-1)
                g = jnp.dot(xh, w_refs[l][...],
                            preferred_element_type=jnp.float32) + biases[l]
                rz = jax.nn.sigmoid(g[:, :2 * Hp])   # r and z in one EUP call
                r = rz[:, :Hp]
                z = rz[:, Hp:]
                n = jnp.tanh(g[:, 2 * Hp:3 * Hp] + r * g[:, 3 * Hp:])
                h_new = (1.0 - z) * n + z * h_prev
                new_hs.append(h_new)
                layer_in = h_new
            # Capture top-layer output at t == seq_len[b] - 1 (register select).
            out = jnp.where(last_t == t, layer_in, out)
            return tuple(new_hs), out

        init = (tuple(jnp.zeros((Bp, Hp), jnp.float32)
                      for _ in range(num_layers)),
                jnp.zeros((Bp, Hp), jnp.float32))

        if T <= 32:
            # Fully unrolled: one basic block lets the scheduler interleave
            # layer 0 of step t+1 with layer 1 of step t.
            carry = init
            for t in range(T):
                carry = step(t, carry)
        else:
            # TODO(synk): for long T, partially unroll and/or stream x via a
            #             time-chunk grid instead of full VMEM residency.
            carry = lax.fori_loop(0, T, step, init)

        out_ref[...] = carry[1]                 # single VMEM store at the end

    return kernel


def _prep_layer_fused(w_ih, w_hh, b_ih, b_hh, D_p, H, Hp):
    """PyTorch GRU weights (gate order r, z, n) -> one fused block matrix.

    Returns W (D_p + Hp, 4*Hp) and b (1, 4*Hp) with column blocks
    [ r | z | n_x | n_h ]:
      cols 0..Hp    : W_ir^T stacked over W_hr^T   (bias b_ir + b_hr)
      cols Hp..2Hp  : W_iz^T stacked over W_hz^T   (bias b_iz + b_hz)
      cols 2Hp..3Hp : W_in^T over zeros            (bias b_in)
      cols 3Hp..4Hp : zeros over W_hn^T            (bias b_hn)
    Padding rows/cols and biases are zero so padded hidden lanes stay exactly 0.
    """
    w_ih = jnp.asarray(w_ih, jnp.float32)
    w_hh = jnp.asarray(w_hh, jnp.float32)
    b_ih = jnp.asarray(b_ih, jnp.float32)
    b_hh = jnp.asarray(b_hh, jnp.float32)

    W = jnp.zeros((D_p + Hp, 4 * Hp), jnp.float32)
    # x-side blocks: r -> col block 0, z -> 1, n -> 2
    for gate, col in ((0, 0), (1, 1), (2, 2)):
        wx = w_ih[gate * H:(gate + 1) * H, :].T            # (D, H)
        W = W.at[:wx.shape[0], col * Hp:col * Hp + H].set(wx)
    # h-side blocks: r -> col block 0, z -> 1, n -> 3
    for gate, col in ((0, 0), (1, 1), (2, 3)):
        wh = w_hh[gate * H:(gate + 1) * H, :].T            # (H, H)
        W = W.at[D_p:D_p + H, col * Hp:col * Hp + H].set(wh)

    b = jnp.zeros((4 * Hp,), jnp.float32)
    b = b.at[0 * Hp:0 * Hp + H].set(b_ih[0:H] + b_hh[0:H])
    b = b.at[1 * Hp:1 * Hp + H].set(b_ih[H:2 * H] + b_hh[H:2 * H])
    b = b.at[2 * Hp:2 * Hp + H].set(b_ih[2 * H:3 * H])
    b = b.at[3 * Hp:3 * Hp + H].set(b_hh[2 * H:3 * H])
    return W, b[None, :]


def encoder_rnn_forward(input_tensor, seq_len, params, hidden_size):
    """input_tensor: (B, T, I) float32 (batch_first, like PyTorch).
       seq_len: python list of ints (one per batch element).
       params: per layer (w_ih (3H, in_dim), w_hh (3H, H), b_ih (3H,), b_hh (3H,)),
               PyTorch nn.GRU layout, gate order (r, z, n).
       returns hidden of shape (1, B, hidden_size)."""
    B, _, I = input_tensor.shape
    T = int(max(seq_len))
    num_layers = len(params)
    H = hidden_size

    Bp = _round_up(B, 8)
    Hp = _round_up(H, 128)
    Ip = _round_up(I, 128)

    # Time-major, zero-padded input slab (T, Bp, Ip).
    x_tbi = jnp.transpose(input_tensor[:, :T, :], (1, 0, 2)).astype(jnp.float32)
    x_p = jnp.zeros((T, Bp, Ip), jnp.float32).at[:, :B, :I].set(x_tbi)

    # Per-batch "last valid timestep"; padded rows capture t=0 and are sliced off.
    last_t = jnp.zeros((Bp, 1), jnp.int32).at[:B, 0].set(
        jnp.asarray(seq_len, jnp.int32) - 1)

    flat_w = []
    for l, (w_ih, w_hh, b_ih, b_hh) in enumerate(params):
        D_p = Ip if l == 0 else Hp
        flat_w += list(_prep_layer_fused(w_ih, w_hh, b_ih, b_hh, D_p, H, Hp))

    n_inputs = 2 + 2 * num_layers
    in_specs = [pl.BlockSpec(memory_space=pltpu.MemorySpace.VMEM)] * n_inputs

    # Size the scoped-VMEM limit to the actual resident footprint (plus slack);
    # v5e's default scoped limit is only ~16 MiB.
    resident_bytes = 4 * (x_p.size + sum(int(w.size) for w in flat_w)
                          + Bp * Hp + Bp)
    vmem_limit = int(min(max(2 * resident_bytes + (2 << 20), 16 << 20), 64 << 20))

    out = pl.pallas_call(
        _make_encoder_kernel(num_layers, T, Bp, Hp),
        out_shape=jax.ShapeDtypeStruct((Bp, Hp), jnp.float32),
        in_specs=in_specs,
        out_specs=pl.BlockSpec(memory_space=pltpu.MemorySpace.VMEM),
        compiler_params=pltpu.CompilerParams(vmem_limit_bytes=vmem_limit),
    )(last_t, x_p, *flat_w)

    return out[:B, :H][None]                    # (1, B, H)


def init_params(key, input_size, hidden_size, num_layers):
    """PyTorch-style GRU init: U(-1/sqrt(H), 1/sqrt(H)), PyTorch weight layout."""
    bound = 1.0 / math.sqrt(hidden_size)
    H = hidden_size
    params = []
    for l in range(num_layers):
        in_dim = input_size if l == 0 else hidden_size
        key, k1, k2, k3, k4 = jax.random.split(key, 5)
        w_ih = jax.random.uniform(k1, (3 * H, in_dim), jnp.float32, -bound, bound)
        w_hh = jax.random.uniform(k2, (3 * H, H), jnp.float32, -bound, bound)
        b_ih = jax.random.uniform(k3, (3 * H,), jnp.float32, -bound, bound)
        b_hh = jax.random.uniform(k4, (3 * H,), jnp.float32, -bound, bound)
        params.append((w_ih, w_hh, b_ih, b_hh))
    return params


def reference_forward(input_tensor, seq_len, params, hidden_size):
    """Pure-JAX reference replicating the PyTorch forward loop."""
    B = input_tensor.shape[0]
    T = int(max(seq_len))
    H = hidden_size
    h = [jnp.zeros((B, H), jnp.float32) for _ in params]
    outs = []
    for t in range(T):
        layer_in = input_tensor[:, t, :]
        for l, (w_ih, w_hh, b_ih, b_hh) in enumerate(params):
            gi = layer_in @ w_ih.T + b_ih
            gh = h[l] @ w_hh.T + b_hh
            i_r, i_z, i_n = gi[:, :H], gi[:, H:2 * H], gi[:, 2 * H:]
            h_r, h_z, h_n = gh[:, :H], gh[:, H:2 * H], gh[:, 2 * H:]
            r = jax.nn.sigmoid(i_r + h_r)
            z = jax.nn.sigmoid(i_z + h_z)
            n = jnp.tanh(i_n + r * h_n)
            h[l] = (1.0 - z) * n + z * h[l]
            layer_in = h[l]
        outs.append(layer_in)
    enc = jnp.stack(outs, axis=1)               # (B, T, H)
    idx = jnp.asarray([s - 1 for s in seq_len], jnp.int32)
    return enc[jnp.arange(B), idx, :][None]


if __name__ == "__main__":
    B, T, INPUT_SIZE, HIDDEN_SIZE, NUM_LAYERS = 2, 8, 16, 32, 2
    seq_len = [8, 5]

    key = jax.random.PRNGKey(0)
    kx, kp = jax.random.split(key)
    x = jax.random.normal(kx, (B, T, INPUT_SIZE), jnp.float32)
    params = init_params(kp, INPUT_SIZE, HIDDEN_SIZE, NUM_LAYERS)

    hidden = encoder_rnn_forward(x, seq_len, params, HIDDEN_SIZE)
    hidden = jax.block_until_ready(hidden)

    ref = reference_forward(x, seq_len, params, HIDDEN_SIZE)
    assert hidden.shape == (1, B, HIDDEN_SIZE), hidden.shape
    assert jnp.allclose(hidden, ref, atol=1e-5, rtol=1e-5), (
        float(jnp.max(jnp.abs(hidden - ref)))
    )
    print("KERNEL_OK")
</pallas_src>

<mosaic_0001>
module attributes {stable_mosaic.version = 11 : i64} {
  func.func @kernel(%arg0: memref<8x1xi32, #tpu.memory_space<vmem>>, %arg1: memref<8x8x128xf32, #tpu.memory_space<vmem>>, %arg2: memref<256x512xf32, #tpu.memory_space<vmem>>, %arg3: memref<1x512xf32, #tpu.memory_space<vmem>>, %arg4: memref<256x512xf32, #tpu.memory_space<vmem>>, %arg5: memref<1x512xf32, #tpu.memory_space<vmem>>, %arg6: memref<8x128xf32, #tpu.memory_space<vmem>>) attributes {dimension_semantics = [], scalar_prefetch = 0 : i64, scratch_operands = 0 : i64, tpu.core_type = #tpu.core_type<tc>} {
    %c0 = arith.constant 0 : index
    %c0_0 = arith.constant 0 : index
    %0 = vector.load %arg0[%c0, %c0_0] : memref<8x1xi32, #tpu.memory_space<vmem>>, vector<8x1xi32>
    %c0_1 = arith.constant 0 : index
    %c0_2 = arith.constant 0 : index
    %1 = vector.load %arg3[%c0_1, %c0_2] : memref<1x512xf32, #tpu.memory_space<vmem>>, vector<1x512xf32>
    %2 = vector.shape_cast %1 : vector<1x512xf32> to vector<1x512xf32>
    %3 = vector.broadcast %2 : vector<1x512xf32> to vector<8x512xf32>
    %c0_3 = arith.constant 0 : index
    %c0_4 = arith.constant 0 : index
    %4 = vector.load %arg5[%c0_3, %c0_4] : memref<1x512xf32, #tpu.memory_space<vmem>>, vector<1x512xf32>
    %5 = vector.shape_cast %4 : vector<1x512xf32> to vector<1x512xf32>
    %6 = vector.broadcast %5 : vector<1x512xf32> to vector<8x512xf32>
    %cst = arith.constant 0.000000e+00 : f32
    %7 = vector.broadcast %cst : f32 to vector<8x128xf32>
    %cst_5 = arith.constant 0.000000e+00 : f32
    %8 = vector.broadcast %cst_5 : f32 to vector<8x128xf32>
    %cst_6 = arith.constant 0.000000e+00 : f32
    %9 = vector.broadcast %cst_6 : f32 to vector<8x128xf32>
    %c0_7 = arith.constant 0 : index
    %c0_8 = arith.constant 0 : index
    %c0_9 = arith.constant 0 : index
    %10 = vector.load %arg1[%c0_7, %c0_8, %c0_9] : memref<8x8x128xf32, #tpu.memory_space<vmem>>, vector<1x8x128xf32>
    %11 = vector.shape_cast %10 : vector<1x8x128xf32> to vector<8x128xf32>
    %12 = tpu.concatenate %11, %7 in 1 : vector<8x128xf32>, vector<8x128xf32> -> vector<8x256xf32>
    %c0_10 = arith.constant 0 : index
    %c0_11 = arith.constant 0 : index
    %13 = vector.load %arg2[%c0_10, %c0_11] : memref<256x512xf32, #tpu.memory_space<vmem>>, vector<256x512xf32>
    %cst_12 = arith.constant dense<0.000000e+00> : vector<8x512xf32>
    %14 = tpu.matmul %12, %13, %cst_12 {dimension_numbers = #tpu.dot_dimension_numbers<[1], [0], [0], [1], [0, 0, 1, 1], [], []>} : vector<8x256xf32>, vector<256x512xf32>, vector<8x512xf32> -> vector<8x512xf32>
    %15 = arith.addf %14, %3 : vector<8x512xf32>
    %16 = vector.extract_strided_slice %15 {offsets = [0, 0], sizes = [8, 256], strides = [1, 1]} : vector<8x512xf32> to vector<8x256xf32>
    %17 = arith.negf %16 : vector<8x256xf32>
    %18 = math.exp %17 : vector<8x256xf32>
    %cst_13 = arith.constant 1.000000e+00 : f32
    %19 = vector.broadcast %cst_13 : f32 to vector<8x256xf32>
    %20 = arith.addf %19, %18 : vector<8x256xf32>
    %21 = arith.divf %19, %20 : vector<8x256xf32>
    %22 = vector.extract_strided_slice %21 {offsets = [0, 0], sizes = [8, 128], strides = [1, 1]} : vector<8x256xf32> to vector<8x128xf32>
    %23 = vector.extract_strided_slice %21 {offsets = [0, 128], sizes = [8, 128], strides = [1, 1]} : vector<8x256xf32> to vector<8x128xf32>
    %24 = vector.extract_strided_slice %15 {offsets = [0, 256], sizes = [8, 128], strides = [1, 1]} : vector<8x512xf32> to vector<8x128xf32>
    %25 = vector.extract_strided_slice %15 {offsets = [0, 384], sizes = [8, 128], strides = [1, 1]} : vector<8x512xf32> to vector<8x128xf32>
    %26 = arith.mulf %22, %25 : vector<8x128xf32>
    %27 = arith.addf %24, %26 : vector<8x128xf32>
    %28 = math.tanh %27 : vector<8x128xf32>
    %cst_14 = arith.constant 1.000000e+00 : f32
    %29 = vector.broadcast %cst_14 : f32 to vector<8x128xf32>
    %30 = arith.subf %29, %23 : vector<8x128xf32>
    %31 = arith.mulf %30, %28 : vector<8x128xf32>
    %32 = arith.mulf %23, %7 : vector<8x128xf32>
    %33 = arith.addf %31, %32 : vector<8x128xf32>
    %34 = tpu.concatenate %33, %8 in 1 : vector<8x128xf32>, vector<8x128xf32> -> vector<8x256xf32>
    %c0_15 = arith.constant 0 : index
    %c0_16 = arith.constant 0 : index
    %35 = vector.load %arg4[%c0_15, %c0_16] : memref<256x512xf32, #tpu.memory_space<vmem>>, vector<256x512xf32>
    %cst_17 = arith.constant dense<0.000000e+00> : vector<8x512xf32>
    %36 = tpu.matmul %34, %35, %cst_17 {dimension_numbers = #tpu.dot_dimension_numbers<[1], [0], [0], [1], [0, 0, 1, 1], [], []>} : vector<8x256xf32>, vector<256x512xf32>, vector<8x512xf32> -> vector<8x512xf32>
    %37 = arith.addf %36, %6 : vector<8x512xf32>
    %38 = vector.extract_strided_slice %37 {offsets = [0, 0], sizes = [8, 256], strides = [1, 1]} : vector<8x512xf32> to vector<8x256xf32>
    %39 = arith.negf %38 : vector<8x256xf32>
    %40 = math.exp %39 : vector<8x256xf32>
    %cst_18 = arith.constant 1.000000e+00 : f32
    %41 = vector.broadcast %cst_18 : f32 to vector<8x256xf32>
    %42 = arith.addf %41, %40 : vector<8x256xf32>
    %43 = arith.divf %41, %42 : vector<8x256xf32>
    %44 = vector.extract_strided_slice %43 {offsets = [0, 0], sizes = [8, 128], strides = [1, 1]} : vector<8x256xf32> to vector<8x128xf32>
    %45 = vector.extract_strided_slice %43 {offsets = [0, 128], sizes = [8, 128], strides = [1, 1]} : vector<8x256xf32> to vector<8x128xf32>
    %46 = vector.extract_strided_slice %37 {offsets = [0, 256], sizes = [8, 128], strides = [1, 1]} : vector<8x512xf32> to vector<8x128xf32>
    %47 = vector.extract_strided_slice %37 {offsets = [0, 384], sizes = [8, 128], strides = [1, 1]} : vector<8x512xf32> to vector<8x128xf32>
    %48 = arith.mulf %44, %47 : vector<8x128xf32>
    %49 = arith.addf %46, %48 : vector<8x128xf32>
    %50 = math.tanh %49 : vector<8x128xf32>
    %cst_19 = arith.constant 1.000000e+00 : f32
    %51 = vector.broadcast %cst_19 : f32 to vector<8x128xf32>
    %52 = arith.subf %51, %45 : vector<8x128xf32>
    %53 = arith.mulf %52, %50 : vector<8x128xf32>
    %54 = arith.mulf %45, %8 : vector<8x128xf32>
    %55 = arith.addf %53, %54 : vector<8x128xf32>
    %c0_i32 = arith.constant 0 : i32
    %56 = vector.broadcast %c0_i32 : i32 to vector<8x1xi32>
    %57 = arith.cmpi eq, %0, %56 : vector<8x1xi32>
    %58 = vector.shape_cast %57 : vector<8x1xi1> to vector<8x1xi1>
    %59 = vector.broadcast %58 : vector<8x1xi1> to vector<8x128xi1>
    %60 = arith.select %59, %55, %9 : vector<8x128xi1>, vector<8x128xf32>
    %c1 = arith.constant 1 : index
    %c0_20 = arith.constant 0 : index
    %c0_21 = arith.constant 0 : index
    %61 = vector.load %arg1[%c1, %c0_20, %c0_21] : memref<8x8x128xf32, #tpu.memory_space<vmem>>, vector<1x8x128xf32>
    %62 = vector.shape_cast %61 : vector<1x8x128xf32> to vector<8x128xf32>
    %63 = tpu.concatenate %62, %33 in 1 : vector<8x128xf32>, vector<8x128xf32> -> vector<8x256xf32>
    %c0_22 = arith.constant 0 : index
    %c0_23 = arith.constant 0 : index
    %64 = vector.load %arg2[%c0_22, %c0_23] : memref<256x512xf32, #tpu.memory_space<vmem>>, vector<256x512xf32>
    %cst_24 = arith.constant dense<0.000000e+00> : vector<8x512xf32>
    %65 = tpu.matmul %63, %64, %cst_24 {dimension_numbers = #tpu.dot_dimension_numbers<[1], [0], [0], [1], [0, 0, 1, 1], [], []>} : vector<8x256xf32>, vector<256x512xf32>, vector<8x512xf32> -> vector<8x512xf32>
    %66 = arith.addf %65, %3 : vector<8x512xf32>
    %67 = vector.extract_strided_slice %66 {offsets = [0, 0], sizes = [8, 256], strides = [1, 1]} : vector<8x512xf32> to vector<8x256xf32>
    %68 = arith.negf %67 : vector<8x256xf32>
    %69 = math.exp %68 : vector<8x256xf32>
    %cst_25 = arith.constant 1.000000e+00 : f32
    %70 = vector.broadcast %cst_25 : f32 to vector<8x256xf32>
    %71 = arith.addf %70, %69 : vector<8x256xf32>
    %72 = arith.divf %70, %71 : vector<8x256xf32>
    %73 = vector.extract_strided_slice %72 {offsets = [0, 0], sizes = [8, 128], strides = [1, 1]} : vector<8x256xf32> to vector<8x128xf32>
    %74 = vector.extract_strided_slice %72 {offsets = [0, 128], sizes = [8, 128], strides = [1, 1]} : vector<8x256xf32> to vector<8x128xf32>
    %75 = vector.extract_strided_slice %66 {offsets = [0, 256], sizes = [8, 128], strides = [1, 1]} : vector<8x512xf32> to vector<8x128xf32>
    %76 = vector.extract_strided_slice %66 {offsets = [0, 384], sizes = [8, 128], strides = [1, 1]} : vector<8x512xf32> to vector<8x128xf32>
    %77 = arith.mulf %73, %76 : vector<8x128xf32>
    %78 = arith.addf %75, %77 : vector<8x128xf32>
    %79 = math.tanh %78 : vector<8x128xf32>
    %cst_26 = arith.constant 1.000000e+00 : f32
    %80 = vector.broadcast %cst_26 : f32 to vector<8x128xf32>
    %81 = arith.subf %80, %74 : vector<8x128xf32>
    %82 = arith.mulf %81, %79 : vector<8x128xf32>
    %83 = arith.mulf %74, %33 : vector<8x128xf32>
    %84 = arith.addf %82, %83 : vector<8x128xf32>
    %85 = tpu.concatenate %84, %55 in 1 : vector<8x128xf32>, vector<8x128xf32> -> vector<8x256xf32>
    %c0_27 = arith.constant 0 : index
    %c0_28 = arith.constant 0 : index
    %86 = vector.load %arg4[%c0_27, %c0_28] : memref<256x512xf32, #tpu.memory_space<vmem>>, vector<256x512xf32>
    %cst_29 = arith.constant dense<0.000000e+00> : vector<8x512xf32>
    %87 = tpu.matmul %85, %86, %cst_29 {dimension_numbers = #tpu.dot_dimension_numbers<[1], [0], [0], [1], [0, 0, 1, 1], [], []>} : vector<8x256xf32>, vector<256x512xf32>, vector<8x512xf32> -> vector<8x512xf32>
    %88 = arith.addf %87, %6 : vector<8x512xf32>
    %89 = vector.extract_strided_slice %88 {offsets = [0, 0], sizes = [8, 256], strides = [1, 1]} : vector<8x512xf32> to vector<8x256xf32>
    %90 = arith.negf %89 : vector<8x256xf32>
    %91 = math.exp %90 : vector<8x256xf32>
    %cst_30 = arith.constant 1.000000e+00 : f32
    %92 = vector.broadcast %cst_30 : f32 to vector<8x256xf32>
    %93 = arith.addf %92, %91 : vector<8x256xf32>
    %94 = arith.divf %92, %93 : vector<8x256xf32>
    %95 = vector.extract_strided_slice %94 {offsets = [0, 0], sizes = [8, 128], strides = [1, 1]} : vector<8x256xf32> to vector<8x128xf32>
    %96 = vector.extract_strided_slice %94 {offsets = [0, 128], sizes = [8, 128], strides = [1, 1]} : vector<8x256xf32> to vector<8x128xf32>
    %97 = vector.extract_strided_slice %88 {offsets = [0, 256], sizes = [8, 128], strides = [1, 1]} : vector<8x512xf32> to vector<8x128xf32>
    %98 = vector.extract_strided_slice %88 {offsets = [0, 384], sizes = [8, 128], strides = [1, 1]} : vector<8x512xf32> to vector<8x128xf32>
    %99 = arith.mulf %95, %98 : vector<8x128xf32>
    %100 = arith.addf %97, %99 : vector<8x128xf32>
    %101 = math.tanh %100 : vector<8x128xf32>
    %cst_31 = arith.constant 1.000000e+00 : f32
    %102 = vector.broadcast %cst_31 : f32 to vector<8x128xf32>
    %103 = arith.subf %102, %96 : vector<8x128xf32>
    %104 = arith.mulf %103, %101 : vector<8x128xf32>
    %105 = arith.mulf %96, %55 : vector<8x128xf32>
    %106 = arith.addf %104, %105 : vector<8x128xf32>
    %c1_i32 = arith.constant 1 : i32
    %107 = vector.broadcast %c1_i32 : i32 to vector<8x1xi32>
    %108 = arith.cmpi eq, %0, %107 : vector<8x1xi32>
    %109 = vector.shape_cast %108 : vector<8x1xi1> to vector<8x1xi1>
    %110 = vector.broadcast %109 : vector<8x1xi1> to vector<8x128xi1>
    %111 = arith.select %110, %106, %60 : vector<8x128xi1>, vector<8x128xf32>
    %c2 = arith.constant 2 : index
    %c0_32 = arith.constant 0 : index
    %c0_33 = arith.constant 0 : index
    %112 = vector.load %arg1[%c2, %c0_32, %c0_33] : memref<8x8x128xf32, #tpu.memory_space<vmem>>, vector<1x8x128xf32>
    %113 = vector.shape_cast %112 : vector<1x8x128xf32> to vector<8x128xf32>
    %114 = tpu.concatenate %113, %84 in 1 : vector<8x128xf32>, vector<8x128xf32> -> vector<8x256xf32>
    %c0_34 = arith.constant 0 : index
    %c0_35 = arith.constant 0 : index
    %115 = vector.load %arg2[%c0_34, %c0_35] : memref<256x512xf32, #tpu.memory_space<vmem>>, vector<256x512xf32>
    %cst_36 = arith.constant dense<0.000000e+00> : vector<8x512xf32>
    %116 = tpu.matmul %114, %115, %cst_36 {dimension_numbers = #tpu.dot_dimension_numbers<[1], [0], [0], [1], [0, 0, 1, 1], [], []>} : vector<8x256xf32>, vector<256x512xf32>, vector<8x512xf32> -> vector<8x512xf32>
    %117 = arith.addf %116, %3 : vector<8x512xf32>
    %118 = vector.extract_strided_slice %117 {offsets = [0, 0], sizes = [8, 256], strides = [1, 1]} : vector<8x512xf32> to vector<8x256xf32>
    %119 = arith.negf %118 : vector<8x256xf32>
    %120 = math.exp %119 : vector<8x256xf32>
    %cst_37 = arith.constant 1.000000e+00 : f32
    %121 = vector.broadcast %cst_37 : f32 to vector<8x256xf32>
    %122 = arith.addf %121, %120 : vector<8x256xf32>
    %123 = arith.divf %121, %122 : vector<8x256xf32>
    %124 = vector.extract_strided_slice %123 {offsets = [0, 0], sizes = [8, 128], strides = [1, 1]} : vector<8x256xf32> to vector<8x128xf32>
    %125 = vector.extract_strided_slice %123 {offsets = [0, 128], sizes = [8, 128], strides = [1, 1]} : vector<8x256xf32> to vector<8x128xf32>
    %126 = vector.extract_strided_slice %117 {offsets = [0, 256], sizes = [8, 128], strides = [1, 1]} : vector<8x512xf32> to vector<8x128xf32>
    %127 = vector.extract_strided_slice %117 {offsets = [0, 384], sizes = [8, 128], strides = [1, 1]} : vector<8x512xf32> to vector<8x128xf32>
    %128 = arith.mulf %124, %127 : vector<8x128xf32>
    %129 = arith.addf %126, %128 : vector<8x128xf32>
    %130 = math.tanh %129 : vector<8x128xf32>
    %cst_38 = arith.constant 1.000000e+00 : f32
    %131 = vector.broadcast %cst_38 : f32 to vector<8x128xf32>
    %132 = arith.subf %131, %125 : vector<8x128xf32>
    %133 = arith.mulf %132, %130 : vector<8x128xf32>
    %134 = arith.mulf %125, %84 : vector<8x128xf32>
    %135 = arith.addf %133, %134 : vector<8x128xf32>
    %136 = tpu.concatenate %135, %106 in 1 : vector<8x128xf32>, vector<8x128xf32> -> vector<8x256xf32>
    %c0_39 = arith.constant 0 : index
    %c0_40 = arith.constant 0 : index
    %137 = vector.load %arg4[%c0_39, %c0_40] : memref<256x512xf32, #tpu.memory_space<vmem>>, vector<256x512xf32>
    %cst_41 = arith.constant dense<0.000000e+00> : vector<8x512xf32>
    %138 = tpu.matmul %136, %137, %cst_41 {dimension_numbers = #tpu.dot_dimension_numbers<[1], [0], [0], [1], [0, 0, 1, 1], [], []>} : vector<8x256xf32>, vector<256x512xf32>, vector<8x512xf32> -> vector<8x512xf32>
    %139 = arith.addf %138, %6 : vector<8x512xf32>
    %140 = vector.extract_strided_slice %139 {offsets = [0, 0], sizes = [8, 256], strides = [1, 1]} : vector<8x512xf32> to vector<8x256xf32>
    %141 = arith.negf %140 : vector<8x256xf32>
    %142 = math.exp %141 : vector<8x256xf32>
    %cst_42 = arith.constant 1.000000e+00 : f32
    %143 = vector.broadcast %cst_42 : f32 to vector<8x256xf32>
    %144 = arith.addf %143, %142 : vector<8x256xf32>
    %145 = arith.divf %143, %144 : vector<8x256xf32>
    %146 = vector.extract_strided_slice %145 {offsets = [0, 0], sizes = [8, 128], strides = [1, 1]} : vector<8x256xf32> to vector<8x128xf32>
    %147 = vector.extract_strided_slice %145 {offsets = [0, 128], sizes = [8, 128], strides = [1, 1]} : vector<8x256xf32> to vector<8x128xf32>
    %148 = vector.extract_strided_slice %139 {offsets = [0, 256], sizes = [8, 128], strides = [1, 1]} : vector<8x512xf32> to vector<8x128xf32>
    %149 = vector.extract_strided_slice %139 {offsets = [0, 384], sizes = [8, 128], strides = [1, 1]} : vector<8x512xf32> to vector<8x128xf32>
    %150 = arith.mulf %146, %149 : vector<8x128xf32>
    %151 = arith.addf %148, %150 : vector<8x128xf32>
    %152 = math.tanh %151 : vector<8x128xf32>
    %cst_43 = arith.constant 1.000000e+00 : f32
    %153 = vector.broadcast %cst_43 : f32 to vector<8x128xf32>
    %154 = arith.subf %153, %147 : vector<8x128xf32>
    %155 = arith.mulf %154, %152 : vector<8x128xf32>
    %156 = arith.mulf %147, %106 : vector<8x128xf32>
    %157 = arith.addf %155, %156 : vector<8x128xf32>
    %c2_i32 = arith.constant 2 : i32
    %158 = vector.broadcast %c2_i32 : i32 to vector<8x1xi32>
    %159 = arith.cmpi eq, %0, %158 : vector<8x1xi32>
    %160 = vector.shape_cast %159 : vector<8x1xi1> to vector<8x1xi1>
    %161 = vector.broadcast %160 : vector<8x1xi1> to vector<8x128xi1>
    %162 = arith.select %161, %157, %111 : vector<8x128xi1>, vector<8x128xf32>
    %c3 = arith.constant 3 : index
    %c0_44 = arith.constant 0 : index
    %c0_45 = arith.constant 0 : index
    %163 = vector.load %arg1[%c3, %c0_44, %c0_45] : memref<8x8x128xf32, #tpu.memory_space<vmem>>, vector<1x8x128xf32>
    %164 = vector.shape_cast %163 : vector<1x8x128xf32> to vector<8x128xf32>
    %165 = tpu.concatenate %164, %135 in 1 : vector<8x128xf32>, vector<8x128xf32> -> vector<8x256xf32>
    %c0_46 = arith.constant 0 : index
    %c0_47 = arith.constant 0 : index
    %166 = vector.load %arg2[%c0_46, %c0_47] : memref<256x512xf32, #tpu.memory_space<vmem>>, vector<256x512xf32>
    %cst_48 = arith.constant dense<0.000000e+00> : vector<8x512xf32>
    %167 = tpu.matmul %165, %166, %cst_48 {dimension_numbers = #tpu.dot_dimension_numbers<[1], [0], [0], [1], [0, 0, 1, 1], [], []>} : vector<8x256xf32>, vector<256x512xf32>, vector<8x512xf32> -> vector<8x512xf32>
    %168 = arith.addf %167, %3 : vector<8x512xf32>
    %169 = vector.extract_strided_slice %168 {offsets = [0, 0], sizes = [8, 256], strides = [1, 1]} : vector<8x512xf32> to vector<8x256xf32>
    %170 = arith.negf %169 : vector<8x256xf32>
    %171 = math.exp %170 : vector<8x256xf32>
    %cst_49 = arith.constant 1.000000e+00 : f32
    %172 = vector.broadcast %cst_49 : f32 to vector<8x256xf32>
    %173 = arith.addf %172, %171 : vector<8x256xf32>
    %174 = arith.divf %172, %173 : vector<8x256xf32>
    %175 = vector.extract_strided_slice %174 {offsets = [0, 0], sizes = [8, 128], strides = [1, 1]} : vector<8x256xf32> to vector<8x128xf32>
    %176 = vector.extract_strided_slice %174 {offsets = [0, 128], sizes = [8, 128], strides = [1, 1]} : vector<8x256xf32> to vector<8x128xf32>
    %177 = vector.extract_strided_slice %168 {offsets = [0, 256], sizes = [8, 128], strides = [1, 1]} : vector<8x512xf32> to vector<8x128xf32>
    %178 = vector.extract_strided_slice %168 {offsets = [0, 384], sizes = [8, 128], strides = [1, 1]} : vector<8x512xf32> to vector<8x128xf32>
    %179 = arith.mulf %175, %178 : vector<8x128xf32>
    %180 = arith.addf %177, %179 : vector<8x128xf32>
    %181 = math.tanh %180 : vector<8x128xf32>
    %cst_50 = arith.constant 1.000000e+00 : f32
    %182 = vector.broadcast %cst_50 : f32 to vector<8x128xf32>
    %183 = arith.subf %182, %176 : vector<8x128xf32>
    %184 = arith.mulf %183, %181 : vector<8x128xf32>
    %185 = arith.mulf %176, %135 : vector<8x128xf32>
    %186 = arith.addf %184, %185 : vector<8x128xf32>
    %187 = tpu.concatenate %186, %157 in 1 : vector<8x128xf32>, vector<8x128xf32> -> vector<8x256xf32>
    %c0_51 = arith.constant 0 : index
    %c0_52 = arith.constant 0 : index
    %188 = vector.load %arg4[%c0_51, %c0_52] : memref<256x512xf32, #tpu.memory_space<vmem>>, vector<256x512xf32>
    %cst_53 = arith.constant dense<0.000000e+00> : vector<8x512xf32>
    %189 = tpu.matmul %187, %188, %cst_53 {dimension_numbers = #tpu.dot_dimension_numbers<[1], [0], [0], [1], [0, 0, 1, 1], [], []>} : vector<8x256xf32>, vector<256x512xf32>, vector<8x512xf32> -> vector<8x512xf32>
    %190 = arith.addf %189, %6 : vector<8x512xf32>
    %191 = vector.extract_strided_slice %190 {offsets = [0, 0], sizes = [8, 256], strides = [1, 1]} : vector<8x512xf32> to vector<8x256xf32>
    %192 = arith.negf %191 : vector<8x256xf32>
    %193 = math.exp %192 : vector<8x256xf32>
    %cst_54 = arith.constant 1.000000e+00 : f32
    %194 = vector.broadcast %cst_54 : f32 to vector<8x256xf32>
    %195 = arith.addf %194, %193 : vector<8x256xf32>
    %196 = arith.divf %194, %195 : vector<8x256xf32>
    %197 = vector.extract_strided_slice %196 {offsets = [0, 0], sizes = [8, 128], strides = [1, 1]} : vector<8x256xf32> to vector<8x128xf32>
    %198 = vector.extract_strided_slice %196 {offsets = [0, 128], sizes = [8, 128], strides = [1, 1]} : vector<8x256xf32> to vector<8x128xf32>
    %199 = vector.extract_strided_slice %190 {offsets = [0, 256], sizes = [8, 128], strides = [1, 1]} : vector<8x512xf32> to vector<8x128xf32>
    %200 = vector.extract_strided_slice %190 {offsets = [0, 384], sizes = [8, 128], strides = [1, 1]} : vector<8x512xf32> to vector<8x128xf32>
    %201 = arith.mulf %197, %200 : vector<8x128xf32>
    %202 = arith.addf %199, %201 : vector<8x128xf32>
    %203 = math.tanh %202 : vector<8x128xf32>
    %cst_55 = arith.constant 1.000000e+00 : f32
    %204 = vector.broadcast %cst_55 : f32 to vector<8x128xf32>
    %205 = arith.subf %204, %198 : vector<8x128xf32>
    %206 = arith.mulf %205, %203 : vector<8x128xf32>
    %207 = arith.mulf %198, %157 : vector<8x128xf32>
    %208 = arith.addf %206, %207 : vector<8x128xf32>
    %c3_i32 = arith.constant 3 : i32
    %209 = vector.broadcast %c3_i32 : i32 to vector<8x1xi32>
    %210 = arith.cmpi eq, %0, %209 : vector<8x1xi32>
    %211 = vector.shape_cast %210 : vector<8x1xi1> to vector<8x1xi1>
    %212 = vector.broadcast %211 : vector<8x1xi1> to vector<8x128xi1>
    %213 = arith.select %212, %208, %162 : vector<8x128xi1>, vector<8x128xf32>
    %c4 = arith.constant 4 : index
    %c0_56 = arith.constant 0 : index
    %c0_57 = arith.constant 0 : index
    %214 = vector.load %arg1[%c4, %c0_56, %c0_57] : memref<8x8x128xf32, #tpu.memory_space<vmem>>, vector<1x8x128xf32>
    %215 = vector.shape_cast %214 : vector<1x8x128xf32> to vector<8x128xf32>
    %216 = tpu.concatenate %215, %186 in 1 : vector<8x128xf32>, vector<8x128xf32> -> vector<8x256xf32>
    %c0_58 = arith.constant 0 : index
    %c0_59 = arith.constant 0 : index
    %217 = vector.load %arg2[%c0_58, %c0_59] : memref<256x512xf32, #tpu.memory_space<vmem>>, vector<256x512xf32>
    %cst_60 = arith.constant dense<0.000000e+00> : vector<8x512xf32>
    %218 = tpu.matmul %216, %217, %cst_60 {dimension_numbers = #tpu.dot_dimension_numbers<[1], [0], [0], [1], [0, 0, 1, 1], [], []>} : vector<8x256xf32>, vector<256x512xf32>, vector<8x512xf32> -> vector<8x512xf32>
    %219 = arith.addf %218, %3 : vector<8x512xf32>
    %220 = vector.extract_strided_slice %219 {offsets = [0, 0], sizes = [8, 256], strides = [1, 1]} : vector<8x512xf32> to vector<8x256xf32>
    %221 = arith.negf %220 : vector<8x256xf32>
    %222 = math.exp %221 : vector<8x256xf32>
    %cst_61 = arith.constant 1.000000e+00 : f32
    %223 = vector.broadcast %cst_61 : f32 to vector<8x256xf32>
    %224 = arith.addf %223, %222 : vector<8x256xf32>
    %225 = arith.divf %223, %224 : vector<8x256xf32>
    %226 = vector.extract_strided_slice %225 {offsets = [0, 0], sizes = [8, 128], strides = [1, 1]} : vector<8x256xf32> to vector<8x128xf32>
    %227 = vector.extract_strided_slice %225 {offsets = [0, 128], sizes = [8, 128], strides = [1, 1]} : vector<8x256xf32> to vector<8x128xf32>
    %228 = vector.extract_strided_slice %219 {offsets = [0, 256], sizes = [8, 128], strides = [1, 1]} : vector<8x512xf32> to vector<8x128xf32>
    %229 = vector.extract_strided_slice %219 {offsets = [0, 384], sizes = [8, 128], strides = [1, 1]} : vector<8x512xf32> to vector<8x128xf32>
    %230 = arith.mulf %226, %229 : vector<8x128xf32>
    %231 = arith.addf %228, %230 : vector<8x128xf32>
    %232 = math.tanh %231 : vector<8x128xf32>
    %cst_62 = arith.constant 1.000000e+00 : f32
    %233 = vector.broadcast %cst_62 : f32 to vector<8x128xf32>
    %234 = arith.subf %233, %227 : vector<8x128xf32>
    %235 = arith.mulf %234, %232 : vector<8x128xf32>
    %236 = arith.mulf %227, %186 : vector<8x128xf32>
    %237 = arith.addf %235, %236 : vector<8x128xf32>
    %238 = tpu.concatenate %237, %208 in 1 : vector<8x128xf32>, vector<8x128xf32> -> vector<8x256xf32>
    %c0_63 = arith.constant 0 : index
    %c0_64 = arith.constant 0 : index
    %239 = vector.load %arg4[%c0_63, %c0_64] : memref<256x512xf32, #tpu.memory_space<vmem>>, vector<256x512xf32>
    %cst_65 = arith.constant dense<0.000000e+00> : vector<8x512xf32>
    %240 = tpu.matmul %238, %239, %cst_65 {dimension_numbers = #tpu.dot_dimension_numbers<[1], [0], [0], [1], [0, 0, 1, 1], [], []>} : vector<8x256xf32>, vector<256x512xf32>, vector<8x512xf32> -> vector<8x512xf32>
    %241 = arith.addf %240, %6 : vector<8x512xf32>
    %242 = vector.extract_strided_slice %241 {offsets = [0, 0], sizes = [8, 256], strides = [1, 1]} : vector<8x512xf32> to vector<8x256xf32>
    %243 = arith.negf %242 : vector<8x256xf32>
    %244 = math.exp %243 : vector<8x256xf32>
    %cst_66 = arith.constant 1.000000e+00 : f32
    %245 = vector.broadcast %cst_66 : f32 to vector<8x256xf32>
    %246 = arith.addf %245, %244 : vector<8x256xf32>
    %247 = arith.divf %245, %246 : vector<8x256xf32>
    %248 = vector.extract_strided_slice %247 {offsets = [0, 0], sizes = [8, 128], strides = [1, 1]} : vector<8x256xf32> to vector<8x128xf32>
    %249 = vector.extract_strided_slice %247 {offsets = [0, 128], sizes = [8, 128], strides = [1, 1]} : vector<8x256xf32> to vector<8x128xf32>
    %250 = vector.extract_strided_slice %241 {offsets = [0, 256], sizes = [8, 128], strides = [1, 1]} : vector<8x512xf32> to vector<8x128xf32>
    %251 = vector.extract_strided_slice %241 {offsets = [0, 384], sizes = [8, 128], strides = [1, 1]} : vector<8x512xf32> to vector<8x128xf32>
    %252 = arith.mulf %248, %251 : vector<8x128xf32>
    %253 = arith.addf %250, %252 : vector<8x128xf32>
    %254 = math.tanh %253 : vector<8x128xf32>
    %cst_67 = arith.constant 1.000000e+00 : f32
    %255 = vector.broadcast %cst_67 : f32 to vector<8x128xf32>
    %256 = arith.subf %255, %249 : vector<8x128xf32>
    %257 = arith.mulf %256, %254 : vector<8x128xf32>
    %258 = arith.mulf %249, %208 : vector<8x128xf32>
    %259 = arith.addf %257, %258 : vector<8x128xf32>
    %c4_i32 = arith.constant 4 : i32
    %260 = vector.broadcast %c4_i32 : i32 to vector<8x1xi32>
    %261 = arith.cmpi eq, %0, %260 : vector<8x1xi32>
    %262 = vector.shape_cast %261 : vector<8x1xi1> to vector<8x1xi1>
    %263 = vector.broadcast %262 : vector<8x1xi1> to vector<8x128xi1>
    %264 = arith.select %263, %259, %213 : vector<8x128xi1>, vector<8x128xf32>
    %c5 = arith.constant 5 : index
    %c0_68 = arith.constant 0 : index
    %c0_69 = arith.constant 0 : index
    %265 = vector.load %arg1[%c5, %c0_68, %c0_69] : memref<8x8x128xf32, #tpu.memory_space<vmem>>, vector<1x8x128xf32>
    %266 = vector.shape_cast %265 : vector<1x8x128xf32> to vector<8x128xf32>
    %267 = tpu.concatenate %266, %237 in 1 : vector<8x128xf32>, vector<8x128xf32> -> vector<8x256xf32>
    %c0_70 = arith.constant 0 : index
    %c0_71 = arith.constant 0 : index
    %268 = vector.load %arg2[%c0_70, %c0_71] : memref<256x512xf32, #tpu.memory_space<vmem>>, vector<256x512xf32>
    %cst_72 = arith.constant dense<0.000000e+00> : vector<8x512xf32>
    %269 = tpu.matmul %267, %268, %cst_72 {dimension_numbers = #tpu.dot_dimension_numbers<[1], [0], [0], [1], [0, 0, 1, 1], [], []>} : vector<8x256xf32>, vector<256x512xf32>, vector<8x512xf32> -> vector<8x512xf32>
    %270 = arith.addf %269, %3 : vector<8x512xf32>
    %271 = vector.extract_strided_slice %270 {offsets = [0, 0], sizes = [8, 256], strides = [1, 1]} : vector<8x512xf32> to vector<8x256xf32>
    %272 = arith.negf %271 : vector<8x256xf32>
    %273 = math.exp %272 : vector<8x256xf32>
    %cst_73 = arith.constant 1.000000e+00 : f32
    %274 = vector.broadcast %cst_73 : f32 to vector<8x256xf32>
    %275 = arith.addf %274, %273 : vector<8x256xf32>
    %276 = arith.divf %274, %275 : vector<8x256xf32>
    %277 = vector.extract_strided_slice %276 {offsets = [0, 0], sizes = [8, 128], strides = [1, 1]} : vector<8x256xf32> to vector<8x128xf32>
    %278 = vector.extract_strided_slice %276 {offsets = [0, 128], sizes = [8, 128], strides = [1, 1]} : vector<8x256xf32> to vector<8x128xf32>
    %279 = vector.extract_strided_slice %270 {offsets = [0, 256], sizes = [8, 128], strides = [1, 1]} : vector<8x512xf32> to vector<8x128xf32>
    %280 = vector.extract_strided_slice %270 {offsets = [0, 384], sizes = [8, 128], strides = [1, 1]} : vector<8x512xf32> to vector<8x128xf32>
    %281 = arith.mulf %277, %280 : vector<8x128xf32>
    %282 = arith.addf %279, %281 : vector<8x128xf32>
    %283 = math.tanh %282 : vector<8x128xf32>
    %cst_74 = arith.constant 1.000000e+00 : f32
    %284 = vector.broadcast %cst_74 : f32 to vector<8x128xf32>
    %285 = arith.subf %284, %278 : vector<8x128xf32>
    %286 = arith.mulf %285, %283 : vector<8x128xf32>
    %287 = arith.mulf %278, %237 : vector<8x128xf32>
    %288 = arith.addf %286, %287 : vector<8x128xf32>
    %289 = tpu.concatenate %288, %259 in 1 : vector<8x128xf32>, vector<8x128xf32> -> vector<8x256xf32>
    %c0_75 = arith.constant 0 : index
    %c0_76 = arith.constant 0 : index
    %290 = vector.load %arg4[%c0_75, %c0_76] : memref<256x512xf32, #tpu.memory_space<vmem>>, vector<256x512xf32>
    %cst_77 = arith.constant dense<0.000000e+00> : vector<8x512xf32>
    %291 = tpu.matmul %289, %290, %cst_77 {dimension_numbers = #tpu.dot_dimension_numbers<[1], [0], [0], [1], [0, 0, 1, 1], [], []>} : vector<8x256xf32>, vector<256x512xf32>, vector<8x512xf32> -> vector<8x512xf32>
    %292 = arith.addf %291, %6 : vector<8x512xf32>
    %293 = vector.extract_strided_slice %292 {offsets = [0, 0], sizes = [8, 256], strides = [1, 1]} : vector<8x512xf32> to vector<8x256xf32>
    %294 = arith.negf %293 : vector<8x256xf32>
    %295 = math.exp %294 : vector<8x256xf32>
    %cst_78 = arith.constant 1.000000e+00 : f32
    %296 = vector.broadcast %cst_78 : f32 to vector<8x256xf32>
    %297 = arith.addf %296, %295 : vector<8x256xf32>
    %298 = arith.divf %296, %297 : vector<8x256xf32>
    %299 = vector.extract_strided_slice %298 {offsets = [0, 0], sizes = [8, 128], strides = [1, 1]} : vector<8x256xf32> to vector<8x128xf32>
    %300 = vector.extract_strided_slice %298 {offsets = [0, 128], sizes = [8, 128], strides = [1, 1]} : vector<8x256xf32> to vector<8x128xf32>
    %301 = vector.extract_strided_slice %292 {offsets = [0, 256], sizes = [8, 128], strides = [1, 1]} : vector<8x512xf32> to vector<8x128xf32>
    %302 = vector.extract_strided_slice %292 {offsets = [0, 384], sizes = [8, 128], strides = [1, 1]} : vector<8x512xf32> to vector<8x128xf32>
    %303 = arith.mulf %299, %302 : vector<8x128xf32>
    %304 = arith.addf %301, %303 : vector<8x128xf32>
    %305 = math.tanh %304 : vector<8x128xf32>
    %cst_79 = arith.constant 1.000000e+00 : f32
    %306 = vector.broadcast %cst_79 : f32 to vector<8x128xf32>
    %307 = arith.subf %306, %300 : vector<8x128xf32>
    %308 = arith.mulf %307, %305 : vector<8x128xf32>
    %309 = arith.mulf %300, %259 : vector<8x128xf32>
    %310 = arith.addf %308, %309 : vector<8x128xf32>
    %c5_i32 = arith.constant 5 : i32
    %311 = vector.broadcast %c5_i32 : i32 to vector<8x1xi32>
    %312 = arith.cmpi eq, %0, %311 : vector<8x1xi32>
    %313 = vector.shape_cast %312 : vector<8x1xi1> to vector<8x1xi1>
    %314 = vector.broadcast %313 : vector<8x1xi1> to vector<8x128xi1>
    %315 = arith.select %314, %310, %264 : vector<8x128xi1>, vector<8x128xf32>
    %c6 = arith.constant 6 : index
    %c0_80 = arith.constant 0 : index
    %c0_81 = arith.constant 0 : index
    %316 = vector.load %arg1[%c6, %c0_80, %c0_81] : memref<8x8x128xf32, #tpu.memory_space<vmem>>, vector<1x8x128xf32>
    %317 = vector.shape_cast %316 : vector<1x8x128xf32> to vector<8x128xf32>
    %318 = tpu.concatenate %317, %288 in 1 : vector<8x128xf32>, vector<8x128xf32> -> vector<8x256xf32>
    %c0_82 = arith.constant 0 : index
    %c0_83 = arith.constant 0 : index
    %319 = vector.load %arg2[%c0_82, %c0_83] : memref<256x512xf32, #tpu.memory_space<vmem>>, vector<256x512xf32>
    %cst_84 = arith.constant dense<0.000000e+00> : vector<8x512xf32>
    %320 = tpu.matmul %318, %319, %cst_84 {dimension_numbers = #tpu.dot_dimension_numbers<[1], [0], [0], [1], [0, 0, 1, 1], [], []>} : vector<8x256xf32>, vector<256x512xf32>, vector<8x512xf32> -> vector<8x512xf32>
    %321 = arith.addf %320, %3 : vector<8x512xf32>
    %322 = vector.extract_strided_slice %321 {offsets = [0, 0], sizes = [8, 256], strides = [1, 1]} : vector<8x512xf32> to vector<8x256xf32>
    %323 = arith.negf %322 : vector<8x256xf32>
    %324 = math.exp %323 : vector<8x256xf32>
    %cst_85 = arith.constant 1.000000e+00 : f32
    %325 = vector.broadcast %cst_85 : f32 to vector<8x256xf32>
    %326 = arith.addf %325, %324 : vector<8x256xf32>
    %327 = arith.divf %325, %326 : vector<8x256xf32>
    %328 = vector.extract_strided_slice %327 {offsets = [0, 0], sizes = [8, 128], strides = [1, 1]} : vector<8x256xf32> to vector<8x128xf32>
    %329 = vector.extract_strided_slice %327 {offsets = [0, 128], sizes = [8, 128], strides = [1, 1]} : vector<8x256xf32> to vector<8x128xf32>
    %330 = vector.extract_strided_slice %321 {offsets = [0, 256], sizes = [8, 128], strides = [1, 1]} : vector<8x512xf32> to vector<8x128xf32>
    %331 = vector.extract_strided_slice %321 {offsets = [0, 384], sizes = [8, 128], strides = [1, 1]} : vector<8x512xf32> to vector<8x128xf32>
    %332 = arith.mulf %328, %331 : vector<8x128xf32>
    %333 = arith.addf %330, %332 : vector<8x128xf32>
    %334 = math.tanh %333 : vector<8x128xf32>
    %cst_86 = arith.constant 1.000000e+00 : f32
    %335 = vector.broadcast %cst_86 : f32 to vector<8x128xf32>
    %336 = arith.subf %335, %329 : vector<8x128xf32>
    %337 = arith.mulf %336, %334 : vector<8x128xf32>
    %338 = arith.mulf %329, %288 : vector<8x128xf32>
    %339 = arith.addf %337, %338 : vector<8x128xf32>
    %340 = tpu.concatenate %339, %310 in 1 : vector<8x128xf32>, vector<8x128xf32> -> vector<8x256xf32>
    %c0_87 = arith.constant 0 : index
    %c0_88 = arith.constant 0 : index
    %341 = vector.load %arg4[%c0_87, %c0_88] : memref<256x512xf32, #tpu.memory_space<vmem>>, vector<256x512xf32>
    %cst_89 = arith.constant dense<0.000000e+00> : vector<8x512xf32>
    %342 = tpu.matmul %340, %341, %cst_89 {dimension_numbers = #tpu.dot_dimension_numbers<[1], [0], [0], [1], [0, 0, 1, 1], [], []>} : vector<8x256xf32>, vector<256x512xf32>, vector<8x512xf32> -> vector<8x512xf32>
    %343 = arith.addf %342, %6 : vector<8x512xf32>
    %344 = vector.extract_strided_slice %343 {offsets = [0, 0], sizes = [8, 256], strides = [1, 1]} : vector<8x512xf32> to vector<8x256xf32>
    %345 = arith.negf %344 : vector<8x256xf32>
    %346 = math.exp %345 : vector<8x256xf32>
    %cst_90 = arith.constant 1.000000e+00 : f32
    %347 = vector.broadcast %cst_90 : f32 to vector<8x256xf32>
    %348 = arith.addf %347, %346 : vector<8x256xf32>
    %349 = arith.divf %347, %348 : vector<8x256xf32>
    %350 = vector.extract_strided_slice %349 {offsets = [0, 0], sizes = [8, 128], strides = [1, 1]} : vector<8x256xf32> to vector<8x128xf32>
    %351 = vector.extract_strided_slice %349 {offsets = [0, 128], sizes = [8, 128], strides = [1, 1]} : vector<8x256xf32> to vector<8x128xf32>
    %352 = vector.extract_strided_slice %343 {offsets = [0, 256], sizes = [8, 128], strides = [1, 1]} : vector<8x512xf32> to vector<8x128xf32>
    %353 = vector.extract_strided_slice %343 {offsets = [0, 384], sizes = [8, 128], strides = [1, 1]} : vector<8x512xf32> to vector<8x128xf32>
    %354 = arith.mulf %350, %353 : vector<8x128xf32>
    %355 = arith.addf %352, %354 : vector<8x128xf32>
    %356 = math.tanh %355 : vector<8x128xf32>
    %cst_91 = arith.constant 1.000000e+00 : f32
    %357 = vector.broadcast %cst_91 : f32 to vector<8x128xf32>
    %358 = arith.subf %357, %351 : vector<8x128xf32>
    %359 = arith.mulf %358, %356 : vector<8x128xf32>
    %360 = arith.mulf %351, %310 : vector<8x128xf32>
    %361 = arith.addf %359, %360 : vector<8x128xf32>
    %c6_i32 = arith.constant 6 : i32
    %362 = vector.broadcast %c6_i32 : i32 to vector<8x1xi32>
    %363 = arith.cmpi eq, %0, %362 : vector<8x1xi32>
    %364 = vector.shape_cast %363 : vector<8x1xi1> to vector<8x1xi1>
    %365 = vector.broadcast %364 : vector<8x1xi1> to vector<8x128xi1>
    %366 = arith.select %365, %361, %315 : vector<8x128xi1>, vector<8x128xf32>
    %c7 = arith.constant 7 : index
    %c0_92 = arith.constant 0 : index
    %c0_93 = arith.constant 0 : index
    %367 = vector.load %arg1[%c7, %c0_92, %c0_93] : memref<8x8x128xf32, #tpu.memory_space<vmem>>, vector<1x8x128xf32>
    %368 = vector.shape_cast %367 : vector<1x8x128xf32> to vector<8x128xf32>
    %369 = tpu.concatenate %368, %339 in 1 : vector<8x128xf32>, vector<8x128xf32> -> vector<8x256xf32>
    %c0_94 = arith.constant 0 : index
    %c0_95 = arith.constant 0 : index
    %370 = vector.load %arg2[%c0_94, %c0_95] : memref<256x512xf32, #tpu.memory_space<vmem>>, vector<256x512xf32>
    %cst_96 = arith.constant dense<0.000000e+00> : vector<8x512xf32>
    %371 = tpu.matmul %369, %370, %cst_96 {dimension_numbers = #tpu.dot_dimension_numbers<[1], [0], [0], [1], [0, 0, 1, 1], [], []>} : vector<8x256xf32>, vector<256x512xf32>, vector<8x512xf32> -> vector<8x512xf32>
    %372 = arith.addf %371, %3 : vector<8x512xf32>
    %373 = vector.extract_strided_slice %372 {offsets = [0, 0], sizes = [8, 256], strides = [1, 1]} : vector<8x512xf32> to vector<8x256xf32>
    %374 = arith.negf %373 : vector<8x256xf32>
    %375 = math.exp %374 : vector<8x256xf32>
    %cst_97 = arith.constant 1.000000e+00 : f32
    %376 = vector.broadcast %cst_97 : f32 to vector<8x256xf32>
    %377 = arith.addf %376, %375 : vector<8x256xf32>
    %378 = arith.divf %376, %377 : vector<8x256xf32>
    %379 = vector.extract_strided_slice %378 {offsets = [0, 0], sizes = [8, 128], strides = [1, 1]} : vector<8x256xf32> to vector<8x128xf32>
    %380 = vector.extract_strided_slice %378 {offsets = [0, 128], sizes = [8, 128], strides = [1, 1]} : vector<8x256xf32> to vector<8x128xf32>
    %381 = vector.extract_strided_slice %372 {offsets = [0, 256], sizes = [8, 128], strides = [1, 1]} : vector<8x512xf32> to vector<8x128xf32>
    %382 = vector.extract_strided_slice %372 {offsets = [0, 384], sizes = [8, 128], strides = [1, 1]} : vector<8x512xf32> to vector<8x128xf32>
    %383 = arith.mulf %379, %382 : vector<8x128xf32>
    %384 = arith.addf %381, %383 : vector<8x128xf32>
    %385 = math.tanh %384 : vector<8x128xf32>
    %cst_98 = arith.constant 1.000000e+00 : f32
    %386 = vector.broadcast %cst_98 : f32 to vector<8x128xf32>
    %387 = arith.subf %386, %380 : vector<8x128xf32>
    %388 = arith.mulf %387, %385 : vector<8x128xf32>
    %389 = arith.mulf %380, %339 : vector<8x128xf32>
    %390 = arith.addf %388, %389 : vector<8x128xf32>
    %391 = tpu.concatenate %390, %361 in 1 : vector<8x128xf32>, vector<8x128xf32> -> vector<8x256xf32>
    %c0_99 = arith.constant 0 : index
    %c0_100 = arith.constant 0 : index
    %392 = vector.load %arg4[%c0_99, %c0_100] : memref<256x512xf32, #tpu.memory_space<vmem>>, vector<256x512xf32>
    %cst_101 = arith.constant dense<0.000000e+00> : vector<8x512xf32>
    %393 = tpu.matmul %391, %392, %cst_101 {dimension_numbers = #tpu.dot_dimension_numbers<[1], [0], [0], [1], [0, 0, 1, 1], [], []>} : vector<8x256xf32>, vector<256x512xf32>, vector<8x512xf32> -> vector<8x512xf32>
    %394 = arith.addf %393, %6 : vector<8x512xf32>
    %395 = vector.extract_strided_slice %394 {offsets = [0, 0], sizes = [8, 256], strides = [1, 1]} : vector<8x512xf32> to vector<8x256xf32>
    %396 = arith.negf %395 : vector<8x256xf32>
    %397 = math.exp %396 : vector<8x256xf32>
    %cst_102 = arith.constant 1.000000e+00 : f32
    %398 = vector.broadcast %cst_102 : f32 to vector<8x256xf32>
    %399 = arith.addf %398, %397 : vector<8x256xf32>
    %400 = arith.divf %398, %399 : vector<8x256xf32>
    %401 = vector.extract_strided_slice %400 {offsets = [0, 0], sizes = [8, 128], strides = [1, 1]} : vector<8x256xf32> to vector<8x128xf32>
    %402 = vector.extract_strided_slice %400 {offsets = [0, 128], sizes = [8, 128], strides = [1, 1]} : vector<8x256xf32> to vector<8x128xf32>
    %403 = vector.extract_strided_slice %394 {offsets = [0, 256], sizes = [8, 128], strides = [1, 1]} : vector<8x512xf32> to vector<8x128xf32>
    %404 = vector.extract_strided_slice %394 {offsets = [0, 384], sizes = [8, 128], strides = [1, 1]} : vector<8x512xf32> to vector<8x128xf32>
    %405 = arith.mulf %401, %404 : vector<8x128xf32>
    %406 = arith.addf %403, %405 : vector<8x128xf32>
    %407 = math.tanh %406 : vector<8x128xf32>
    %cst_103 = arith.constant 1.000000e+00 : f32
    %408 = vector.broadcast %cst_103 : f32 to vector<8x128xf32>
    %409 = arith.subf %408, %402 : vector<8x128xf32>
    %410 = arith.mulf %409, %407 : vector<8x128xf32>
    %411 = arith.mulf %402, %361 : vector<8x128xf32>
    %412 = arith.addf %410, %411 : vector<8x128xf32>
    %c7_i32 = arith.constant 7 : i32
    %413 = vector.broadcast %c7_i32 : i32 to vector<8x1xi32>
    %414 = arith.cmpi eq, %0, %413 : vector<8x1xi32>
    %415 = vector.shape_cast %414 : vector<8x1xi1> to vector<8x1xi1>
    %416 = vector.broadcast %415 : vector<8x1xi1> to vector<8x128xi1>
    %417 = arith.select %416, %412, %366 : vector<8x128xi1>, vector<8x128xf32>
    %c0_104 = arith.constant 0 : index
    %c0_105 = arith.constant 0 : index
    %418 = vector.load %arg6[%c0_104, %c0_105] : memref<8x128xf32, #tpu.memory_space<vmem>>, vector<8x128xf32>
    tpu.vector_store %arg6[%c0_104, %c0_105], %417 {strides = array<i32>} : memref<8x128xf32, #tpu.memory_space<vmem>>, vector<8x128xf32>,
    return
  }
}

</mosaic_0001>

<llo_original>
// kernel: tpu_custom_call.1
$region0: #{tpu_custom_call.1}
  #allocation0 [shape = 'u32[]', space=smem, size = 0x4, offset = 0x4, fixed_abs, tag = 'smem constant byte address 0x4 - core index']
  #allocation1 [shape = 'u32[72,128]{1,0:T(1,128)}', space=vmem, size = 0x9000, scoped, tag = 'internal scratch']
  %s0 = inlined_call_operand.vmem [shape: s32[8,1], index: 0, kind: input, shape index: {}]
  %s1 = inlined_call_operand.hbm [shape: f32[8,8,128], index: 1, kind: input, shape index: {}]
  %s2 = inlined_call_operand.hbm [shape: f32[256,512], index: 2, kind: input, shape index: {}]
  %s3 = inlined_call_operand.vmem [shape: f32[1,512], index: 3, kind: input, shape index: {}]
  %s4 = inlined_call_operand.hbm [shape: f32[256,512], index: 4, kind: input, shape index: {}]
  %s5 = inlined_call_operand.vmem [shape: f32[1,512], index: 5, kind: input, shape index: {}]
  %s6 = inlined_call_operand.hbm [shape: f32[8,128], index: 6, kind: output, shape index: {}]
  %s7 = sld [smem:[#allocation0]]
  $region46: #{tpu_custom_call.1} parent=0
    _
  %s9 = ssub.s32 1, %s7
  %s10 = scalar_select 0, %s9, %s7
  $region1: #{tpu_custom_call.1} parent=0
    #allocation2 [shape = 'u8[32768]{0}', space=vmem, size = 0x8000, scoped, tag = 'input window, operand 1, single buffered']
    #allocation3 [shape = 's32[1]{0}', space=sflag, size = 0x4, scoped, tag = 'scoped memory for tpu_custom_call.1']
    #allocation4 [shape = 's32[1]{0}', space=sflag, size = 0x4, scoped, tag = 'scoped memory for tpu_custom_call.1']
    #allocation5 [shape = 'u8[524288]{0}', space=vmem, size = 0x80000, scoped, tag = 'input window, operand 2, single buffered']
    #allocation6 [shape = 's32[1]{0}', space=sflag, size = 0x4, scoped, tag = 'scoped memory for tpu_custom_call.1']
    #allocation7 [shape = 'u8[524288]{0}', space=vmem, size = 0x80000, scoped, tag = 'input window, operand 4, single buffered']
    #allocation8 [shape = 'u8[4096]{0}', space=vmem, size = 0x1000, scoped, tag = 'output window, operand 0, single buffered']
    %11 = vsyncpa [#allocation3], 0
    %12 = vsyncpa [#allocation6], 0
    %13 = vsyncpa [#allocation4], 0
    // Predicated region
    $region2: #{tpu_custom_call.1} parent=1 // pred_check
      _
    $region3: #{tpu_custom_call.1} parent=1 // pred_check_branch
      %15 = sbr.rel (0) target = $region5
    $region4: #{tpu_custom_call.1} parent=1 // pred_region
      _
    $region5: #{tpu_custom_call.1} parent=1 // pred_fallthru
      _
    // Predicated region
    $region6: #{tpu_custom_call.1} parent=1 // pred_check
      _
    $region7: #{tpu_custom_call.1} parent=1 // pred_check_branch
      %17 = sbr.rel (0) target = $region9
    $region8: #{tpu_custom_call.1} parent=1 // pred_region
      %19 = vsyncadd [#allocation3], 0
      %s20 = sshll.u32 %s1, 4
      %s21 = int_to_ptr.hbm [resolvable:$true] %s20
      %s22 = sshll.u32 [#allocation2], 4
      %s23 = int_to_ptr.vmem [resolvable:$true] %s22
      %28 = dma.hbm_to_vmem [thread:$0]  %s21, 1024, %s23, [#allocation3], 128, 128, 8
    $region9: #{tpu_custom_call.1} parent=1 // pred_fallthru
      _
    // Predicated region
    $region10: #{tpu_custom_call.1} parent=1 // pred_check
      _
    $region11: #{tpu_custom_call.1} parent=1 // pred_check_branch
      %30 = sbr.rel (0) target = $region13
    $region12: #{tpu_custom_call.1} parent=1 // pred_region
      %32 = vsyncadd [#allocation6], 0
      %s33 = sshll.u32 %s2, 4
      %s34 = int_to_ptr.hbm [resolvable:$true] %s33
      %s35 = sshll.u32 [#allocation5], 4
      %s36 = int_to_ptr.vmem [resolvable:$true] %s35
      %41 = dma.hbm_to_vmem [thread:$0]  %s34, 16384, %s36, [#allocation6], 512, 512, 32
    $region13: #{tpu_custom_call.1} parent=1 // pred_fallthru
      _
    // Predicated region
    $region14: #{tpu_custom_call.1} parent=1 // pred_check
      _
    $region15: #{tpu_custom_call.1} parent=1 // pred_check_branch
      %43 = sbr.rel (0) target = $region17
    $region16: #{tpu_custom_call.1} parent=1 // pred_region
      _
    $region17: #{tpu_custom_call.1} parent=1 // pred_fallthru
      _
    // Predicated region
    $region18: #{tpu_custom_call.1} parent=1 // pred_check
      _
    $region19: #{tpu_custom_call.1} parent=1 // pred_check_branch
      %45 = sbr.rel (0) target = $region21
    $region20: #{tpu_custom_call.1} parent=1 // pred_region
      %47 = vsyncadd [#allocation6], 0
      %s48 = sshll.u32 %s4, 4
      %s49 = int_to_ptr.hbm [resolvable:$true] %s48
      %s50 = sshll.u32 [#allocation7], 4
      %s51 = int_to_ptr.vmem [resolvable:$true] %s50
      %56 = dma.hbm_to_vmem [thread:$0]  %s49, 16384, %s51, [#allocation6], 512, 512, 32
    $region21: #{tpu_custom_call.1} parent=1 // pred_fallthru
      _
    // Predicated region
    $region22: #{tpu_custom_call.1} parent=1 // pred_check
      _
    $region23: #{tpu_custom_call.1} parent=1 // pred_check_branch
      %58 = sbr.rel (0) target = $region25
    $region24: #{tpu_custom_call.1} parent=1 // pred_region
      _
    $region25: #{tpu_custom_call.1} parent=1 // pred_fallthru
      _
    // Predicated region
    $region26: #{tpu_custom_call.1} parent=1 // pred_check
      _
    $region27: #{tpu_custom_call.1} parent=1 // pred_check_branch
      %60 = sbr.rel (0) target = $region29
    $region28: #{tpu_custom_call.1} parent=1 // pred_region
      %62 = dma.done [#allocation3], 1024
    $region29: #{tpu_custom_call.1} parent=1 // pred_fallthru
      _
    // Predicated region
    $region30: #{tpu_custom_call.1} parent=1 // pred_check
      _
    $region31: #{tpu_custom_call.1} parent=1 // pred_check_branch
      %64 = sbr.rel (0) target = $region33
    $region32: #{tpu_custom_call.1} parent=1 // pred_region
      %66 = dma.done [#allocation6], 16384
    $region33: #{tpu_custom_call.1} parent=1 // pred_fallthru
      _
    // Predicated region
    $region34: #{tpu_custom_call.1} parent=1 // pred_check
      _
    $region35: #{tpu_custom_call.1} parent=1 // pred_check_branch
      %68 = sbr.rel (0) target = $region37
    $region36: #{tpu_custom_call.1} parent=1 // pred_region
      %70 = dma.done [#allocation6], 16384
    $region37: #{tpu_custom_call.1} parent=1 // pred_fallthru
      _
    %v71 = vld [vmem:[%s0] sm:$0xff]
    %v72 = vld [vmem:[%s3] sm:$0xf]
    %v74 = vperm.slane %v72, 0
    %v75 = vperm.slane %v72, 1
    %v76 = vperm.slane %v72, 2
    %v77 = vperm.slane %v72, 3
    %v82 = vld [vmem:[%s5] sm:$0xf]
    %v84 = vperm.slane %v82, 0
    %v85 = vperm.slane %v82, 1
    %v86 = vperm.slane %v82, 2
    %v87 = vperm.slane %v82, 3
    %v92 = vld [vmem:[#allocation2] sm:$0xff]
    %v93 = vld [vmem:[#allocation5] sm:$0xff]
    %v94 = vld [vmem:[#allocation5 + $0x8] sm:$0xff]
    %v95 = vld [vmem:[#allocation5 + $0x10] sm:$0xff]
    %v96 = vld [vmem:[#allocation5 + $0x18] sm:$0xff]
    %v97 = vld [vmem:[#allocation5 + $0x20] sm:$0xff]
    %v98 = vld [vmem:[#allocation5 + $0x28] sm:$0xff]
    %v99 = vld [vmem:[#allocation5 + $0x30] sm:$0xff]
    %v100 = vld [vmem:[#allocation5 + $0x38] sm:$0xff]
    %v101 = vld [vmem:[#allocation5 + $0x40] sm:$0xff]
    %v102 = vld [vmem:[#allocation5 + $0x48] sm:$0xff]
    %v103 = vld [vmem:[#allocation5 + $0x50] sm:$0xff]
    %v104 = vld [vmem:[#allocation5 + $0x58] sm:$0xff]
    %v105 = vld [vmem:[#allocation5 + $0x60] sm:$0xff]
    %v106 = vld [vmem:[#allocation5 + $0x68] sm:$0xff]
    %v107 = vld [vmem:[#allocation5 + $0x70] sm:$0xff]
    %v108 = vld [vmem:[#allocation5 + $0x78] sm:$0xff]
    %v109 = vld [vmem:[#allocation5 + $0x80] sm:$0xff]
    %v110 = vld [vmem:[#allocation5 + $0x88] sm:$0xff]
    %v111 = vld [vmem:[#allocation5 + $0x90] sm:$0xff]
    %v112 = vld [vmem:[#allocation5 + $0x98] sm:$0xff]
    %v113 = vld [vmem:[#allocation5 + $0xa0] sm:$0xff]
    %v114 = vld [vmem:[#allocation5 + $0xa8] sm:$0xff]
    %v115 = vld [vmem:[#allocation5 + $0xb0] sm:$0xff]
    %v116 = vld [vmem:[#allocation5 + $0xb8] sm:$0xff]
    %v117 = vld [vmem:[#allocation5 + $0xc0] sm:$0xff]
    %v118 = vld [vmem:[#allocation5 + $0xc8] sm:$0xff]
    %v119 = vld [vmem:[#allocation5 + $0xd0] sm:$0xff]
    %v120 = vld [vmem:[#allocation5 + $0xd8] sm:$0xff]
    %v121 = vld [vmem:[#allocation5 + $0xe0] sm:$0xff]
    %v122 = vld [vmem:[#allocation5 + $0xe8] sm:$0xff]
    %v123 = vld [vmem:[#allocation5 + $0xf0] sm:$0xff]
    %v124 = vld [vmem:[#allocation5 + $0xf8] sm:$0xff]
    %v125 = vld [vmem:[#allocation5 + $0x100] sm:$0xff]
    %v126 = vld [vmem:[#allocation5 + $0x108] sm:$0xff]
    %v127 = vld [vmem:[#allocation5 + $0x110] sm:$0xff]
    %v128 = vld [vmem:[#allocation5 + $0x118] sm:$0xff]
    %v129 = vld [vmem:[#allocation5 + $0x120] sm:$0xff]
    %v130 = vld [vmem:[#allocation5 + $0x128] sm:$0xff]
    %v131 = vld [vmem:[#allocation5 + $0x130] sm:$0xff]
    %v132 = vld [vmem:[#allocation5 + $0x138] sm:$0xff]
    %v133 = vld [vmem:[#allocation5 + $0x140] sm:$0xff]
    %v134 = vld [vmem:[#allocation5 + $0x148] sm:$0xff]
    %v135 = vld [vmem:[#allocation5 + $0x150] sm:$0xff]
    %v136 = vld [vmem:[#allocation5 + $0x158] sm:$0xff]
    %v137 = vld [vmem:[#allocation5 + $0x160] sm:$0xff]
    %v138 = vld [vmem:[#allocation5 + $0x168] sm:$0xff]
    %v139 = vld [vmem:[#allocation5 + $0x170] sm:$0xff]
    %v140 = vld [vmem:[#allocation5 + $0x178] sm:$0xff]
    %v141 = vld [vmem:[#allocation5 + $0x180] sm:$0xff]
    %v142 = vld [vmem:[#allocation5 + $0x188] sm:$0xff]
    %v143 = vld [vmem:[#allocation5 + $0x190] sm:$0xff]
    %v144 = vld [vmem:[#allocation5 + $0x198] sm:$0xff]
    %v145 = vld [vmem:[#allocation5 + $0x1a0] sm:$0xff]
    %v146 = vld [vmem:[#allocation5 + $0x1a8] sm:$0xff]
    %v147 = vld [vmem:[#allocation5 + $0x1b0] sm:$0xff]
    %v148 = vld [vmem:[#allocation5 + $0x1b8] sm:$0xff]
    %v149 = vld [vmem:[#allocation5 + $0x1c0] sm:$0xff]
    %v150 = vld [vmem:[#allocation5 + $0x1c8] sm:$0xff]
    %v151 = vld [vmem:[#allocation5 + $0x1d0] sm:$0xff]
    %v152 = vld [vmem:[#allocation5 + $0x1d8] sm:$0xff]
    %v153 = vld [vmem:[#allocation5 + $0x1e0] sm:$0xff]
    %v154 = vld [vmem:[#allocation5 + $0x1e8] sm:$0xff]
    %v155 = vld [vmem:[#allocation5 + $0x1f0] sm:$0xff]
    %v156 = vld [vmem:[#allocation5 + $0x1f8] sm:$0xff]
    %v157 = vld [vmem:[#allocation5 + $0x200] sm:$0xff]
    %v158 = vld [vmem:[#allocation5 + $0x208] sm:$0xff]
    %v159 = vld [vmem:[#allocation5 + $0x210] sm:$0xff]
    %v160 = vld [vmem:[#allocation5 + $0x218] sm:$0xff]
    %v161 = vld [vmem:[#allocation5 + $0x220] sm:$0xff]
    %v162 = vld [vmem:[#allocation5 + $0x228] sm:$0xff]
    %v163 = vld [vmem:[#allocation5 + $0x230] sm:$0xff]
    %v164 = vld [vmem:[#allocation5 + $0x238] sm:$0xff]
    %v165 = vld [vmem:[#allocation5 + $0x240] sm:$0xff]
    %v166 = vld [vmem:[#allocation5 + $0x248] sm:$0xff]
    %v167 = vld [vmem:[#allocation5 + $0x250] sm:$0xff]
    %v168 = vld [vmem:[#allocation5 + $0x258] sm:$0xff]
    %v169 = vld [vmem:[#allocation5 + $0x260] sm:$0xff]
    %v170 = vld [vmem:[#allocation5 + $0x268] sm:$0xff]
    %v171 = vld [vmem:[#allocation5 + $0x270] sm:$0xff]
    %v172 = vld [vmem:[#allocation5 + $0x278] sm:$0xff]
    %v173 = vld [vmem:[#allocation5 + $0x280] sm:$0xff]
    %v174 = vld [vmem:[#allocation5 + $0x288] sm:$0xff]
    %v175 = vld [vmem:[#allocation5 + $0x290] sm:$0xff]
    %v176 = vld [vmem:[#allocation5 + $0x298] sm:$0xff]
    %v177 = vld [vmem:[#allocation5 + $0x2a0] sm:$0xff]
    %v178 = vld [vmem:[#allocation5 + $0x2a8] sm:$0xff]
    %v179 = vld [vmem:[#allocation5 + $0x2b0] sm:$0xff]
    %v180 = vld [vmem:[#allocation5 + $0x2b8] sm:$0xff]
    %v181 = vld [vmem:[#allocation5 + $0x2c0] sm:$0xff]
    %v182 = vld [vmem:[#allocation5 + $0x2c8] sm:$0xff]
    %v183 = vld [vmem:[#allocation5 + $0x2d0] sm:$0xff]
    %v184 = vld [vmem:[#allocation5 + $0x2d8] sm:$0xff]
    %v185 = vld [vmem:[#allocation5 + $0x2e0] sm:$0xff]
    %v186 = vld [vmem:[#allocation5 + $0x2e8] sm:$0xff]
    %v187 = vld [vmem:[#allocation5 + $0x2f0] sm:$0xff]
    %v188 = vld [vmem:[#allocation5 + $0x2f8] sm:$0xff]
    %v189 = vld [vmem:[#allocation5 + $0x300] sm:$0xff]
    %v190 = vld [vmem:[#allocation5 + $0x308] sm:$0xff]
    %v191 = vld [vmem:[#allocation5 + $0x310] sm:$0xff]
    %v192 = vld [vmem:[#allocation5 + $0x318] sm:$0xff]
    %v193 = vld [vmem:[#allocation5 + $0x320] sm:$0xff]
    %v194 = vld [vmem:[#allocation5 + $0x328] sm:$0xff]
    %v195 = vld [vmem:[#allocation5 + $0x330] sm:$0xff]
    %v196 = vld [vmem:[#allocation5 + $0x338] sm:$0xff]
    %v197 = vld [vmem:[#allocation5 + $0x340] sm:$0xff]
    %v198 = vld [vmem:[#allocation5 + $0x348] sm:$0xff]
    %v199 = vld [vmem:[#allocation5 + $0x350] sm:$0xff]
    %v200 = vld [vmem:[#allocation5 + $0x358] sm:$0xff]
    %v201 = vld [vmem:[#allocation5 + $0x360] sm:$0xff]
    %v202 = vld [vmem:[#allocation5 + $0x368] sm:$0xff]
    %v203 = vld [vmem:[#allocation5 + $0x370] sm:$0xff]
    %v204 = vld [vmem:[#allocation5 + $0x378] sm:$0xff]
    %v205 = vld [vmem:[#allocation5 + $0x380] sm:$0xff]
    %v206 = vld [vmem:[#allocation5 + $0x388] sm:$0xff]
    %v207 = vld [vmem:[#allocation5 + $0x390] sm:$0xff]
    %v208 = vld [vmem:[#allocation5 + $0x398] sm:$0xff]
    %v209 = vld [vmem:[#allocation5 + $0x3a0] sm:$0xff]
    %v210 = vld [vmem:[#allocation5 + $0x3a8] sm:$0xff]
    %v211 = vld [vmem:[#allocation5 + $0x3b0] sm:$0xff]
    %v212 = vld [vmem:[#allocation5 + $0x3b8] sm:$0xff]
    %v213 = vld [vmem:[#allocation5 + $0x3c0] sm:$0xff]
    %v214 = vld [vmem:[#allocation5 + $0x3c8] sm:$0xff]
    %v215 = vld [vmem:[#allocation5 + $0x3d0] sm:$0xff]
    %v216 = vld [vmem:[#allocation5 + $0x3d8] sm:$0xff]
    %v217 = vld [vmem:[#allocation5 + $0x3e0] sm:$0xff]
    %v218 = vld [vmem:[#allocation5 + $0x3e8] sm:$0xff]
    %v219 = vld [vmem:[#allocation5 + $0x3f0] sm:$0xff]
    %v220 = vld [vmem:[#allocation5 + $0x3f8] sm:$0xff]
    %221 = vmatpush.msra.mxu0 %v153
    %222 = vmatpush.msra.mxu0 %v149
    %223 = vmatpush.msra.mxu0 %v145
    %224 = vmatpush.msra.mxu0 %v141
    %225 = vmatpush.msra.mxu0 %v137
    %226 = vmatpush.msra.mxu0 %v133
    %227 = vmatpush.msra.mxu0 %v129
    %228 = vmatpush.msra.mxu0 %v125
    %229 = vmatpush.msra.mxu0 %v121
    %230 = vmatpush.msra.mxu0 %v117
    %231 = vmatpush.msra.mxu0 %v113
    %232 = vmatpush.msra.mxu0 %v109
    %233 = vmatpush.msra.mxu0 %v105
    %234 = vmatpush.msra.mxu0 %v101
    %235 = vmatpush.msra.mxu0 %v97
    %236 = vmatpush.msra.mxu0 %v93
    %237 = vmatmul.f32.gmra.mxu0 %v92
    %v238 = vpop.f32.mrf.mxu0
    %v239 = vadd.f32 %v74, %v238
    %240 = vdwg.mxu0
    %241 = vmatpush.msra.mxu0 %v217
    %242 = vmatpush.msra.mxu0 %v213
    %243 = vmatpush.msra.mxu0 %v209
    %244 = vmatpush.msra.mxu0 %v205
    %245 = vmatpush.msra.mxu0 %v201
    %246 = vmatpush.msra.mxu0 %v197
    %247 = vmatpush.msra.mxu0 %v193
    %248 = vmatpush.msra.mxu0 %v189
    %249 = vmatpush.msra.mxu0 %v185
    %250 = vmatpush.msra.mxu0 %v181
    %251 = vmatpush.msra.mxu0 %v177
    %252 = vmatpush.msra.mxu0 %v173
    %253 = vmatpush.msra.mxu0 %v169
    %254 = vmatpush.msra.mxu0 %v165
    %255 = vmatpush.msra.mxu0 %v161
    %256 = vmatpush.msra.mxu0 %v157
    %257 = vmatmul.f32.gmra.mxu0 0.0
    %v258 = vpop.f32.mrf.mxu0
    %v259 = vadd.f32 %v239, %v258
    %260 = vdwg.mxu0
    %261 = vmatpush.msra.mxu0 %v154
    %262 = vmatpush.msra.mxu0 %v150
    %263 = vmatpush.msra.mxu0 %v146
    %264 = vmatpush.msra.mxu0 %v142
    %265 = vmatpush.msra.mxu0 %v138
    %266 = vmatpush.msra.mxu0 %v134
    %267 = vmatpush.msra.mxu0 %v130
    %268 = vmatpush.msra.mxu0 %v126
    %269 = vmatpush.msra.mxu0 %v122
    %270 = vmatpush.msra.mxu0 %v118
    %271 = vmatpush.msra.mxu0 %v114
    %272 = vmatpush.msra.mxu0 %v110
    %273 = vmatpush.msra.mxu0 %v106
    %274 = vmatpush.msra.mxu0 %v102
    %275 = vmatpush.msra.mxu0 %v98
    %276 = vmatpush.msra.mxu0 %v94
    %277 = vmatmul.f32.gmra.mxu0 %v92
    %v278 = vpop.f32.mrf.mxu0
    %v279 = vadd.f32 %v75, %v278
    %280 = vdwg.mxu0
    %281 = vmatpush.msra.mxu0 %v218
    %282 = vmatpush.msra.mxu0 %v214
    %283 = vmatpush.msra.mxu0 %v210
    %284 = vmatpush.msra.mxu0 %v206
    %285 = vmatpush.msra.mxu0 %v202
    %286 = vmatpush.msra.mxu0 %v198
    %287 = vmatpush.msra.mxu0 %v194
    %288 = vmatpush.msra.mxu0 %v190
    %289 = vmatpush.msra.mxu0 %v186
    %290 = vmatpush.msra.mxu0 %v182
    %291 = vmatpush.msra.mxu0 %v178
    %292 = vmatpush.msra.mxu0 %v174
    %293 = vmatpush.msra.mxu0 %v170
    %294 = vmatpush.msra.mxu0 %v166
    %295 = vmatpush.msra.mxu0 %v162
    %296 = vmatpush.msra.mxu0 %v158
    %297 = vmatmul.f32.gmra.mxu0 0.0
    %v298 = vpop.f32.mrf.mxu0
    %v299 = vadd.f32 %v279, %v298
    %300 = vdwg.mxu0
    %301 = vmatpush.msra.mxu0 %v155
    %302 = vmatpush.msra.mxu0 %v151
    %303 = vmatpush.msra.mxu0 %v147
    %304 = vmatpush.msra.mxu0 %v143
    %305 = vmatpush.msra.mxu0 %v139
    %306 = vmatpush.msra.mxu0 %v135
    %307 = vmatpush.msra.mxu0 %v131
    %308 = vmatpush.msra.mxu0 %v127
    %309 = vmatpush.msra.mxu0 %v123
    %310 = vmatpush.msra.mxu0 %v119
    %311 = vmatpush.msra.mxu0 %v115
    %312 = vmatpush.msra.mxu0 %v111
    %313 = vmatpush.msra.mxu0 %v107
    %314 = vmatpush.msra.mxu0 %v103
    %315 = vmatpush.msra.mxu0 %v99
    %316 = vmatpush.msra.mxu0 %v95
    %317 = vmatmul.f32.gmra.mxu0 %v92
    %v318 = vpop.f32.mrf.mxu0
    %v319 = vadd.f32 %v76, %v318
    %320 = vdwg.mxu0
    %321 = vmatpush.msra.mxu0 %v219
    %322 = vmatpush.msra.mxu0 %v215
    %323 = vmatpush.msra.mxu0 %v211
    %324 = vmatpush.msra.mxu0 %v207
    %325 = vmatpush.msra.mxu0 %v203
    %326 = vmatpush.msra.mxu0 %v199
    %327 = vmatpush.msra.mxu0 %v195
    %328 = vmatpush.msra.mxu0 %v191
    %329 = vmatpush.msra.mxu0 %v187
    %330 = vmatpush.msra.mxu0 %v183
    %331 = vmatpush.msra.mxu0 %v179
    %332 = vmatpush.msra.mxu0 %v175
    %333 = vmatpush.msra.mxu0 %v171
    %334 = vmatpush.msra.mxu0 %v167
    %335 = vmatpush.msra.mxu0 %v163
    %336 = vmatpush.msra.mxu0 %v159
    %337 = vmatmul.f32.gmra.mxu0 0.0
    %v338 = vpop.f32.mrf.mxu0
    %v339 = vadd.f32 %v319, %v338
    %340 = vdwg.mxu0
    %341 = vmatpush.msra.mxu0 %v156
    %342 = vmatpush.msra.mxu0 %v152
    %343 = vmatpush.msra.mxu0 %v148
    %344 = vmatpush.msra.mxu0 %v144
    %345 = vmatpush.msra.mxu0 %v140
    %346 = vmatpush.msra.mxu0 %v136
    %347 = vmatpush.msra.mxu0 %v132
    %348 = vmatpush.msra.mxu0 %v128
    %349 = vmatpush.msra.mxu0 %v124
    %350 = vmatpush.msra.mxu0 %v120
    %351 = vmatpush.msra.mxu0 %v116
    %352 = vmatpush.msra.mxu0 %v112
    %353 = vmatpush.msra.mxu0 %v108
    %354 = vmatpush.msra.mxu0 %v104
    %355 = vmatpush.msra.mxu0 %v100
    %356 = vmatpush.msra.mxu0 %v96
    %357 = vmatmul.f32.gmra.mxu0 %v92
    %v358 = vpop.f32.mrf.mxu0
    %v359 = vadd.f32 %v77, %v358
    %360 = vdwg.mxu0
    %361 = vmatpush.msra.mxu0 %v220
    %362 = vmatpush.msra.mxu0 %v216
    %363 = vmatpush.msra.mxu0 %v212
    %364 = vmatpush.msra.mxu0 %v208
    %365 = vmatpush.msra.mxu0 %v204
    %366 = vmatpush.msra.mxu0 %v200
    %367 = vmatpush.msra.mxu0 %v196
    %368 = vmatpush.msra.mxu0 %v192
    %369 = vmatpush.msra.mxu0 %v188
    %370 = vmatpush.msra.mxu0 %v184
    %371 = vmatpush.msra.mxu0 %v180
    %372 = vmatpush.msra.mxu0 %v176
    %373 = vmatpush.msra.mxu0 %v172
    %374 = vmatpush.msra.mxu0 %v168
    %375 = vmatpush.msra.mxu0 %v164
    %376 = vmatpush.msra.mxu0 %v160
    %377 = vmatmul.f32.gmra.mxu0 0.0
    %v378 = vpop.f32.mrf.mxu0
    %v379 = vadd.f32 %v359, %v378
    %380 = vdwg.mxu0
    %v381 = vxor.u32 %v259, 2147483648
    %v382 = vxor.u32 %v299, 2147483648
    %v383 = vmul.f32 %v381, 1.442695
    %v384 = vpow.pop %v383
    %v385 = vmul.f32 %v382, 1.442695
    %v386 = vpow.pop %v385
    %v387 = vadd.f32 %v384, 1.0
    %v388 = vadd.f32 %v386, 1.0
    %v389 = vrcp.pop %v387
    %v390 = vmul.f32 %v387, %v389
    %v391 = vsub.f32 1.0, %v390
    %v392 = vmul.f32 %v389, %v391
    %v393 = vadd.f32 %v389, %v392
    %vm394 = vweird.f32 %v387
    %vm395 = vweird.f32 %v389
    %vm396 = vmor %vm394, %vm395
    %v397 = vsel %vm396, %v389, %v393
    %v398 = vand.u32 2147483647, %v387
    %vm399 = vcmp.eq.f32.partialorder %v398, 8.507059e+37
    %v400 = vand.u32 %v387, 2147483648
    %v401 = vor.u32 1.1754944e-38, %v400
    %v402 = vsel %vm399, %v401, %v397
    %v403 = vmul.f32 1.0, %v402
    %v404 = vrcp.pop %v388
    %v405 = vmul.f32 %v388, %v404
    %v406 = vsub.f32 1.0, %v405
    %v407 = vmul.f32 %v404, %v406
    %v408 = vadd.f32 %v404, %v407
    %vm409 = vweird.f32 %v388
    %vm410 = vweird.f32 %v404
    %vm411 = vmor %vm409, %vm410
    %v412 = vsel %vm411, %v404, %v408
    %v413 = vand.u32 2147483647, %v388
    %vm414 = vcmp.eq.f32.partialorder %v413, 8.507059e+37
    %v415 = vand.u32 %v388, 2147483648
    %v416 = vor.u32 1.1754944e-38, %v415
    %v417 = vsel %vm414, %v416, %v412
    %v418 = vmul.f32 1.0, %v417
    %v419 = vmul.f32 %v403, %v379
    %v420 = vadd.f32 %v339, %v419
    %v421 = vtanh.pop %v420
    %v422 = vsub.f32 1.0, %v418
    %v423 = vmul.f32 %v422, %v421
    %v424 = vmul.f32 %v418, 0.0
    %v425 = vadd.f32 %v423, %v424
    %v426 = vld [vmem:[#allocation7] sm:$0xff]
    %v427 = vld [vmem:[#allocation7 + $0x8] sm:$0xff]
    %v428 = vld [vmem:[#allocation7 + $0x10] sm:$0xff]
    %v429 = vld [vmem:[#allocation7 + $0x18] sm:$0xff]
    %v430 = vld [vmem:[#allocation7 + $0x20] sm:$0xff]
    %v431 = vld [vmem:[#allocation7 + $0x28] sm:$0xff]
    %v432 = vld [vmem:[#allocation7 + $0x30] sm:$0xff]
    %v433 = vld [vmem:[#allocation7 + $0x38] sm:$0xff]
    %v434 = vld [vmem:[#allocation7 + $0x40] sm:$0xff]
    %v435 = vld [vmem:[#allocation7 + $0x48] sm:$0xff]
    %v436 = vld [vmem:[#allocation7 + $0x50] sm:$0xff]
    %v437 = vld [vmem:[#allocation7 + $0x58] sm:$0xff]
    %v438 = vld [vmem:[#allocation7 + $0x60] sm:$0xff]
    %v439 = vld [vmem:[#allocation7 + $0x68] sm:$0xff]
    %v440 = vld [vmem:[#allocation7 + $0x70] sm:$0xff]
    %v441 = vld [vmem:[#allocation7 + $0x78] sm:$0xff]
    %v442 = vld [vmem:[#allocation7 + $0x80] sm:$0xff]
    %v443 = vld [vmem:[#allocation7 + $0x88] sm:$0xff]
    %v444 = vld [vmem:[#allocation7 + $0x90] sm:$0xff]
    %v445 = vld [vmem:[#allocation7 + $0x98] sm:$0xff]
    %v446 = vld [vmem:[#allocation7 + $0xa0] sm:$0xff]
    %v447 = vld [vmem:[#allocation7 + $0xa8] sm:$0xff]
    %v448 = vld [vmem:[#allocation7 + $0xb0] sm:$0xff]
    %v449 = vld [vmem:[#allocation7 + $0xb8] sm:$0xff]
    %v450 = vld [vmem:[#allocation7 + $0xc0] sm:$0xff]
    %v451 = vld [vmem:[#allocation7 + $0xc8] sm:$0xff]
    %v452 = vld [vmem:[#allocation7 + $0xd0] sm:$0xff]
    %v453 = vld [vmem:[#allocation7 + $0xd8] sm:$0xff]
    %v454 = vld [vmem:[#allocation7 + $0xe0] sm:$0xff]
    %v455 = vld [vmem:[#allocation7 + $0xe8] sm:$0xff]
    %v456 = vld [vmem:[#allocation7 + $0xf0] sm:$0xff]
    %v457 = vld [vmem:[#allocation7 + $0xf8] sm:$0xff]
    %v458 = vld [vmem:[#allocation7 + $0x100] sm:$0xff]
    %v459 = vld [vmem:[#allocation7 + $0x108] sm:$0xff]
    %v460 = vld [vmem:[#allocation7 + $0x110] sm:$0xff]
    %v461 = vld [vmem:[#allocation7 + $0x118] sm:$0xff]
    %v462 = vld [vmem:[#allocation7 + $0x120] sm:$0xff]
    %v463 = vld [vmem:[#allocation7 + $0x128] sm:$0xff]
    %v464 = vld [vmem:[#allocation7 + $0x130] sm:$0xff]
    %v465 = vld [vmem:[#allocation7 + $0x138] sm:$0xff]
    %v466 = vld [vmem:[#allocation7 + $0x140] sm:$0xff]
    %v467 = vld [vmem:[#allocation7 + $0x148] sm:$0xff]
    %v468 = vld [vmem:[#allocation7 + $0x150] sm:$0xff]
    %v469 = vld [vmem:[#allocation7 + $0x158] sm:$0xff]
    %v470 = vld [vmem:[#allocation7 + $0x160] sm:$0xff]
    %v471 = vld [vmem:[#allocation7 + $0x168] sm:$0xff]
    %v472 = vld [vmem:[#allocation7 + $0x170] sm:$0xff]
    %v473 = vld [vmem:[#allocation7 + $0x178] sm:$0xff]
    %v474 = vld [vmem:[#allocation7 + $0x180] sm:$0xff]
    %v475 = vld [vmem:[#allocation7 + $0x188] sm:$0xff]
    %v476 = vld [vmem:[#allocation7 + $0x190] sm:$0xff]
    %v477 = vld [vmem:[#allocation7 + $0x198] sm:$0xff]
    %v478 = vld [vmem:[#allocation7 + $0x1a0] sm:$0xff]
    %v479 = vld [vmem:[#allocation7 + $0x1a8] sm:$0xff]
    %v480 = vld [vmem:[#allocation7 + $0x1b0] sm:$0xff]
    %v481 = vld [vmem:[#allocation7 + $0x1b8] sm:$0xff]
    %v482 = vld [vmem:[#allocation7 + $0x1c0] sm:$0xff]
    %v483 = vld [vmem:[#allocation7 + $0x1c8] sm:$0xff]
    %v484 = vld [vmem:[#allocation7 + $0x1d0] sm:$0xff]
    %v485 = vld [vmem:[#allocation7 + $0x1d8] sm:$0xff]
    %v486 = vld [vmem:[#allocation7 + $0x1e0] sm:$0xff]
    %v487 = vld [vmem:[#allocation7 + $0x1e8] sm:$0xff]
    %v488 = vld [vmem:[#allocation7 + $0x1f0] sm:$0xff]
    %v489 = vld [vmem:[#allocation7 + $0x1f8] sm:$0xff]
    %v490 = vld [vmem:[#allocation7 + $0x200] sm:$0xff]
    %v491 = vld [vmem:[#allocation7 + $0x208] sm:$0xff]
    %v492 = vld [vmem:[#allocation7 + $0x210] sm:$0xff]
    %v493 = vld [vmem:[#allocation7 + $0x218] sm:$0xff]
    %v494 = vld [vmem:[#allocation7 + $0x220] sm:$0xff]
    %v495 = vld [vmem:[#allocation7 + $0x228] sm:$0xff]
    %v496 = vld [vmem:[#allocation7 + $0x230] sm:$0xff]
    %v497 = vld [vmem:[#allocation7 + $0x238] sm:$0xff]
    %v498 = vld [vmem:[#allocation7 + $0x240] sm:$0xff]
    %v499 = vld [vmem:[#allocation7 + $0x248] sm:$0xff]
    %v500 = vld [vmem:[#allocation7 + $0x250] sm:$0xff]
    %v501 = vld [vmem:[#allocation7 + $0x258] sm:$0xff]
    %v502 = vld [vmem:[#allocation7 + $0x260] sm:$0xff]
    %v503 = vld [vmem:[#allocation7 + $0x268] sm:$0xff]
    %v504 = vld [vmem:[#allocation7 + $0x270] sm:$0xff]
    %v505 = vld [vmem:[#allocation7 + $0x278] sm:$0xff]
    %v506 = vld [vmem:[#allocation7 + $0x280] sm:$0xff]
    %v507 = vld [vmem:[#allocation7 + $0x288] sm:$0xff]
    %v508 = vld [vmem:[#allocation7 + $0x290] sm:$0xff]
    %v509 = vld [vmem:[#allocation7 + $0x298] sm:$0xff]
    %v510 = vld [vmem:[#allocation7 + $0x2a0] sm:$0xff]
    %v511 = vld [vmem:[#allocation7 + $0x2a8] sm:$0xff]
    %v512 = vld [vmem:[#allocation7 + $0x2b0] sm:$0xff]
    %v513 = vld [vmem:[#allocation7 + $0x2b8] sm:$0xff]
    %v514 = vld [vmem:[#allocation7 + $0x2c0] sm:$0xff]
    %v515 = vld [vmem:[#allocation7 + $0x2c8] sm:$0xff]
    %v516 = vld [vmem:[#allocation7 + $0x2d0] sm:$0xff]
    %v517 = vld [vmem:[#allocation7 + $0x2d8] sm:$0xff]
    %v518 = vld [vmem:[#allocation7 + $0x2e0] sm:$0xff]
    %v519 = vld [vmem:[#allocation7 + $0x2e8] sm:$0xff]
    %v520 = vld [vmem:[#allocation7 + $0x2f0] sm:$0xff]
    %v521 = vld [vmem:[#allocation7 + $0x2f8] sm:$0xff]
    %v522 = vld [vmem:[#allocation7 + $0x300] sm:$0xff]
    %v523 = vld [vmem:[#allocation7 + $0x308] sm:$0xff]
    %v524 = vld [vmem:[#allocation7 + $0x310] sm:$0xff]
    %v525 = vld [vmem:[#allocation7 + $0x318] sm:$0xff]
    %v526 = vld [vmem:[#allocation7 + $0x320] sm:$0xff]
    %v527 = vld [vmem:[#allocation7 + $0x328] sm:$0xff]
    %v528 = vld [vmem:[#allocation7 + $0x330] sm:$0xff]
    %v529 = vld [vmem:[#allocation7 + $0x338] sm:$0xff]
    %v530 = vld [vmem:[#allocation7 + $0x340] sm:$0xff]
    %v531 = vld [vmem:[#allocation7 + $0x348] sm:$0xff]
    %v532 = vld [vmem:[#allocation7 + $0x350] sm:$0xff]
    %v533 = vld [vmem:[#allocation7 + $0x358] sm:$0xff]
    %v534 = vld [vmem:[#allocation7 + $0x360] sm:$0xff]
    %v535 = vld [vmem:[#allocation7 + $0x368] sm:$0xff]
    %v536 = vld [vmem:[#allocation7 + $0x370] sm:$0xff]
    %v537 = vld [vmem:[#allocation7 + $0x378] sm:$0xff]
    %v538 = vld [vmem:[#allocation7 + $0x380] sm:$0xff]
    %v539 = vld [vmem:[#allocation7 + $0x388] sm:$0xff]
    %v540 = vld [vmem:[#allocation7 + $0x390] sm:$0xff]
    %v541 = vld [vmem:[#allocation7 + $0x398] sm:$0xff]
    %v542 = vld [vmem:[#allocation7 + $0x3a0] sm:$0xff]
    %v543 = vld [vmem:[#allocation7 + $0x3a8] sm:$0xff]
    %v544 = vld [vmem:[#allocation7 + $0x3b0] sm:$0xff]
    %v545 = vld [vmem:[#allocation7 + $0x3b8] sm:$0xff]
    %v546 = vld [vmem:[#allocation7 + $0x3c0] sm:$0xff]
    %v547 = vld [vmem:[#allocation7 + $0x3c8] sm:$0xff]
    %v548 = vld [vmem:[#allocation7 + $0x3d0] sm:$0xff]
    %v549 = vld [vmem:[#allocation7 + $0x3d8] sm:$0xff]
    %v550 = vld [vmem:[#allocation7 + $0x3e0] sm:$0xff]
    %v551 = vld [vmem:[#allocation7 + $0x3e8] sm:$0xff]
    %v552 = vld [vmem:[#allocation7 + $0x3f0] sm:$0xff]
    %v553 = vld [vmem:[#allocation7 + $0x3f8] sm:$0xff]
    %554 = vmatpush.msra.mxu0 %v486
    %555 = vmatpush.msra.mxu0 %v482
    %556 = vmatpush.msra.mxu0 %v478
    %557 = vmatpush.msra.mxu0 %v474
    %558 = vmatpush.msra.mxu0 %v470
    %559 = vmatpush.msra.mxu0 %v466
    %560 = vmatpush.msra.mxu0 %v462
    %561 = vmatpush.msra.mxu0 %v458
    %562 = vmatpush.msra.mxu0 %v454
    %563 = vmatpush.msra.mxu0 %v450
    %564 = vmatpush.msra.mxu0 %v446
    %565 = vmatpush.msra.mxu0 %v442
    %566 = vmatpush.msra.mxu0 %v438
    %567 = vmatpush.msra.mxu0 %v434
    %568 = vmatpush.msra.mxu0 %v430
    %569 = vmatpush.msra.mxu0 %v426
    %570 = vmatmul.f32.gmra.mxu0 %v425
    %v571 = vpop.f32.mrf.mxu0
    %v572 = vadd.f32 %v84, %v571
    %573 = vdwg.mxu0
    %574 = vmatpush.msra.mxu0 %v550
    %575 = vmatpush.msra.mxu0 %v546
    %576 = vmatpush.msra.mxu0 %v542
    %577 = vmatpush.msra.mxu0 %v538
    %578 = vmatpush.msra.mxu0 %v534
    %579 = vmatpush.msra.mxu0 %v530
    %580 = vmatpush.msra.mxu0 %v526
    %581 = vmatpush.msra.mxu0 %v522
    %582 = vmatpush.msra.mxu0 %v518
    %583 = vmatpush.msra.mxu0 %v514
    %584 = vmatpush.msra.mxu0 %v510
    %585 = vmatpush.msra.mxu0 %v506
    %586 = vmatpush.msra.mxu0 %v502
    %587 = vmatpush.msra.mxu0 %v498
    %588 = vmatpush.msra.mxu0 %v494
    %589 = vmatpush.msra.mxu0 %v490
    %590 = vmatmul.f32.gmra.mxu0 0.0
    %v591 = vpop.f32.mrf.mxu0
    %v592 = vadd.f32 %v572, %v591
    %593 = vdwg.mxu0
    %594 = vmatpush.msra.mxu0 %v487
    %595 = vmatpush.msra.mxu0 %v483
    %596 = vmatpush.msra.mxu0 %v479
    %597 = vmatpush.msra.mxu0 %v475
    %598 = vmatpush.msra.mxu0 %v471
    %599 = vmatpush.msra.mxu0 %v467
    %600 = vmatpush.msra.mxu0 %v463
    %601 = vmatpush.msra.mxu0 %v459
    %602 = vmatpush.msra.mxu0 %v455
    %603 = vmatpush.msra.mxu0 %v451
    %604 = vmatpush.msra.mxu0 %v447
    %605 = vmatpush.msra.mxu0 %v443
    %606 = vmatpush.msra.mxu0 %v439
    %607 = vmatpush.msra.mxu0 %v435
    %608 = vmatpush.msra.mxu0 %v431
    %609 = vmatpush.msra.mxu0 %v427
    %610 = vmatmul.f32.gmra.mxu0 %v425
    %v611 = vpop.f32.mrf.mxu0
    %v612 = vadd.f32 %v85, %v611
    %613 = vdwg.mxu0
    %614 = vmatpush.msra.mxu0 %v551
    %615 = vmatpush.msra.mxu0 %v547
    %616 = vmatpush.msra.mxu0 %v543
    %617 = vmatpush.msra.mxu0 %v539
    %618 = vmatpush.msra.mxu0 %v535
    %619 = vmatpush.msra.mxu0 %v531
    %620 = vmatpush.msra.mxu0 %v527
    %621 = vmatpush.msra.mxu0 %v523
    %622 = vmatpush.msra.mxu0 %v519
    %623 = vmatpush.msra.mxu0 %v515
    %624 = vmatpush.msra.mxu0 %v511
    %625 = vmatpush.msra.mxu0 %v507
    %626 = vmatpush.msra.mxu0 %v503
    %627 = vmatpush.msra.mxu0 %v499
    %628 = vmatpush.msra.mxu0 %v495
    %629 = vmatpush.msra.mxu0 %v491
    %630 = vmatmul.f32.gmra.mxu0 0.0
    %v631 = vpop.f32.mrf.mxu0
    %v632 = vadd.f32 %v612, %v631
    %633 = vdwg.mxu0
    %634 = vmatpush.msra.mxu0 %v488
    %635 = vmatpush.msra.mxu0 %v484
    %636 = vmatpush.msra.mxu0 %v480
    %637 = vmatpush.msra.mxu0 %v476
    %638 = vmatpush.msra.mxu0 %v472
    %639 = vmatpush.msra.mxu0 %v468
    %640 = vmatpush.msra.mxu0 %v464
    %641 = vmatpush.msra.mxu0 %v460
    %642 = vmatpush.msra.mxu0 %v456
    %643 = vmatpush.msra.mxu0 %v452
    %644 = vmatpush.msra.mxu0 %v448
    %645 = vmatpush.msra.mxu0 %v444
    %646 = vmatpush.msra.mxu0 %v440
    %647 = vmatpush.msra.mxu0 %v436
    %648 = vmatpush.msra.mxu0 %v432
    %649 = vmatpush.msra.mxu0 %v428
    %650 = vmatmul.f32.gmra.mxu0 %v425
    %v651 = vpop.f32.mrf.mxu0
    %v652 = vadd.f32 %v86, %v651
    %653 = vdwg.mxu0
    %654 = vmatpush.msra.mxu0 %v552
    %655 = vmatpush.msra.mxu0 %v548
    %656 = vmatpush.msra.mxu0 %v544
    %657 = vmatpush.msra.mxu0 %v540
    %658 = vmatpush.msra.mxu0 %v536
    %659 = vmatpush.msra.mxu0 %v532
    %660 = vmatpush.msra.mxu0 %v528
    %661 = vmatpush.msra.mxu0 %v524
    %662 = vmatpush.msra.mxu0 %v520
    %663 = vmatpush.msra.mxu0 %v516
    %664 = vmatpush.msra.mxu0 %v512
    %665 = vmatpush.msra.mxu0 %v508
    %666 = vmatpush.msra.mxu0 %v504
    %667 = vmatpush.msra.mxu0 %v500
    %668 = vmatpush.msra.mxu0 %v496
    %669 = vmatpush.msra.mxu0 %v492
    %670 = vmatmul.f32.gmra.mxu0 0.0
    %v671 = vpop.f32.mrf.mxu0
    %v672 = vadd.f32 %v652, %v671
    %673 = vdwg.mxu0
    %674 = vmatpush.msra.mxu0 %v489
    %675 = vmatpush.msra.mxu0 %v485
    %676 = vmatpush.msra.mxu0 %v481
    %677 = vmatpush.msra.mxu0 %v477
    %678 = vmatpush.msra.mxu0 %v473
    %679 = vmatpush.msra.mxu0 %v469
    %680 = vmatpush.msra.mxu0 %v465
    %681 = vmatpush.msra.mxu0 %v461
    %682 = vmatpush.msra.mxu0 %v457
    %683 = vmatpush.msra.mxu0 %v453
    %684 = vmatpush.msra.mxu0 %v449
    %685 = vmatpush.msra.mxu0 %v445
    %686 = vmatpush.msra.mxu0 %v441
    %687 = vmatpush.msra.mxu0 %v437
    %688 = vmatpush.msra.mxu0 %v433
    %689 = vmatpush.msra.mxu0 %v429
    %690 = vmatmul.f32.gmra.mxu0 %v425
    %v691 = vpop.f32.mrf.mxu0
    %v692 = vadd.f32 %v87, %v691
    %693 = vdwg.mxu0
    %694 = vmatpush.msra.mxu0 %v553
    %695 = vmatpush.msra.mxu0 %v549
    %696 = vmatpush.msra.mxu0 %v545
    %697 = vmatpush.msra.mxu0 %v541
    %698 = vmatpush.msra.mxu0 %v537
    %699 = vmatpush.msra.mxu0 %v533
    %700 = vmatpush.msra.mxu0 %v529
    %701 = vmatpush.msra.mxu0 %v525
    %702 = vmatpush.msra.mxu0 %v521
    %703 = vmatpush.msra.mxu0 %v517
    %704 = vmatpush.msra.mxu0 %v513
    %705 = vmatpush.msra.mxu0 %v509
    %706 = vmatpush.msra.mxu0 %v505
    %707 = vmatpush.msra.mxu0 %v501
    %708 = vmatpush.msra.mxu0 %v497
    %709 = vmatpush.msra.mxu0 %v493
    %710 = vmatmul.f32.gmra.mxu0 0.0
    %v711 = vpop.f32.mrf.mxu0
    %v712 = vadd.f32 %v692, %v711
    %713 = vdwg.mxu0
    %v714 = vxor.u32 %v592, 2147483648
    %v715 = vxor.u32 %v632, 2147483648
    %v716 = vmul.f32 %v714, 1.442695
    %v717 = vpow.pop %v716
    %v718 = vmul.f32 %v715, 1.442695
    %v719 = vpow.pop %v718
    %v720 = vadd.f32 %v717, 1.0
    %v721 = vadd.f32 %v719, 1.0
    %v722 = vrcp.pop %v720
    %v723 = vmul.f32 %v720, %v722
    %v724 = vsub.f32 1.0, %v723
    %v725 = vmul.f32 %v722, %v724
    %v726 = vadd.f32 %v722, %v725
    %vm727 = vweird.f32 %v720
    %vm728 = vweird.f32 %v722
    %vm729 = vmor %vm727, %vm728
    %v730 = vsel %vm729, %v722, %v726
    %v731 = vand.u32 2147483647, %v720
    %vm732 = vcmp.eq.f32.partialorder %v731, 8.507059e+37
    %v733 = vand.u32 %v720, 2147483648
    %v734 = vor.u32 1.1754944e-38, %v733
    %v735 = vsel %vm732, %v734, %v730
    %v736 = vmul.f32 1.0, %v735
    %v737 = vrcp.pop %v721
    %v738 = vmul.f32 %v721, %v737
    %v739 = vsub.f32 1.0, %v738
    %v740 = vmul.f32 %v737, %v739
    %v741 = vadd.f32 %v737, %v740
    %vm742 = vweird.f32 %v721
    %vm743 = vweird.f32 %v737
    %vm744 = vmor %vm742, %vm743
    %v745 = vsel %vm744, %v737, %v741
    %v746 = vand.u32 2147483647, %v721
    %vm747 = vcmp.eq.f32.partialorder %v746, 8.507059e+37
    %v748 = vand.u32 %v721, 2147483648
    %v749 = vor.u32 1.1754944e-38, %v748
    %v750 = vsel %vm747, %v749, %v745
    %v751 = vmul.f32 1.0, %v750
    %v752 = vmul.f32 %v736, %v712
    %v753 = vadd.f32 %v672, %v752
    %v754 = vtanh.pop %v753
    %v755 = vsub.f32 1.0, %v751
    %v756 = vmul.f32 %v755, %v754
    %v757 = vmul.f32 %v751, 0.0
    %v758 = vadd.f32 %v756, %v757
    %vm759 = vcmp.eq.s32.totalorder %v71, 0
    %v760 = vsel %vm759, 1, 0
    %761 = vset.pattern.permute.xlu0 0
    %762 = vperm.xlu0 %761, %v760
    %v763 = vpop.permute.xlu0 %762
    %vm764 = vcmp.eq.s32.totalorder %v763, 1
    %v765 = vsel %vm764, %v758, 0.0
    %s766 = scalar_lea.vmem [#allocation2], 8
    %v767 = vld [vmem:[%s766] sm:$0xff]
    %768 = vmatpush.msra.mxu0 %v153
    %769 = vmatpush.msra.mxu0 %v149
    %770 = vmatpush.msra.mxu0 %v145
    %771 = vmatpush.msra.mxu0 %v141
    %772 = vmatpush.msra.mxu0 %v137
    %773 = vmatpush.msra.mxu0 %v133
    %774 = vmatpush.msra.mxu0 %v129
    %775 = vmatpush.msra.mxu0 %v125
    %776 = vmatpush.msra.mxu0 %v121
    %777 = vmatpush.msra.mxu0 %v117
    %778 = vmatpush.msra.mxu0 %v113
    %779 = vmatpush.msra.mxu0 %v109
    %780 = vmatpush.msra.mxu0 %v105
    %781 = vmatpush.msra.mxu0 %v101
    %782 = vmatpush.msra.mxu0 %v97
    %783 = vmatpush.msra.mxu0 %v93
    %784 = vmatmul.f32.gmra.mxu0 %v767
    %v785 = vpop.f32.mrf.mxu0
    %v786 = vadd.f32 %v74, %v785
    %787 = vdwg.mxu0
    %788 = vmatpush.msra.mxu0 %v217
    %789 = vmatpush.msra.mxu0 %v213
    %790 = vmatpush.msra.mxu0 %v209
    %791 = vmatpush.msra.mxu0 %v205
    %792 = vmatpush.msra.mxu0 %v201
    %793 = vmatpush.msra.mxu0 %v197
    %794 = vmatpush.msra.mxu0 %v193
    %795 = vmatpush.msra.mxu0 %v189
    %796 = vmatpush.msra.mxu0 %v185
    %797 = vmatpush.msra.mxu0 %v181
    %798 = vmatpush.msra.mxu0 %v177
    %799 = vmatpush.msra.mxu0 %v173
    %800 = vmatpush.msra.mxu0 %v169
    %801 = vmatpush.msra.mxu0 %v165
    %802 = vmatpush.msra.mxu0 %v161
    %803 = vmatpush.msra.mxu0 %v157
    %804 = vmatmul.f32.gmra.mxu0 %v425
    %v805 = vpop.f32.mrf.mxu0
    %v806 = vadd.f32 %v786, %v805
    %807 = vdwg.mxu0
    %808 = vmatpush.msra.mxu0 %v154
    %809 = vmatpush.msra.mxu0 %v150
    %810 = vmatpush.msra.mxu0 %v146
    %811 = vmatpush.msra.mxu0 %v142
    %812 = vmatpush.msra.mxu0 %v138
    %813 = vmatpush.msra.mxu0 %v134
    %814 = vmatpush.msra.mxu0 %v130
    %815 = vmatpush.msra.mxu0 %v126
    %816 = vmatpush.msra.mxu0 %v122
    %817 = vmatpush.msra.mxu0 %v118
    %818 = vmatpush.msra.mxu0 %v114
    %819 = vmatpush.msra.mxu0 %v110
    %820 = vmatpush.msra.mxu0 %v106
    %821 = vmatpush.msra.mxu0 %v102
    %822 = vmatpush.msra.mxu0 %v98
    %823 = vmatpush.msra.mxu0 %v94
    %824 = vmatmul.f32.gmra.mxu0 %v767
    %v825 = vpop.f32.mrf.mxu0
    %v826 = vadd.f32 %v75, %v825
    %827 = vdwg.mxu0
    %828 = vmatpush.msra.mxu0 %v218
    %829 = vmatpush.msra.mxu0 %v214
    %830 = vmatpush.msra.mxu0 %v210
    %831 = vmatpush.msra.mxu0 %v206
    %832 = vmatpush.msra.mxu0 %v202
    %833 = vmatpush.msra.mxu0 %v198
    %834 = vmatpush.msra.mxu0 %v194
    %835 = vmatpush.msra.mxu0 %v190
    %836 = vmatpush.msra.mxu0 %v186
    %837 = vmatpush.msra.mxu0 %v182
    %838 = vmatpush.msra.mxu0 %v178
    %839 = vmatpush.msra.mxu0 %v174
    %840 = vmatpush.msra.mxu0 %v170
    %841 = vmatpush.msra.mxu0 %v166
    %842 = vmatpush.msra.mxu0 %v162
    %843 = vmatpush.msra.mxu0 %v158
    %844 = vmatmul.f32.gmra.mxu0 %v425
    %v845 = vpop.f32.mrf.mxu0
    %v846 = vadd.f32 %v826, %v845
    %847 = vdwg.mxu0
    %848 = vmatpush.msra.mxu0 %v155
    %849 = vmatpush.msra.mxu0 %v151
    %850 = vmatpush.msra.mxu0 %v147
    %851 = vmatpush.msra.mxu0 %v143
    %852 = vmatpush.msra.mxu0 %v139
    %853 = vmatpush.msra.mxu0 %v135
    %854 = vmatpush.msra.mxu0 %v131
    %855 = vmatpush.msra.mxu0 %v127
    %856 = vmatpush.msra.mxu0 %v123
    %857 = vmatpush.msra.mxu0 %v119
    %858 = vmatpush.msra.mxu0 %v115
    %859 = vmatpush.msra.mxu0 %v111
    %860 = vmatpush.msra.mxu0 %v107
    %861 = vmatpush.msra.mxu0 %v103
    %862 = vmatpush.msra.mxu0 %v99
    %863 = vmatpush.msra.mxu0 %v95
    %864 = vmatmul.f32.gmra.mxu0 %v767
    %v865 = vpop.f32.mrf.mxu0
    %v866 = vadd.f32 %v76, %v865
    %867 = vdwg.mxu0
    %868 = vmatpush.msra.mxu0 %v219
    %869 = vmatpush.msra.mxu0 %v215
    %870 = vmatpush.msra.mxu0 %v211
    %871 = vmatpush.msra.mxu0 %v207
    %872 = vmatpush.msra.mxu0 %v203
    %873 = vmatpush.msra.mxu0 %v199
    %874 = vmatpush.msra.mxu0 %v195
    %875 = vmatpush.msra.mxu0 %v191
    %876 = vmatpush.msra.mxu0 %v187
    %877 = vmatpush.msra.mxu0 %v183
    %878 = vmatpush.msra.mxu0 %v179
    %879 = vmatpush.msra.mxu0 %v175
    %880 = vmatpush.msra.mxu0 %v171
    %881 = vmatpush.msra.mxu0 %v167
    %882 = vmatpush.msra.mxu0 %v163
    %883 = vmatpush.msra.mxu0 %v159
    %884 = vmatmul.f32.gmra.mxu0 %v425
    %v885 = vpop.f32.mrf.mxu0
    %v886 = vadd.f32 %v866, %v885
    %887 = vdwg.mxu0
    %888 = vmatpush.msra.mxu0 %v156
    %889 = vmatpush.msra.mxu0 %v152
    %890 = vmatpush.msra.mxu0 %v148
    %891 = vmatpush.msra.mxu0 %v144
    %892 = vmatpush.msra.mxu0 %v140
    %893 = vmatpush.msra.mxu0 %v136
    %894 = vmatpush.msra.mxu0 %v132
    %895 = vmatpush.msra.mxu0 %v128
    %896 = vmatpush.msra.mxu0 %v124
    %897 = vmatpush.msra.mxu0 %v120
    %898 = vmatpush.msra.mxu0 %v116
    %899 = vmatpush.msra.mxu0 %v112
    %900 = vmatpush.msra.mxu0 %v108
    %901 = vmatpush.msra.mxu0 %v104
    %902 = vmatpush.msra.mxu0 %v100
    %903 = vmatpush.msra.mxu0 %v96
    %904 = vmatmul.f32.gmra.mxu0 %v767
    %v905 = vpop.f32.mrf.mxu0
    %v906 = vadd.f32 %v77, %v905
    %907 = vdwg.mxu0
    %908 = vmatpush.msra.mxu0 %v220
    %909 = vmatpush.msra.mxu0 %v216
    %910 = vmatpush.msra.mxu0 %v212
    %911 = vmatpush.msra.mxu0 %v208
    %912 = vmatpush.msra.mxu0 %v204
    %913 = vmatpush.msra.mxu0 %v200
    %914 = vmatpush.msra.mxu0 %v196
    %915 = vmatpush.msra.mxu0 %v192
    %916 = vmatpush.msra.mxu0 %v188
    %917 = vmatpush.msra.mxu0 %v184
    %918 = vmatpush.msra.mxu0 %v180
    %919 = vmatpush.msra.mxu0 %v176
    %920 = vmatpush.msra.mxu0 %v172
    %921 = vmatpush.msra.mxu0 %v168
    %922 = vmatpush.msra.mxu0 %v164
    %923 = vmatpush.msra.mxu0 %v160
    %924 = vmatmul.f32.gmra.mxu0 %v425
    %v925 = vpop.f32.mrf.mxu0
    %v926 = vadd.f32 %v906, %v925
    %927 = vdwg.mxu0
    %v928 = vxor.u32 %v806, 2147483648
    %v929 = vxor.u32 %v846, 2147483648
    %v930 = vmul.f32 %v928, 1.442695
    %v931 = vpow.pop %v930
    %v932 = vmul.f32 %v929, 1.442695
    %v933 = vpow.pop %v932
    %v934 = vadd.f32 %v931, 1.0
    %v935 = vadd.f32 %v933, 1.0
    %v936 = vrcp.pop %v934
    %v937 = vmul.f32 %v934, %v936
    %v938 = vsub.f32 1.0, %v937
    %v939 = vmul.f32 %v936, %v938
    %v940 = vadd.f32 %v936, %v939
    %vm941 = vweird.f32 %v934
    %vm942 = vweird.f32 %v936
    %vm943 = vmor %vm941, %vm942
    %v944 = vsel %vm943, %v936, %v940
    %v945 = vand.u32 2147483647, %v934
    %vm946 = vcmp.eq.f32.partialorder %v945, 8.507059e+37
    %v947 = vand.u32 %v934, 2147483648
    %v948 = vor.u32 1.1754944e-38, %v947
    %v949 = vsel %vm946, %v948, %v944
    %v950 = vmul.f32 1.0, %v949
    %v951 = vrcp.pop %v935
    %v952 = vmul.f32 %v935, %v951
    %v953 = vsub.f32 1.0, %v952
    %v954 = vmul.f32 %v951, %v953
    %v955 = vadd.f32 %v951, %v954
    %vm956 = vweird.f32 %v935
    %vm957 = vweird.f32 %v951
    %vm958 = vmor %vm956, %vm957
    %v959 = vsel %vm958, %v951, %v955
    %v960 = vand.u32 2147483647, %v935
    %vm961 = vcmp.eq.f32.partialorder %v960, 8.507059e+37
    %v962 = vand.u32 %v935, 2147483648
    %v963 = vor.u32 1.1754944e-38, %v962
    %v964 = vsel %vm961, %v963, %v959
    %v965 = vmul.f32 1.0, %v964
    %v966 = vmul.f32 %v950, %v926
    %v967 = vadd.f32 %v886, %v966
    %v968 = vtanh.pop %v967
    %v969 = vsub.f32 1.0, %v965
    %v970 = vmul.f32 %v969, %v968
    %v971 = vmul.f32 %v965, %v425
    %v972 = vadd.f32 %v970, %v971
    %973 = vmatpush.msra.mxu0 %v486
    %974 = vmatpush.msra.mxu0 %v482
    %975 = vmatpush.msra.mxu0 %v478
    %976 = vmatpush.msra.mxu0 %v474
    %977 = vmatpush.msra.mxu0 %v470
    %978 = vmatpush.msra.mxu0 %v466
    %979 = vmatpush.msra.mxu0 %v462
    %980 = vmatpush.msra.mxu0 %v458
    %981 = vmatpush.msra.mxu0 %v454
    %982 = vmatpush.msra.mxu0 %v450
    %983 = vmatpush.msra.mxu0 %v446
    %984 = vmatpush.msra.mxu0 %v442
    %985 = vmatpush.msra.mxu0 %v438
    %986 = vmatpush.msra.mxu0 %v434
    %987 = vmatpush.msra.mxu0 %v430
    %988 = vmatpush.msra.mxu0 %v426
    %989 = vmatmul.f32.gmra.mxu0 %v972
    %v990 = vpop.f32.mrf.mxu0
    %v991 = vadd.f32 %v84, %v990
    %992 = vdwg.mxu0
    %993 = vmatpush.msra.mxu0 %v550
    %994 = vmatpush.msra.mxu0 %v546
    %995 = vmatpush.msra.mxu0 %v542
    %996 = vmatpush.msra.mxu0 %v538
    %997 = vmatpush.msra.mxu0 %v534
    %998 = vmatpush.msra.mxu0 %v530
    %999 = vmatpush.msra.mxu0 %v526
    %1000 = vmatpush.msra.mxu0 %v522
    %1001 = vmatpush.msra.mxu0 %v518
    %1002 = vmatpush.msra.mxu0 %v514
    %1003 = vmatpush.msra.mxu0 %v510
    %1004 = vmatpush.msra.mxu0 %v506
    %1005 = vmatpush.msra.mxu0 %v502
    %1006 = vmatpush.msra.mxu0 %v498
    %1007 = vmatpush.msra.mxu0 %v494
    %1008 = vmatpush.msra.mxu0 %v490
    %1009 = vmatmul.f32.gmra.mxu0 %v758
    %v1010 = vpop.f32.mrf.mxu0
    %v1011 = vadd.f32 %v991, %v1010
    %1012 = vdwg.mxu0
    %1013 = vmatpush.msra.mxu0 %v487
    %1014 = vmatpush.msra.mxu0 %v483
    %1015 = vmatpush.msra.mxu0 %v479
    %1016 = vmatpush.msra.mxu0 %v475
    %1017 = vmatpush.msra.mxu0 %v471
    %1018 = vmatpush.msra.mxu0 %v467
    %1019 = vmatpush.msra.mxu0 %v463
    %1020 = vmatpush.msra.mxu0 %v459
    %1021 = vmatpush.msra.mxu0 %v455
    %1022 = vmatpush.msra.mxu0 %v451
    %1023 = vmatpush.msra.mxu0 %v447
    %1024 = vmatpush.msra.mxu0 %v443
    %1025 = vmatpush.msra.mxu0 %v439
    %1026 = vmatpush.msra.mxu0 %v435
    %1027 = vmatpush.msra.mxu0 %v431
    %1028 = vmatpush.msra.mxu0 %v427
    %1029 = vmatmul.f32.gmra.mxu0 %v972
    %v1030 = vpop.f32.mrf.mxu0
    %v1031 = vadd.f32 %v85, %v1030
    %1032 = vdwg.mxu0
    %1033 = vmatpush.msra.mxu0 %v551
    %1034 = vmatpush.msra.mxu0 %v547
    %1035 = vmatpush.msra.mxu0 %v543
    %1036 = vmatpush.msra.mxu0 %v539
    %1037 = vmatpush.msra.mxu0 %v535
    %1038 = vmatpush.msra.mxu0 %v531
    %1039 = vmatpush.msra.mxu0 %v527
    %1040 = vmatpush.msra.mxu0 %v523
    %1041 = vmatpush.msra.mxu0 %v519
    %1042 = vmatpush.msra.mxu0 %v515
    %1043 = vmatpush.msra.mxu0 %v511
    %1044 = vmatpush.msra.mxu0 %v507
    %1045 = vmatpush.msra.mxu0 %v503
    %1046 = vmatpush.msra.mxu0 %v499
    %1047 = vmatpush.msra.mxu0 %v495
    %1048 = vmatpush.msra.mxu0 %v491
    %1049 = vmatmul.f32.gmra.mxu0 %v758
    %v1050 = vpop.f32.mrf.mxu0
    %v1051 = vadd.f32 %v1031, %v1050
    %1052 = vdwg.mxu0
    %1053 = vmatpush.msra.mxu0 %v488
    %1054 = vmatpush.msra.mxu0 %v484
    %1055 = vmatpush.msra.mxu0 %v480
    %1056 = vmatpush.msra.mxu0 %v476
    %1057 = vmatpush.msra.mxu0 %v472
    %1058 = vmatpush.msra.mxu0 %v468
    %1059 = vmatpush.msra.mxu0 %v464
    %1060 = vmatpush.msra.mxu0 %v460
    %1061 = vmatpush.msra.mxu0 %v456
    %1062 = vmatpush.msra.mxu0 %v452
    %1063 = vmatpush.msra.mxu0 %v448
    %1064 = vmatpush.msra.mxu0 %v444
    %1065 = vmatpush.msra.mxu0 %v440
    %1066 = vmatpush.msra.mxu0 %v436
    %1067 = vmatpush.msra.mxu0 %v432
    %1068 = vmatpush.msra.mxu0 %v428
    %1069 = vmatmul.f32.gmra.mxu0 %v972
    %v1070 = vpop.f32.mrf.mxu0
    %v1071 = vadd.f32 %v86, %v1070
    %1072 = vdwg.mxu0
    %1073 = vmatpush.msra.mxu0 %v552
    %1074 = vmatpush.msra.mxu0 %v548
    %1075 = vmatpush.msra.mxu0 %v544
    %1076 = vmatpush.msra.mxu0 %v540
    %1077 = vmatpush.msra.mxu0 %v536
    %1078 = vmatpush.msra.mxu0 %v532
    %1079 = vmatpush.msra.mxu0 %v528
    %1080 = vmatpush.msra.mxu0 %v524
    %1081 = vmatpush.msra.mxu0 %v520
    %1082 = vmatpush.msra.mxu0 %v516
    %1083 = vmatpush.msra.mxu0 %v512
    %1084 = vmatpush.msra.mxu0 %v508
    %1085 = vmatpush.msra.mxu0 %v504
    %1086 = vmatpush.msra.mxu0 %v500
    %1087 = vmatpush.msra.mxu0 %v496
    %1088 = vmatpush.msra.mxu0 %v492
    %1089 = vmatmul.f32.gmra.mxu0 %v758
    %v1090 = vpop.f32.mrf.mxu0
    %v1091 = vadd.f32 %v1071, %v1090
    %1092 = vdwg.mxu0
    %1093 = vmatpush.msra.mxu0 %v489
    %1094 = vmatpush.msra.mxu0 %v485
    %1095 = vmatpush.msra.mxu0 %v481
    %1096 = vmatpush.msra.mxu0 %v477
    %1097 = vmatpush.msra.mxu0 %v473
    %1098 = vmatpush.msra.mxu0 %v469
    %1099 = vmatpush.msra.mxu0 %v465
    %1100 = vmatpush.msra.mxu0 %v461
    %1101 = vmatpush.msra.mxu0 %v457
    %1102 = vmatpush.msra.mxu0 %v453
    %1103 = vmatpush.msra.mxu0 %v449
    %1104 = vmatpush.msra.mxu0 %v445
    %1105 = vmatpush.msra.mxu0 %v441
    %1106 = vmatpush.msra.mxu0 %v437
    %1107 = vmatpush.msra.mxu0 %v433
    %1108 = vmatpush.msra.mxu0 %v429
    %1109 = vmatmul.f32.gmra.mxu0 %v972
    %v1110 = vpop.f32.mrf.mxu0
    %v1111 = vadd.f32 %v87, %v1110
    %1112 = vdwg.mxu0
    %1113 = vmatpush.msra.mxu0 %v553
    %1114 = vmatpush.msra.mxu0 %v549
    %1115 = vmatpush.msra.mxu0 %v545
    %1116 = vmatpush.msra.mxu0 %v541
    %1117 = vmatpush.msra.mxu0 %v537
    %1118 = vmatpush.msra.mxu0 %v533
    %1119 = vmatpush.msra.mxu0 %v529
    %1120 = vmatpush.msra.mxu0 %v525
    %1121 = vmatpush.msra.mxu0 %v521
    %1122 = vmatpush.msra.mxu0 %v517
    %1123 = vmatpush.msra.mxu0 %v513
    %1124 = vmatpush.msra.mxu0 %v509
    %1125 = vmatpush.msra.mxu0 %v505
    %1126 = vmatpush.msra.mxu0 %v501
    %1127 = vmatpush.msra.mxu0 %v497
    %1128 = vmatpush.msra.mxu0 %v493
    %1129 = vmatmul.f32.gmra.mxu0 %v758
    %v1130 = vpop.f32.mrf.mxu0
    %v1131 = vadd.f32 %v1111, %v1130
    %1132 = vdwg.mxu0
    %v1133 = vxor.u32 %v1011, 2147483648
    %v1134 = vxor.u32 %v1051, 2147483648
    %v1135 = vmul.f32 %v1133, 1.442695
    %v1136 = vpow.pop %v1135
    %v1137 = vmul.f32 %v1134, 1.442695
    %v1138 = vpow.pop %v1137
    %v1139 = vadd.f32 %v1136, 1.0
    %v1140 = vadd.f32 %v1138, 1.0
    %v1141 = vrcp.pop %v1139
    %v1142 = vmul.f32 %v1139, %v1141
    %v1143 = vsub.f32 1.0, %v1142
    %v1144 = vmul.f32 %v1141, %v1143
    %v1145 = vadd.f32 %v1141, %v1144
    %vm1146 = vweird.f32 %v1139
    %vm1147 = vweird.f32 %v1141
    %vm1148 = vmor %vm1146, %vm1147
    %v1149 = vsel %vm1148, %v1141, %v1145
    %v1150 = vand.u32 2147483647, %v1139
    %vm1151 = vcmp.eq.f32.partialorder %v1150, 8.507059e+37
    %v1152 = vand.u32 %v1139, 2147483648
    %v1153 = vor.u32 1.1754944e-38, %v1152
    %v1154 = vsel %vm1151, %v1153, %v1149
    %v1155 = vmul.f32 1.0, %v1154
    %v1156 = vrcp.pop %v1140
    %v1157 = vmul.f32 %v1140, %v1156
    %v1158 = vsub.f32 1.0, %v1157
    %v1159 = vmul.f32 %v1156, %v1158
    %v1160 = vadd.f32 %v1156, %v1159
    %vm1161 = vweird.f32 %v1140
    %vm1162 = vweird.f32 %v1156
    %vm1163 = vmor %vm1161, %vm1162
    %v1164 = vsel %vm1163, %v1156, %v1160
    %v1165 = vand.u32 2147483647, %v1140
    %vm1166 = vcmp.eq.f32.partialorder %v1165, 8.507059e+37
    %v1167 = vand.u32 %v1140, 2147483648
    %v1168 = vor.u32 1.1754944e-38, %v1167
    %v1169 = vsel %vm1166, %v1168, %v1164
    %v1170 = vmul.f32 1.0, %v1169
    %v1171 = vmul.f32 %v1155, %v1131
    %v1172 = vadd.f32 %v1091, %v1171
    %v1173 = vtanh.pop %v1172
    %v1174 = vsub.f32 1.0, %v1170
    %v1175 = vmul.f32 %v1174, %v1173
    %v1176 = vmul.f32 %v1170, %v758
    %v1177 = vadd.f32 %v1175, %v1176
    %vm1178 = vcmp.eq.s32.totalorder %v71, 1
    %v1179 = vsel %vm1178, 1, 0
    %1180 = vset.pattern.permute.xlu0 0
    %1181 = vperm.xlu0 %1180, %v1179
    %v1182 = vpop.permute.xlu0 %1181
    %vm1183 = vcmp.eq.s32.totalorder %v1182, 1
    %v1184 = vsel %vm1183, %v1177, %v765
    %s1185 = scalar_lea.vmem [#allocation2], 16
    %v1186 = vld [vmem:[%s1185] sm:$0xff]
    %1187 = vmatpush.msra.mxu0 %v153
    %1188 = vmatpush.msra.mxu0 %v149
    %1189 = vmatpush.msra.mxu0 %v145
    %1190 = vmatpush.msra.mxu0 %v141
    %1191 = vmatpush.msra.mxu0 %v137
    %1192 = vmatpush.msra.mxu0 %v133
    %1193 = vmatpush.msra.mxu0 %v129
    %1194 = vmatpush.msra.mxu0 %v125
    %1195 = vmatpush.msra.mxu0 %v121
    %1196 = vmatpush.msra.mxu0 %v117
    %1197 = vmatpush.msra.mxu0 %v113
    %1198 = vmatpush.msra.mxu0 %v109
    %1199 = vmatpush.msra.mxu0 %v105
    %1200 = vmatpush.msra.mxu0 %v101
    %1201 = vmatpush.msra.mxu0 %v97
    %1202 = vmatpush.msra.mxu0 %v93
    %1203 = vmatmul.f32.gmra.mxu0 %v1186
    %v1204 = vpop.f32.mrf.mxu0
    %v1205 = vadd.f32 %v74, %v1204
    %1206 = vdwg.mxu0
    %1207 = vmatpush.msra.mxu0 %v217
    %1208 = vmatpush.msra.mxu0 %v213
    %1209 = vmatpush.msra.mxu0 %v209
    %1210 = vmatpush.msra.mxu0 %v205
    %1211 = vmatpush.msra.mxu0 %v201
    %1212 = vmatpush.msra.mxu0 %v197
    %1213 = vmatpush.msra.mxu0 %v193
    %1214 = vmatpush.msra.mxu0 %v189
    %1215 = vmatpush.msra.mxu0 %v185
    %1216 = vmatpush.msra.mxu0 %v181
    %1217 = vmatpush.msra.mxu0 %v177
    %1218 = vmatpush.msra.mxu0 %v173
    %1219 = vmatpush.msra.mxu0 %v169
    %1220 = vmatpush.msra.mxu0 %v165
    %1221 = vmatpush.msra.mxu0 %v161
    %1222 = vmatpush.msra.mxu0 %v157
    %1223 = vmatmul.f32.gmra.mxu0 %v972
    %v1224 = vpop.f32.mrf.mxu0
    %v1225 = vadd.f32 %v1205, %v1224
    %1226 = vdwg.mxu0
    %1227 = vmatpush.msra.mxu0 %v154
    %1228 = vmatpush.msra.mxu0 %v150
    %1229 = vmatpush.msra.mxu0 %v146
    %1230 = vmatpush.msra.mxu0 %v142
    %1231 = vmatpush.msra.mxu0 %v138
    %1232 = vmatpush.msra.mxu0 %v134
    %1233 = vmatpush.msra.mxu0 %v130
    %1234 = vmatpush.msra.mxu0 %v126
    %1235 = vmatpush.msra.mxu0 %v122
    %1236 = vmatpush.msra.mxu0 %v118
    %1237 = vmatpush.msra.mxu0 %v114
    %1238 = vmatpush.msra.mxu0 %v110
    %1239 = vmatpush.msra.mxu0 %v106
    %1240 = vmatpush.msra.mxu0 %v102
    %1241 = vmatpush.msra.mxu0 %v98
    %1242 = vmatpush.msra.mxu0 %v94
    %1243 = vmatmul.f32.gmra.mxu0 %v1186
    %v1244 = vpop.f32.mrf.mxu0
    %v1245 = vadd.f32 %v75, %v1244
    %1246 = vdwg.mxu0
    %1247 = vmatpush.msra.mxu0 %v218
    %1248 = vmatpush.msra.mxu0 %v214
    %1249 = vmatpush.msra.mxu0 %v210
    %1250 = vmatpush.msra.mxu0 %v206
    %1251 = vmatpush.msra.mxu0 %v202
    %1252 = vmatpush.msra.mxu0 %v198
    %1253 = vmatpush.msra.mxu0 %v194
    %1254 = vmatpush.msra.mxu0 %v190
    %1255 = vmatpush.msra.mxu0 %v186
    %1256 = vmatpush.msra.mxu0 %v182
    %1257 = vmatpush.msra.mxu0 %v178
    %1258 = vmatpush.msra.mxu0 %v174
    %1259 = vmatpush.msra.mxu0 %v170
    %1260 = vmatpush.msra.mxu0 %v166
    %1261 = vmatpush.msra.mxu0 %v162
    %1262 = vmatpush.msra.mxu0 %v158
    %1263 = vmatmul.f32.gmra.mxu0 %v972
    %v1264 = vpop.f32.mrf.mxu0
    %v1265 = vadd.f32 %v1245, %v1264
    %1266 = vdwg.mxu0
    %1267 = vmatpush.msra.mxu0 %v155
    %1268 = vmatpush.msra.mxu0 %v151
    %1269 = vmatpush.msra.mxu0 %v147
    %1270 = vmatpush.msra.mxu0 %v143
    %1271 = vmatpush.msra.mxu0 %v139
    %1272 = vmatpush.msra.mxu0 %v135
    %1273 = vmatpush.msra.mxu0 %v131
    %1274 = vmatpush.msra.mxu0 %v127
    %1275 = vmatpush.msra.mxu0 %v123
    %1276 = vmatpush.msra.mxu0 %v119
    %1277 = vmatpush.msra.mxu0 %v115
    %1278 = vmatpush.msra.mxu0 %v111
    %1279 = vmatpush.msra.mxu0 %v107
    %1280 = vmatpush.msra.mxu0 %v103
    %1281 = vmatpush.msra.mxu0 %v99
    %1282 = vmatpush.msra.mxu0 %v95
    %1283 = vmatmul.f32.gmra.mxu0 %v1186
    %v1284 = vpop.f32.mrf.mxu0
    %v1285 = vadd.f32 %v76, %v1284
    %1286 = vdwg.mxu0
    %1287 = vmatpush.msra.mxu0 %v219
    %1288 = vmatpush.msra.mxu0 %v215
    %1289 = vmatpush.msra.mxu0 %v211
    %1290 = vmatpush.msra.mxu0 %v207
    %1291 = vmatpush.msra.mxu0 %v203
    %1292 = vmatpush.msra.mxu0 %v199
    %1293 = vmatpush.msra.mxu0 %v195
    %1294 = vmatpush.msra.mxu0 %v191
    %1295 = vmatpush.msra.mxu0 %v187
    %1296 = vmatpush.msra.mxu0 %v183
    %1297 = vmatpush.msra.mxu0 %v179
    %1298 = vmatpush.msra.mxu0 %v175
    %1299 = vmatpush.msra.mxu0 %v171
    %1300 = vmatpush.msra.mxu0 %v167
    %1301 = vmatpush.msra.mxu0 %v163
    %1302 = vmatpush.msra.mxu0 %v159
    %1303 = vmatmul.f32.gmra.mxu0 %v972
    %v1304 = vpop.f32.mrf.mxu0
    %v1305 = vadd.f32 %v1285, %v1304
    %1306 = vdwg.mxu0
    %1307 = vmatpush.msra.mxu0 %v156
    %1308 = vmatpush.msra.mxu0 %v152
    %1309 = vmatpush.msra.mxu0 %v148
    %1310 = vmatpush.msra.mxu0 %v144
    %1311 = vmatpush.msra.mxu0 %v140
    %1312 = vmatpush.msra.mxu0 %v136
    %1313 = vmatpush.msra.mxu0 %v132
    %1314 = vmatpush.msra.mxu0 %v128
    %1315 = vmatpush.msra.mxu0 %v124
    %1316 = vmatpush.msra.mxu0 %v120
    %1317 = vmatpush.msra.mxu0 %v116
    %1318 = vmatpush.msra.mxu0 %v112
    %1319 = vmatpush.msra.mxu0 %v108
    %1320 = vmatpush.msra.mxu0 %v104
    %1321 = vmatpush.msra.mxu0 %v100
    %1322 = vmatpush.msra.mxu0 %v96
    %1323 = vmatmul.f32.gmra.mxu0 %v1186
    %v1324 = vpop.f32.mrf.mxu0
    %v1325 = vadd.f32 %v77, %v1324
    %1326 = vdwg.mxu0
    %1327 = vmatpush.msra.mxu0 %v220
    %1328 = vmatpush.msra.mxu0 %v216
    %1329 = vmatpush.msra.mxu0 %v212
    %1330 = vmatpush.msra.mxu0 %v208
    %1331 = vmatpush.msra.mxu0 %v204
    %1332 = vmatpush.msra.mxu0 %v200
    %1333 = vmatpush.msra.mxu0 %v196
    %1334 = vmatpush.msra.mxu0 %v192
    %1335 = vmatpush.msra.mxu0 %v188
    %1336 = vmatpush.msra.mxu0 %v184
    %1337 = vmatpush.msra.mxu0 %v180
    %1338 = vmatpush.msra.mxu0 %v176
    %1339 = vmatpush.msra.mxu0 %v172
    %1340 = vmatpush.msra.mxu0 %v168
    %1341 = vmatpush.msra.mxu0 %v164
    %1342 = vmatpush.msra.mxu0 %v160
    %1343 = vmatmul.f32.gmra.mxu0 %v972
    %v1344 = vpop.f32.mrf.mxu0
    %v1345 = vadd.f32 %v1325, %v1344
    %1346 = vdwg.mxu0
    %v1347 = vxor.u32 %v1225, 2147483648
    %v1348 = vxor.u32 %v1265, 2147483648
    %v1349 = vmul.f32 %v1347, 1.442695
    %v1350 = vpow.pop %v1349
    %v1351 = vmul.f32 %v1348, 1.442695
    %v1352 = vpow.pop %v1351
    %v1353 = vadd.f32 %v1350, 1.0
    %v1354 = vadd.f32 %v1352, 1.0
    %v1355 = vrcp.pop %v1353
    %v1356 = vmul.f32 %v1353, %v1355
    %v1357 = vsub.f32 1.0, %v1356
    %v1358 = vmul.f32 %v1355, %v1357
    %v1359 = vadd.f32 %v1355, %v1358
    %vm1360 = vweird.f32 %v1353
    %vm1361 = vweird.f32 %v1355
    %vm1362 = vmor %vm1360, %vm1361
    %v1363 = vsel %vm1362, %v1355, %v1359
    %v1364 = vand.u32 2147483647, %v1353
    %vm1365 = vcmp.eq.f32.partialorder %v1364, 8.507059e+37
    %v1366 = vand.u32 %v1353, 2147483648
    %v1367 = vor.u32 1.1754944e-38, %v1366
    %v1368 = vsel %vm1365, %v1367, %v1363
    %v1369 = vmul.f32 1.0, %v1368
    %v1370 = vrcp.pop %v1354
    %v1371 = vmul.f32 %v1354, %v1370
    %v1372 = vsub.f32 1.0, %v1371
    %v1373 = vmul.f32 %v1370, %v1372
    %v1374 = vadd.f32 %v1370, %v1373
    %vm1375 = vweird.f32 %v1354
    %vm1376 = vweird.f32 %v1370
    %vm1377 = vmor %vm1375, %vm1376
    %v1378 = vsel %vm1377, %v1370, %v1374
    %v1379 = vand.u32 2147483647, %v1354
    %vm1380 = vcmp.eq.f32.partialorder %v1379, 8.507059e+37
    %v1381 = vand.u32 %v1354, 2147483648
    %v1382 = vor.u32 1.1754944e-38, %v1381
    %v1383 = vsel %vm1380, %v1382, %v1378
    %v1384 = vmul.f32 1.0, %v1383
    %v1385 = vmul.f32 %v1369, %v1345
    %v1386 = vadd.f32 %v1305, %v1385
    %v1387 = vtanh.pop %v1386
    %v1388 = vsub.f32 1.0, %v1384
    %v1389 = vmul.f32 %v1388, %v1387
    %v1390 = vmul.f32 %v1384, %v972
    %v1391 = vadd.f32 %v1389, %v1390
    %1392 = vmatpush.msra.mxu0 %v486
    %1393 = vmatpush.msra.mxu0 %v482
    %1394 = vmatpush.msra.mxu0 %v478
    %1395 = vmatpush.msra.mxu0 %v474
    %1396 = vmatpush.msra.mxu0 %v470
    %1397 = vmatpush.msra.mxu0 %v466
    %1398 = vmatpush.msra.mxu0 %v462
    %1399 = vmatpush.msra.mxu0 %v458
    %1400 = vmatpush.msra.mxu0 %v454
    %1401 = vmatpush.msra.mxu0 %v450
    %1402 = vmatpush.msra.mxu0 %v446
    %1403 = vmatpush.msra.mxu0 %v442
    %1404 = vmatpush.msra.mxu0 %v438
    %1405 = vmatpush.msra.mxu0 %v434
    %1406 = vmatpush.msra.mxu0 %v430
    %1407 = vmatpush.msra.mxu0 %v426
    %1408 = vmatmul.f32.gmra.mxu0 %v1391
    %v1409 = vpop.f32.mrf.mxu0
    %v1410 = vadd.f32 %v84, %v1409
    %1411 = vdwg.mxu0
    %1412 = vmatpush.msra.mxu0 %v550
    %1413 = vmatpush.msra.mxu0 %v546
    %1414 = vmatpush.msra.mxu0 %v542
    %1415 = vmatpush.msra.mxu0 %v538
    %1416 = vmatpush.msra.mxu0 %v534
    %1417 = vmatpush.msra.mxu0 %v530
    %1418 = vmatpush.msra.mxu0 %v526
    %1419 = vmatpush.msra.mxu0 %v522
    %1420 = vmatpush.msra.mxu0 %v518
    %1421 = vmatpush.msra.mxu0 %v514
    %1422 = vmatpush.msra.mxu0 %v510
    %1423 = vmatpush.msra.mxu0 %v506
    %1424 = vmatpush.msra.mxu0 %v502
    %1425 = vmatpush.msra.mxu0 %v498
    %1426 = vmatpush.msra.mxu0 %v494
    %1427 = vmatpush.msra.mxu0 %v490
    %1428 = vmatmul.f32.gmra.mxu0 %v1177
    %v1429 = vpop.f32.mrf.mxu0
    %v1430 = vadd.f32 %v1410, %v1429
    %1431 = vdwg.mxu0
    %1432 = vmatpush.msra.mxu0 %v487
    %1433 = vmatpush.msra.mxu0 %v483
    %1434 = vmatpush.msra.mxu0 %v479
    %1435 = vmatpush.msra.mxu0 %v475
    %1436 = vmatpush.msra.mxu0 %v471
    %1437 = vmatpush.msra.mxu0 %v467
    %1438 = vmatpush.msra.mxu0 %v463
    %1439 = vmatpush.msra.mxu0 %v459
    %1440 = vmatpush.msra.mxu0 %v455
    %1441 = vmatpush.msra.mxu0 %v451
    %1442 = vmatpush.msra.mxu0 %v447
    %1443 = vmatpush.msra.mxu0 %v443
    %1444 = vmatpush.msra.mxu0 %v439
    %1445 = vmatpush.msra.mxu0 %v435
    %1446 = vmatpush.msra.mxu0 %v431
    %1447 = vmatpush.msra.mxu0 %v427
    %1448 = vmatmul.f32.gmra.mxu0 %v1391
    %v1449 = vpop.f32.mrf.mxu0
    %v1450 = vadd.f32 %v85, %v1449
    %1451 = vdwg.mxu0
    %1452 = vmatpush.msra.mxu0 %v551
    %1453 = vmatpush.msra.mxu0 %v547
    %1454 = vmatpush.msra.mxu0 %v543
    %1455 = vmatpush.msra.mxu0 %v539
    %1456 = vmatpush.msra.mxu0 %v535
    %1457 = vmatpush.msra.mxu0 %v531
    %1458 = vmatpush.msra.mxu0 %v527
    %1459 = vmatpush.msra.mxu0 %v523
    %1460 = vmatpush.msra.mxu0 %v519
    %1461 = vmatpush.msra.mxu0 %v515
    %1462 = vmatpush.msra.mxu0 %v511
    %1463 = vmatpush.msra.mxu0 %v507
    %1464 = vmatpush.msra.mxu0 %v503
    %1465 = vmatpush.msra.mxu0 %v499
    %1466 = vmatpush.msra.mxu0 %v495
    %1467 = vmatpush.msra.mxu0 %v491
    %1468 = vmatmul.f32.gmra.mxu0 %v1177
    %v1469 = vpop.f32.mrf.mxu0
    %v1470 = vadd.f32 %v1450, %v1469
    %1471 = vdwg.mxu0
    %1472 = vmatpush.msra.mxu0 %v488
    %1473 = vmatpush.msra.mxu0 %v484
    %1474 = vmatpush.msra.mxu0 %v480
    %1475 = vmatpush.msra.mxu0 %v476
    %1476 = vmatpush.msra.mxu0 %v472
    %1477 = vmatpush.msra.mxu0 %v468
    %1478 = vmatpush.msra.mxu0 %v464
    %1479 = vmatpush.msra.mxu0 %v460
    %1480 = vmatpush.msra.mxu0 %v456
    %1481 = vmatpush.msra.mxu0 %v452
    %1482 = vmatpush.msra.mxu0 %v448
    %1483 = vmatpush.msra.mxu0 %v444
    %1484 = vmatpush.msra.mxu0 %v440
    %1485 = vmatpush.msra.mxu0 %v436
    %1486 = vmatpush.msra.mxu0 %v432
    %1487 = vmatpush.msra.mxu0 %v428
    %1488 = vmatmul.f32.gmra.mxu0 %v1391
    %v1489 = vpop.f32.mrf.mxu0
    %v1490 = vadd.f32 %v86, %v1489
    %1491 = vdwg.mxu0
    %1492 = vmatpush.msra.mxu0 %v552
    %1493 = vmatpush.msra.mxu0 %v548
    %1494 = vmatpush.msra.mxu0 %v544
    %1495 = vmatpush.msra.mxu0 %v540
    %1496 = vmatpush.msra.mxu0 %v536
    %1497 = vmatpush.msra.mxu0 %v532
    %1498 = vmatpush.msra.mxu0 %v528
    %1499 = vmatpush.msra.mxu0 %v524
    %1500 = vmatpush.msra.mxu0 %v520
    %1501 = vmatpush.msra.mxu0 %v516
    %1502 = vmatpush.msra.mxu0 %v512
    %1503 = vmatpush.msra.mxu0 %v508
    %1504 = vmatpush.msra.mxu0 %v504
    %1505 = vmatpush.msra.mxu0 %v500
    %1506 = vmatpush.msra.mxu0 %v496
    %1507 = vmatpush.msra.mxu0 %v492
    %1508 = vmatmul.f32.gmra.mxu0 %v1177
    %v1509 = vpop.f32.mrf.mxu0
    %v1510 = vadd.f32 %v1490, %v1509
    %1511 = vdwg.mxu0
    %1512 = vmatpush.msra.mxu0 %v489
    %1513 = vmatpush.msra.mxu0 %v485
    %1514 = vmatpush.msra.mxu0 %v481
    %1515 = vmatpush.msra.mxu0 %v477
    %1516 = vmatpush.msra.mxu0 %v473
    %1517 = vmatpush.msra.mxu0 %v469
    %1518 = vmatpush.msra.mxu0 %v465
    %1519 = vmatpush.msra.mxu0 %v461
    %1520 = vmatpush.msra.mxu0 %v457
    %1521 = vmatpush.msra.mxu0 %v453
    %1522 = vmatpush.msra.mxu0 %v449
    %1523 = vmatpush.msra.mxu0 %v445
    %1524 = vmatpush.msra.mxu0 %v441
    %1525 = vmatpush.msra.mxu0 %v437
    %1526 = vmatpush.msra.mxu0 %v433
    %1527 = vmatpush.msra.mxu0 %v429
    %1528 = vmatmul.f32.gmra.mxu0 %v1391
    %v1529 = vpop.f32.mrf.mxu0
    %v1530 = vadd.f32 %v87, %v1529
    %1531 = vdwg.mxu0
    %1532 = vmatpush.msra.mxu0 %v553
    %1533 = vmatpush.msra.mxu0 %v549
    %1534 = vmatpush.msra.mxu0 %v545
    %1535 = vmatpush.msra.mxu0 %v541
    %1536 = vmatpush.msra.mxu0 %v537
    %1537 = vmatpush.msra.mxu0 %v533
    %1538 = vmatpush.msra.mxu0 %v529
    %1539 = vmatpush.msra.mxu0 %v525
    %1540 = vmatpush.msra.mxu0 %v521
    %1541 = vmatpush.msra.mxu0 %v517
    %1542 = vmatpush.msra.mxu0 %v513
    %1543 = vmatpush.msra.mxu0 %v509
    %1544 = vmatpush.msra.mxu0 %v505
    %1545 = vmatpush.msra.mxu0 %v501
    %1546 = vmatpush.msra.mxu0 %v497
    %1547 = vmatpush.msra.mxu0 %v493
    %1548 = vmatmul.f32.gmra.mxu0 %v1177
    %v1549 = vpop.f32.mrf.mxu0
    %v1550 = vadd.f32 %v1530, %v1549
    %1551 = vdwg.mxu0
    %v1552 = vxor.u32 %v1430, 2147483648
    %v1553 = vxor.u32 %v1470, 2147483648
    %v1554 = vmul.f32 %v1552, 1.442695
    %v1555 = vpow.pop %v1554
    %v1556 = vmul.f32 %v1553, 1.442695
    %v1557 = vpow.pop %v1556
    %v1558 = vadd.f32 %v1555, 1.0
    %v1559 = vadd.f32 %v1557, 1.0
    %v1560 = vrcp.pop %v1558
    %v1561 = vmul.f32 %v1558, %v1560
    %v1562 = vsub.f32 1.0, %v1561
    %v1563 = vmul.f32 %v1560, %v1562
    %v1564 = vadd.f32 %v1560, %v1563
    %vm1565 = vweird.f32 %v1558
    %vm1566 = vweird.f32 %v1560
    %vm1567 = vmor %vm1565, %vm1566
    %v1568 = vsel %vm1567, %v1560, %v1564
    %v1569 = vand.u32 2147483647, %v1558
    %vm1570 = vcmp.eq.f32.partialorder %v1569, 8.507059e+37
    %v1571 = vand.u32 %v1558, 2147483648
    %v1572 = vor.u32 1.1754944e-38, %v1571
    %v1573 = vsel %vm1570, %v1572, %v1568
    %v1574 = vmul.f32 1.0, %v1573
    %v1575 = vrcp.pop %v1559
    %v1576 = vmul.f32 %v1559, %v1575
    %v1577 = vsub.f32 1.0, %v1576
    %v1578 = vmul.f32 %v1575, %v1577
    %v1579 = vadd.f32 %v1575, %v1578
    %vm1580 = vweird.f32 %v1559
    %vm1581 = vweird.f32 %v1575
    %vm1582 = vmor %vm1580, %vm1581
    %v1583 = vsel %vm1582, %v1575, %v1579
    %v1584 = vand.u32 2147483647, %v1559
    %vm1585 = vcmp.eq.f32.partialorder %v1584, 8.507059e+37
    %v1586 = vand.u32 %v1559, 2147483648
    %v1587 = vor.u32 1.1754944e-38, %v1586
    %v1588 = vsel %vm1585, %v1587, %v1583
    %v1589 = vmul.f32 1.0, %v1588
    %v1590 = vmul.f32 %v1574, %v1550
    %v1591 = vadd.f32 %v1510, %v1590
    %v1592 = vtanh.pop %v1591
    %v1593 = vsub.f32 1.0, %v1589
    %v1594 = vmul.f32 %v1593, %v1592
    %v1595 = vmul.f32 %v1589, %v1177
    %v1596 = vadd.f32 %v1594, %v1595
    %vm1597 = vcmp.eq.s32.totalorder %v71, 2
    %v1598 = vsel %vm1597, 1, 0
    %1599 = vset.pattern.permute.xlu0 0
    %1600 = vperm.xlu0 %1599, %v1598
    %v1601 = vpop.permute.xlu0 %1600
    %vm1602 = vcmp.eq.s32.totalorder %v1601, 1
    %v1603 = vsel %vm1602, %v1596, %v1184
    %s1604 = scalar_lea.vmem [#allocation2], 24
    %v1605 = vld [vmem:[%s1604] sm:$0xff]
    %1606 = vmatpush.msra.mxu0 %v153
    %1607 = vmatpush.msra.mxu0 %v149
    %1608 = vmatpush.msra.mxu0 %v145
    %1609 = vmatpush.msra.mxu0 %v141
    %1610 = vmatpush.msra.mxu0 %v137
    %1611 = vmatpush.msra.mxu0 %v133
    %1612 = vmatpush.msra.mxu0 %v129
    %1613 = vmatpush.msra.mxu0 %v125
    %1614 = vmatpush.msra.mxu0 %v121
    %1615 = vmatpush.msra.mxu0 %v117
    %1616 = vmatpush.msra.mxu0 %v113
    %1617 = vmatpush.msra.mxu0 %v109
    %1618 = vmatpush.msra.mxu0 %v105
    %1619 = vmatpush.msra.mxu0 %v101
    %1620 = vmatpush.msra.mxu0 %v97
    %1621 = vmatpush.msra.mxu0 %v93
    %1622 = vmatmul.f32.gmra.mxu0 %v1605
    %v1623 = vpop.f32.mrf.mxu0
    %v1624 = vadd.f32 %v74, %v1623
    %1625 = vdwg.mxu0
    %1626 = vmatpush.msra.mxu0 %v217
    %1627 = vmatpush.msra.mxu0 %v213
    %1628 = vmatpush.msra.mxu0 %v209
    %1629 = vmatpush.msra.mxu0 %v205
    %1630 = vmatpush.msra.mxu0 %v201
    %1631 = vmatpush.msra.mxu0 %v197
    %1632 = vmatpush.msra.mxu0 %v193
    %1633 = vmatpush.msra.mxu0 %v189
    %1634 = vmatpush.msra.mxu0 %v185
    %1635 = vmatpush.msra.mxu0 %v181
    %1636 = vmatpush.msra.mxu0 %v177
    %1637 = vmatpush.msra.mxu0 %v173
    %1638 = vmatpush.msra.mxu0 %v169
    %1639 = vmatpush.msra.mxu0 %v165
    %1640 = vmatpush.msra.mxu0 %v161
    %1641 = vmatpush.msra.mxu0 %v157
    %1642 = vmatmul.f32.gmra.mxu0 %v1391
    %v1643 = vpop.f32.mrf.mxu0
    %v1644 = vadd.f32 %v1624, %v1643
    %1645 = vdwg.mxu0
    %1646 = vmatpush.msra.mxu0 %v154
    %1647 = vmatpush.msra.mxu0 %v150
    %1648 = vmatpush.msra.mxu0 %v146
    %1649 = vmatpush.msra.mxu0 %v142
    %1650 = vmatpush.msra.mxu0 %v138
    %1651 = vmatpush.msra.mxu0 %v134
    %1652 = vmatpush.msra.mxu0 %v130
    %1653 = vmatpush.msra.mxu0 %v126
    %1654 = vmatpush.msra.mxu0 %v122
    %1655 = vmatpush.msra.mxu0 %v118
    %1656 = vmatpush.msra.mxu0 %v114
    %1657 = vmatpush.msra.mxu0 %v110
    %1658 = vmatpush.msra.mxu0 %v106
    %1659 = vmatpush.msra.mxu0 %v102
    %1660 = vmatpush.msra.mxu0 %v98
    %1661 = vmatpush.msra.mxu0 %v94
    %1662 = vmatmul.f32.gmra.mxu0 %v1605
    %v1663 = vpop.f32.mrf.mxu0
    %v1664 = vadd.f32 %v75, %v1663
    %1665 = vdwg.mxu0
    %1666 = vmatpush.msra.mxu0 %v218
    %1667 = vmatpush.msra.mxu0 %v214
    %1668 = vmatpush.msra.mxu0 %v210
    %1669 = vmatpush.msra.mxu0 %v206
    %1670 = vmatpush.msra.mxu0 %v202
    %1671 = vmatpush.msra.mxu0 %v198
    %1672 = vmatpush.msra.mxu0 %v194
    %1673 = vmatpush.msra.mxu0 %v190
    %1674 = vmatpush.msra.mxu0 %v186
    %1675 = vmatpush.msra.mxu0 %v182
    %1676 = vmatpush.msra.mxu0 %v178
    %1677 = vmatpush.msra.mxu0 %v174
    %1678 = vmatpush.msra.mxu0 %v170
    %1679 = vmatpush.msra.mxu0 %v166
    %1680 = vmatpush.msra.mxu0 %v162
    %1681 = vmatpush.msra.mxu0 %v158
    %1682 = vmatmul.f32.gmra.mxu0 %v1391
    %v1683 = vpop.f32.mrf.mxu0
    %v1684 = vadd.f32 %v1664, %v1683
    %1685 = vdwg.mxu0
    %1686 = vmatpush.msra.mxu0 %v155
    %1687 = vmatpush.msra.mxu0 %v151
    %1688 = vmatpush.msra.mxu0 %v147
    %1689 = vmatpush.msra.mxu0 %v143
    %1690 = vmatpush.msra.mxu0 %v139
    %1691 = vmatpush.msra.mxu0 %v135
    %1692 = vmatpush.msra.mxu0 %v131
    %1693 = vmatpush.msra.mxu0 %v127
    %1694 = vmatpush.msra.mxu0 %v123
    %1695 = vmatpush.msra.mxu0 %v119
    %1696 = vmatpush.msra.mxu0 %v115
    %1697 = vmatpush.msra.mxu0 %v111
    %1698 = vmatpush.msra.mxu0 %v107
    %1699 = vmatpush.msra.mxu0 %v103
    %1700 = vmatpush.msra.mxu0 %v99
    %1701 = vmatpush.msra.mxu0 %v95
    %1702 = vmatmul.f32.gmra.mxu0 %v1605
    %v1703 = vpop.f32.mrf.mxu0
    %v1704 = vadd.f32 %v76, %v1703
    %1705 = vdwg.mxu0
    %1706 = vmatpush.msra.mxu0 %v219
    %1707 = vmatpush.msra.mxu0 %v215
    %1708 = vmatpush.msra.mxu0 %v211
    %1709 = vmatpush.msra.mxu0 %v207
    %1710 = vmatpush.msra.mxu0 %v203
    %1711 = vmatpush.msra.mxu0 %v199
    %1712 = vmatpush.msra.mxu0 %v195
    %1713 = vmatpush.msra.mxu0 %v191
    %1714 = vmatpush.msra.mxu0 %v187
    %1715 = vmatpush.msra.mxu0 %v183
    %1716 = vmatpush.msra.mxu0 %v179
    %1717 = vmatpush.msra.mxu0 %v175
    %1718 = vmatpush.msra.mxu0 %v171
    %1719 = vmatpush.msra.mxu0 %v167
    %1720 = vmatpush.msra.mxu0 %v163
    %1721 = vmatpush.msra.mxu0 %v159
    %1722 = vmatmul.f32.gmra.mxu0 %v1391
    %v1723 = vpop.f32.mrf.mxu0
    %v1724 = vadd.f32 %v1704, %v1723
    %1725 = vdwg.mxu0
    %1726 = vmatpush.msra.mxu0 %v156
    %1727 = vmatpush.msra.mxu0 %v152
    %1728 = vmatpush.msra.mxu0 %v148
    %1729 = vmatpush.msra.mxu0 %v144
    %1730 = vmatpush.msra.mxu0 %v140
    %1731 = vmatpush.msra.mxu0 %v136
    %1732 = vmatpush.msra.mxu0 %v132
    %1733 = vmatpush.msra.mxu0 %v128
    %1734 = vmatpush.msra.mxu0 %v124
    %1735 = vmatpush.msra.mxu0 %v120
    %1736 = vmatpush.msra.mxu0 %v116
    %1737 = vmatpush.msra.mxu0 %v112
    %1738 = vmatpush.msra.mxu0 %v108
    %1739 = vmatpush.msra.mxu0 %v104
    %1740 = vmatpush.msra.mxu0 %v100
    %1741 = vmatpush.msra.mxu0 %v96
    %1742 = vmatmul.f32.gmra.mxu0 %v1605
    %v1743 = vpop.f32.mrf.mxu0
    %v1744 = vadd.f32 %v77, %v1743
    %1745 = vdwg.mxu0
    %1746 = vmatpush.msra.mxu0 %v220
    %1747 = vmatpush.msra.mxu0 %v216
    %1748 = vmatpush.msra.mxu0 %v212
    %1749 = vmatpush.msra.mxu0 %v208
    %1750 = vmatpush.msra.mxu0 %v204
    %1751 = vmatpush.msra.mxu0 %v200
    %1752 = vmatpush.msra.mxu0 %v196
    %1753 = vmatpush.msra.mxu0 %v192
    %1754 = vmatpush.msra.mxu0 %v188
    %1755 = vmatpush.msra.mxu0 %v184
    %1756 = vmatpush.msra.mxu0 %v180
    %1757 = vmatpush.msra.mxu0 %v176
    %1758 = vmatpush.msra.mxu0 %v172
    %1759 = vmatpush.msra.mxu0 %v168
    %1760 = vmatpush.msra.mxu0 %v164
    %1761 = vmatpush.msra.mxu0 %v160
    %1762 = vmatmul.f32.gmra.mxu0 %v1391
    %v1763 = vpop.f32.mrf.mxu0
    %v1764 = vadd.f32 %v1744, %v1763
    %1765 = vdwg.mxu0
    %v1766 = vxor.u32 %v1644, 2147483648
    %v1767 = vxor.u32 %v1684, 2147483648
    %v1768 = vmul.f32 %v1766, 1.442695
    %v1769 = vpow.pop %v1768
    %v1770 = vmul.f32 %v1767, 1.442695
    %v1771 = vpow.pop %v1770
    %v1772 = vadd.f32 %v1769, 1.0
    %v1773 = vadd.f32 %v1771, 1.0
    %v1774 = vrcp.pop %v1772
    %v1775 = vmul.f32 %v1772, %v1774
    %v1776 = vsub.f32 1.0, %v1775
    %v1777 = vmul.f32 %v1774, %v1776
    %v1778 = vadd.f32 %v1774, %v1777
    %vm1779 = vweird.f32 %v1772
    %vm1780 = vweird.f32 %v1774
    %vm1781 = vmor %vm1779, %vm1780
    %v1782 = vsel %vm1781, %v1774, %v1778
    %v1783 = vand.u32 2147483647, %v1772
    %vm1784 = vcmp.eq.f32.partialorder %v1783, 8.507059e+37
    %v1785 = vand.u32 %v1772, 2147483648
    %v1786 = vor.u32 1.1754944e-38, %v1785
    %v1787 = vsel %vm1784, %v1786, %v1782
    %v1788 = vmul.f32 1.0, %v1787
    %v1789 = vrcp.pop %v1773
    %v1790 = vmul.f32 %v1773, %v1789
    %v1791 = vsub.f32 1.0, %v1790
    %v1792 = vmul.f32 %v1789, %v1791
    %v1793 = vadd.f32 %v1789, %v1792
    %vm1794 = vweird.f32 %v1773
    %vm1795 = vweird.f32 %v1789
    %vm1796 = vmor %vm1794, %vm1795
    %v1797 = vsel %vm1796, %v1789, %v1793
    %v1798 = vand.u32 2147483647, %v1773
    %vm1799 = vcmp.eq.f32.partialorder %v1798, 8.507059e+37
    %v1800 = vand.u32 %v1773, 2147483648
    %v1801 = vor.u32 1.1754944e-38, %v1800
    %v1802 = vsel %vm1799, %v1801, %v1797
    %v1803 = vmul.f32 1.0, %v1802
    %v1804 = vmul.f32 %v1788, %v1764
    %v1805 = vadd.f32 %v1724, %v1804
    %v1806 = vtanh.pop %v1805
    %v1807 = vsub.f32 1.0, %v1803
    %v1808 = vmul.f32 %v1807, %v1806
    %v1809 = vmul.f32 %v1803, %v1391
    %v1810 = vadd.f32 %v1808, %v1809
    %1811 = vmatpush.msra.mxu0 %v486
    %1812 = vmatpush.msra.mxu0 %v482
    %1813 = vmatpush.msra.mxu0 %v478
    %1814 = vmatpush.msra.mxu0 %v474
    %1815 = vmatpush.msra.mxu0 %v470
    %1816 = vmatpush.msra.mxu0 %v466
    %1817 = vmatpush.msra.mxu0 %v462
    %1818 = vmatpush.msra.mxu0 %v458
    %1819 = vmatpush.msra.mxu0 %v454
    %1820 = vmatpush.msra.mxu0 %v450
    %1821 = vmatpush.msra.mxu0 %v446
    %1822 = vmatpush.msra.mxu0 %v442
    %1823 = vmatpush.msra.mxu0 %v438
    %1824 = vmatpush.msra.mxu0 %v434
    %1825 = vmatpush.msra.mxu0 %v430
    %1826 = vmatpush.msra.mxu0 %v426
    %1827 = vmatmul.f32.gmra.mxu0 %v1810
    %v1828 = vpop.f32.mrf.mxu0
    %v1829 = vadd.f32 %v84, %v1828
    %1830 = vdwg.mxu0
    %1831 = vmatpush.msra.mxu0 %v550
    %1832 = vmatpush.msra.mxu0 %v546
    %1833 = vmatpush.msra.mxu0 %v542
    %1834 = vmatpush.msra.mxu0 %v538
    %1835 = vmatpush.msra.mxu0 %v534
    %1836 = vmatpush.msra.mxu0 %v530
    %1837 = vmatpush.msra.mxu0 %v526
    %1838 = vmatpush.msra.mxu0 %v522
    %1839 = vmatpush.msra.mxu0 %v518
    %1840 = vmatpush.msra.mxu0 %v514
    %1841 = vmatpush.msra.mxu0 %v510
    %1842 = vmatpush.msra.mxu0 %v506
    %1843 = vmatpush.msra.mxu0 %v502
    %1844 = vmatpush.msra.mxu0 %v498
    %1845 = vmatpush.msra.mxu0 %v494
    %1846 = vmatpush.msra.mxu0 %v490
    %1847 = vmatmul.f32.gmra.mxu0 %v1596
    %v1848 = vpop.f32.mrf.mxu0
    %v1849 = vadd.f32 %v1829, %v1848
    %1850 = vdwg.mxu0
    %1851 = vmatpush.msra.mxu0 %v487
    %1852 = vmatpush.msra.mxu0 %v483
    %1853 = vmatpush.msra.mxu0 %v479
    %1854 = vmatpush.msra.mxu0 %v475
    %1855 = vmatpush.msra.mxu0 %v471
    %1856 = vmatpush.msra.mxu0 %v467
    %1857 = vmatpush.msra.mxu0 %v463
    %1858 = vmatpush.msra.mxu0 %v459
    %1859 = vmatpush.msra.mxu0 %v455
    %1860 = vmatpush.msra.mxu0 %v451
    %1861 = vmatpush.msra.mxu0 %v447
    %1862 = vmatpush.msra.mxu0 %v443
    %1863 = vmatpush.msra.mxu0 %v439
    %1864 = vmatpush.msra.mxu0 %v435
    %1865 = vmatpush.msra.mxu0 %v431
    %1866 = vmatpush.msra.mxu0 %v427
    %1867 = vmatmul.f32.gmra.mxu0 %v1810
    %v1868 = vpop.f32.mrf.mxu0
    %v1869 = vadd.f32 %v85, %v1868
    %1870 = vdwg.mxu0
    %1871 = vmatpush.msra.mxu0 %v551
    %1872 = vmatpush.msra.mxu0 %v547
    %1873 = vmatpush.msra.mxu0 %v543
    %1874 = vmatpush.msra.mxu0 %v539
    %1875 = vmatpush.msra.mxu0 %v535
    %1876 = vmatpush.msra.mxu0 %v531
    %1877 = vmatpush.msra.mxu0 %v527
    %1878 = vmatpush.msra.mxu0 %v523
    %1879 = vmatpush.msra.mxu0 %v519
    %1880 = vmatpush.msra.mxu0 %v515
    %1881 = vmatpush.msra.mxu0 %v511
    %1882 = vmatpush.msra.mxu0 %v507
    %1883 = vmatpush.msra.mxu0 %v503
    %1884 = vmatpush.msra.mxu0 %v499
    %1885 = vmatpush.msra.mxu0 %v495
    %1886 = vmatpush.msra.mxu0 %v491
    %1887 = vmatmul.f32.gmra.mxu0 %v1596
    %v1888 = vpop.f32.mrf.mxu0
    %v1889 = vadd.f32 %v1869, %v1888
    %1890 = vdwg.mxu0
    %1891 = vmatpush.msra.mxu0 %v488
    %1892 = vmatpush.msra.mxu0 %v484
    %1893 = vmatpush.msra.mxu0 %v480
    %1894 = vmatpush.msra.mxu0 %v476
    %1895 = vmatpush.msra.mxu0 %v472
    %1896 = vmatpush.msra.mxu0 %v468
    %1897 = vmatpush.msra.mxu0 %v464
    %1898 = vmatpush.msra.mxu0 %v460
    %1899 = vmatpush.msra.mxu0 %v456
    %1900 = vmatpush.msra.mxu0 %v452
    %1901 = vmatpush.msra.mxu0 %v448
    %1902 = vmatpush.msra.mxu0 %v444
    %1903 = vmatpush.msra.mxu0 %v440
    %1904 = vmatpush.msra.mxu0 %v436
    %1905 = vmatpush.msra.mxu0 %v432
    %1906 = vmatpush.msra.mxu0 %v428
    %1907 = vmatmul.f32.gmra.mxu0 %v1810
    %v1908 = vpop.f32.mrf.mxu0
    %v1909 = vadd.f32 %v86, %v1908
    %1910 = vdwg.mxu0
    %1911 = vmatpush.msra.mxu0 %v552
    %1912 = vmatpush.msra.mxu0 %v548
    %1913 = vmatpush.msra.mxu0 %v544
    %1914 = vmatpush.msra.mxu0 %v540
    %1915 = vmatpush.msra.mxu0 %v536
    %1916 = vmatpush.msra.mxu0 %v532
    %1917 = vmatpush.msra.mxu0 %v528
    %1918 = vmatpush.msra.mxu0 %v524
    %1919 = vmatpush.msra.mxu0 %v520
    %1920 = vmatpush.msra.mxu0 %v516
    %1921 = vmatpush.msra.mxu0 %v512
    %1922 = vmatpush.msra.mxu0 %v508
    %1923 = vmatpush.msra.mxu0 %v504
    %1924 = vmatpush.msra.mxu0 %v500
    %1925 = vmatpush.msra.mxu0 %v496
    %1926 = vmatpush.msra.mxu0 %v492
    %1927 = vmatmul.f32.gmra.mxu0 %v1596
    %v1928 = vpop.f32.mrf.mxu0
    %v1929 = vadd.f32 %v1909, %v1928
    %1930 = vdwg.mxu0
    %1931 = vmatpush.msra.mxu0 %v489
    %1932 = vmatpush.msra.mxu0 %v485
    %1933 = vmatpush.msra.mxu0 %v481
    %1934 = vmatpush.msra.mxu0 %v477
    %1935 = vmatpush.msra.mxu0 %v473
    %1936 = vmatpush.msra.mxu0 %v469
    %1937 = vmatpush.msra.mxu0 %v465
    %1938 = vmatpush.msra.mxu0 %v461
    %1939 = vmatpush.msra.mxu0 %v457
    %1940 = vmatpush.msra.mxu0 %v453
    %1941 = vmatpush.msra.mxu0 %v449
    %1942 = vmatpush.msra.mxu0 %v445
    %1943 = vmatpush.msra.mxu0 %v441
    %1944 = vmatpush.msra.mxu0 %v437
    %1945 = vmatpush.msra.mxu0 %v433
    %1946 = vmatpush.msra.mxu0 %v429
    %1947 = vmatmul.f32.gmra.mxu0 %v1810
    %v1948 = vpop.f32.mrf.mxu0
    %v1949 = vadd.f32 %v87, %v1948
    %1950 = vdwg.mxu0
    %1951 = vmatpush.msra.mxu0 %v553
    %1952 = vmatpush.msra.mxu0 %v549
    %1953 = vmatpush.msra.mxu0 %v545
    %1954 = vmatpush.msra.mxu0 %v541
    %1955 = vmatpush.msra.mxu0 %v537
    %1956 = vmatpush.msra.mxu0 %v533
    %1957 = vmatpush.msra.mxu0 %v529
    %1958 = vmatpush.msra.mxu0 %v525
    %1959 = vmatpush.msra.mxu0 %v521
    %1960 = vmatpush.msra.mxu0 %v517
    %1961 = vmatpush.msra.mxu0 %v513
    %1962 = vmatpush.msra.mxu0 %v509
    %1963 = vmatpush.msra.mxu0 %v505
    %1964 = vmatpush.msra.mxu0 %v501
    %1965 = vmatpush.msra.mxu0 %v497
    %1966 = vmatpush.msra.mxu0 %v493
    %1967 = vmatmul.f32.gmra.mxu0 %v1596
    %v1968 = vpop.f32.mrf.mxu0
    %v1969 = vadd.f32 %v1949, %v1968
    %1970 = vdwg.mxu0
    %v1971 = vxor.u32 %v1849, 2147483648
    %v1972 = vxor.u32 %v1889, 2147483648
    %v1973 = vmul.f32 %v1971, 1.442695
    %v1974 = vpow.pop %v1973
    %v1975 = vmul.f32 %v1972, 1.442695
    %v1976 = vpow.pop %v1975
    %v1977 = vadd.f32 %v1974, 1.0
    %v1978 = vadd.f32 %v1976, 1.0
    %v1979 = vrcp.pop %v1977
    %v1980 = vmul.f32 %v1977, %v1979
    %v1981 = vsub.f32 1.0, %v1980
    %v1982 = vmul.f32 %v1979, %v1981
    %v1983 = vadd.f32 %v1979, %v1982
    %vm1984 = vweird.f32 %v1977
    %vm1985 = vweird.f32 %v1979
    %vm1986 = vmor %vm1984, %vm1985
    %v1987 = vsel %vm1986, %v1979, %v1983
    %v1988 = vand.u32 2147483647, %v1977
    %vm1989 = vcmp.eq.f32.partialorder %v1988, 8.507059e+37
    %v1990 = vand.u32 %v1977, 2147483648
    %v1991 = vor.u32 1.1754944e-38, %v1990
    %v1992 = vsel %vm1989, %v1991, %v1987
    %v1993 = vmul.f32 1.0, %v1992
    %v1994 = vrcp.pop %v1978
    %v1995 = vmul.f32 %v1978, %v1994
    %v1996 = vsub.f32 1.0, %v1995
    %v1997 = vmul.f32 %v1994, %v1996
    %v1998 = vadd.f32 %v1994, %v1997
    %vm1999 = vweird.f32 %v1978
    %vm2000 = vweird.f32 %v1994
    %vm2001 = vmor %vm1999, %vm2000
    %v2002 = vsel %vm2001, %v1994, %v1998
    %v2003 = vand.u32 2147483647, %v1978
    %vm2004 = vcmp.eq.f32.partialorder %v2003, 8.507059e+37
    %v2005 = vand.u32 %v1978, 2147483648
    %v2006 = vor.u32 1.1754944e-38, %v2005
    %v2007 = vsel %vm2004, %v2006, %v2002
    %v2008 = vmul.f32 1.0, %v2007
    %v2009 = vmul.f32 %v1993, %v1969
    %v2010 = vadd.f32 %v1929, %v2009
    %v2011 = vtanh.pop %v2010
    %v2012 = vsub.f32 1.0, %v2008
    %v2013 = vmul.f32 %v2012, %v2011
    %v2014 = vmul.f32 %v2008, %v1596
    %v2015 = vadd.f32 %v2013, %v2014
    %vm2016 = vcmp.eq.s32.totalorder %v71, 3
    %v2017 = vsel %vm2016, 1, 0
    %2018 = vset.pattern.permute.xlu0 0
    %2019 = vperm.xlu0 %2018, %v2017
    %v2020 = vpop.permute.xlu0 %2019
    %vm2021 = vcmp.eq.s32.totalorder %v2020, 1
    %v2022 = vsel %vm2021, %v2015, %v1603
    %s2023 = scalar_lea.vmem [#allocation2], 32
    %v2024 = vld [vmem:[%s2023] sm:$0xff]
    %2025 = vmatpush.msra.mxu0 %v153
    %2026 = vmatpush.msra.mxu0 %v149
    %2027 = vmatpush.msra.mxu0 %v145
    %2028 = vmatpush.msra.mxu0 %v141
    %2029 = vmatpush.msra.mxu0 %v137
    %2030 = vmatpush.msra.mxu0 %v133
    %2031 = vmatpush.msra.mxu0 %v129
    %2032 = vmatpush.msra.mxu0 %v125
    %2033 = vmatpush.msra.mxu0 %v121
    %2034 = vmatpush.msra.mxu0 %v117
    %2035 = vmatpush.msra.mxu0 %v113
    %2036 = vmatpush.msra.mxu0 %v109
    %2037 = vmatpush.msra.mxu0 %v105
    %2038 = vmatpush.msra.mxu0 %v101
    %2039 = vmatpush.msra.mxu0 %v97
    %2040 = vmatpush.msra.mxu0 %v93
    %2041 = vmatmul.f32.gmra.mxu0 %v2024
    %v2042 = vpop.f32.mrf.mxu0
    %v2043 = vadd.f32 %v74, %v2042
    %2044 = vdwg.mxu0
    %2045 = vmatpush.msra.mxu0 %v217
    %2046 = vmatpush.msra.mxu0 %v213
    %2047 = vmatpush.msra.mxu0 %v209
    %2048 = vmatpush.msra.mxu0 %v205
    %2049 = vmatpush.msra.mxu0 %v201
    %2050 = vmatpush.msra.mxu0 %v197
    %2051 = vmatpush.msra.mxu0 %v193
    %2052 = vmatpush.msra.mxu0 %v189
    %2053 = vmatpush.msra.mxu0 %v185
    %2054 = vmatpush.msra.mxu0 %v181
    %2055 = vmatpush.msra.mxu0 %v177
    %2056 = vmatpush.msra.mxu0 %v173
    %2057 = vmatpush.msra.mxu0 %v169
    %2058 = vmatpush.msra.mxu0 %v165
    %2059 = vmatpush.msra.mxu0 %v161
    %2060 = vmatpush.msra.mxu0 %v157
    %2061 = vmatmul.f32.gmra.mxu0 %v1810
    %v2062 = vpop.f32.mrf.mxu0
    %v2063 = vadd.f32 %v2043, %v2062
    %2064 = vdwg.mxu0
    %2065 = vmatpush.msra.mxu0 %v154
    %2066 = vmatpush.msra.mxu0 %v150
    %2067 = vmatpush.msra.mxu0 %v146
    %2068 = vmatpush.msra.mxu0 %v142
    %2069 = vmatpush.msra.mxu0 %v138
    %2070 = vmatpush.msra.mxu0 %v134
    %2071 = vmatpush.msra.mxu0 %v130
    %2072 = vmatpush.msra.mxu0 %v126
    %2073 = vmatpush.msra.mxu0 %v122
    %2074 = vmatpush.msra.mxu0 %v118
    %2075 = vmatpush.msra.mxu0 %v114
    %2076 = vmatpush.msra.mxu0 %v110
    %2077 = vmatpush.msra.mxu0 %v106
    %2078 = vmatpush.msra.mxu0 %v102
    %2079 = vmatpush.msra.mxu0 %v98
    %2080 = vmatpush.msra.mxu0 %v94
    %2081 = vmatmul.f32.gmra.mxu0 %v2024
    %v2082 = vpop.f32.mrf.mxu0
    %v2083 = vadd.f32 %v75, %v2082
    %2084 = vdwg.mxu0
    %2085 = vmatpush.msra.mxu0 %v218
    %2086 = vmatpush.msra.mxu0 %v214
    %2087 = vmatpush.msra.mxu0 %v210
    %2088 = vmatpush.msra.mxu0 %v206
    %2089 = vmatpush.msra.mxu0 %v202
    %2090 = vmatpush.msra.mxu0 %v198
    %2091 = vmatpush.msra.mxu0 %v194
    %2092 = vmatpush.msra.mxu0 %v190
    %2093 = vmatpush.msra.mxu0 %v186
    %2094 = vmatpush.msra.mxu0 %v182
    %2095 = vmatpush.msra.mxu0 %v178
    %2096 = vmatpush.msra.mxu0 %v174
    %2097 = vmatpush.msra.mxu0 %v170
    %2098 = vmatpush.msra.mxu0 %v166
    %2099 = vmatpush.msra.mxu0 %v162
    %2100 = vmatpush.msra.mxu0 %v158
    %2101 = vmatmul.f32.gmra.mxu0 %v1810
    %v2102 = vpop.f32.mrf.mxu0
    %v2103 = vadd.f32 %v2083, %v2102
    %2104 = vdwg.mxu0
    %2105 = vmatpush.msra.mxu0 %v155
    %2106 = vmatpush.msra.mxu0 %v151
    %2107 = vmatpush.msra.mxu0 %v147
    %2108 = vmatpush.msra.mxu0 %v143
    %2109 = vmatpush.msra.mxu0 %v139
    %2110 = vmatpush.msra.mxu0 %v135
    %2111 = vmatpush.msra.mxu0 %v131
    %2112 = vmatpush.msra.mxu0 %v127
    %2113 = vmatpush.msra.mxu0 %v123
    %2114 = vmatpush.msra.mxu0 %v119
    %2115 = vmatpush.msra.mxu0 %v115
    %2116 = vmatpush.msra.mxu0 %v111
    %2117 = vmatpush.msra.mxu0 %v107
    %2118 = vmatpush.msra.mxu0 %v103
    %2119 = vmatpush.msra.mxu0 %v99
    %2120 = vmatpush.msra.mxu0 %v95
    %2121 = vmatmul.f32.gmra.mxu0 %v2024
    %v2122 = vpop.f32.mrf.mxu0
    %v2123 = vadd.f32 %v76, %v2122
    %2124 = vdwg.mxu0
    %2125 = vmatpush.msra.mxu0 %v219
    %2126 = vmatpush.msra.mxu0 %v215
    %2127 = vmatpush.msra.mxu0 %v211
    %2128 = vmatpush.msra.mxu0 %v207
    %2129 = vmatpush.msra.mxu0 %v203
    %2130 = vmatpush.msra.mxu0 %v199
    %2131 = vmatpush.msra.mxu0 %v195
    %2132 = vmatpush.msra.mxu0 %v191
    %2133 = vmatpush.msra.mxu0 %v187
    %2134 = vmatpush.msra.mxu0 %v183
    %2135 = vmatpush.msra.mxu0 %v179
    %2136 = vmatpush.msra.mxu0 %v175
    %2137 = vmatpush.msra.mxu0 %v171
    %2138 = vmatpush.msra.mxu0 %v167
    %2139 = vmatpush.msra.mxu0 %v163
    %2140 = vmatpush.msra.mxu0 %v159
    %2141 = vmatmul.f32.gmra.mxu0 %v1810
    %v2142 = vpop.f32.mrf.mxu0
    %v2143 = vadd.f32 %v2123, %v2142
    %2144 = vdwg.mxu0
    %2145 = vmatpush.msra.mxu0 %v156
    %2146 = vmatpush.msra.mxu0 %v152
    %2147 = vmatpush.msra.mxu0 %v148
    %2148 = vmatpush.msra.mxu0 %v144
    %2149 = vmatpush.msra.mxu0 %v140
    %2150 = vmatpush.msra.mxu0 %v136
    %2151 = vmatpush.msra.mxu0 %v132
    %2152 = vmatpush.msra.mxu0 %v128
    %2153 = vmatpush.msra.mxu0 %v124
    %2154 = vmatpush.msra.mxu0 %v120
    %2155 = vmatpush.msra.mxu0 %v116
    %2156 = vmatpush.msra.mxu0 %v112
    %2157 = vmatpush.msra.mxu0 %v108
    %2158 = vmatpush.msra.mxu0 %v104
    %2159 = vmatpush.msra.mxu0 %v100
    %2160 = vmatpush.msra.mxu0 %v96
    %2161 = vmatmul.f32.gmra.mxu0 %v2024
    %v2162 = vpop.f32.mrf.mxu0
    %v2163 = vadd.f32 %v77, %v2162
    %2164 = vdwg.mxu0
    %2165 = vmatpush.msra.mxu0 %v220
    %2166 = vmatpush.msra.mxu0 %v216
    %2167 = vmatpush.msra.mxu0 %v212
    %2168 = vmatpush.msra.mxu0 %v208
    %2169 = vmatpush.msra.mxu0 %v204
    %2170 = vmatpush.msra.mxu0 %v200
    %2171 = vmatpush.msra.mxu0 %v196
    %2172 = vmatpush.msra.mxu0 %v192
    %2173 = vmatpush.msra.mxu0 %v188
    %2174 = vmatpush.msra.mxu0 %v184
    %2175 = vmatpush.msra.mxu0 %v180
    %2176 = vmatpush.msra.mxu0 %v176
    %2177 = vmatpush.msra.mxu0 %v172
    %2178 = vmatpush.msra.mxu0 %v168
    %2179 = vmatpush.msra.mxu0 %v164
    %2180 = vmatpush.msra.mxu0 %v160
    %2181 = vmatmul.f32.gmra.mxu0 %v1810
    %v2182 = vpop.f32.mrf.mxu0
    %v2183 = vadd.f32 %v2163, %v2182
    %2184 = vdwg.mxu0
    %v2185 = vxor.u32 %v2063, 2147483648
    %v2186 = vxor.u32 %v2103, 2147483648
    %v2187 = vmul.f32 %v2185, 1.442695
    %v2188 = vpow.pop %v2187
    %v2189 = vmul.f32 %v2186, 1.442695
    %v2190 = vpow.pop %v2189
    %v2191 = vadd.f32 %v2188, 1.0
    %v2192 = vadd.f32 %v2190, 1.0
    %v2193 = vrcp.pop %v2191
    %v2194 = vmul.f32 %v2191, %v2193
    %v2195 = vsub.f32 1.0, %v2194
    %v2196 = vmul.f32 %v2193, %v2195
    %v2197 = vadd.f32 %v2193, %v2196
    %vm2198 = vweird.f32 %v2191
    %vm2199 = vweird.f32 %v2193
    %vm2200 = vmor %vm2198, %vm2199
    %v2201 = vsel %vm2200, %v2193, %v2197
    %v2202 = vand.u32 2147483647, %v2191
    %vm2203 = vcmp.eq.f32.partialorder %v2202, 8.507059e+37
    %v2204 = vand.u32 %v2191, 2147483648
    %v2205 = vor.u32 1.1754944e-38, %v2204
    %v2206 = vsel %vm2203, %v2205, %v2201
    %v2207 = vmul.f32 1.0, %v2206
    %v2208 = vrcp.pop %v2192
    %v2209 = vmul.f32 %v2192, %v2208
    %v2210 = vsub.f32 1.0, %v2209
    %v2211 = vmul.f32 %v2208, %v2210
    %v2212 = vadd.f32 %v2208, %v2211
    %vm2213 = vweird.f32 %v2192
    %vm2214 = vweird.f32 %v2208
    %vm2215 = vmor %vm2213, %vm2214
    %v2216 = vsel %vm2215, %v2208, %v2212
    %v2217 = vand.u32 2147483647, %v2192
    %vm2218 = vcmp.eq.f32.partialorder %v2217, 8.507059e+37
    %v2219 = vand.u32 %v2192, 2147483648
    %v2220 = vor.u32 1.1754944e-38, %v2219
    %v2221 = vsel %vm2218, %v2220, %v2216
    %v2222 = vmul.f32 1.0, %v2221
    %v2223 = vmul.f32 %v2207, %v2183
    %v2224 = vadd.f32 %v2143, %v2223
    %v2225 = vtanh.pop %v2224
    %v2226 = vsub.f32 1.0, %v2222
    %v2227 = vmul.f32 %v2226, %v2225
    %v2228 = vmul.f32 %v2222, %v1810
    %v2229 = vadd.f32 %v2227, %v2228
    %2230 = vmatpush.msra.mxu0 %v486
    %2231 = vmatpush.msra.mxu0 %v482
    %2232 = vmatpush.msra.mxu0 %v478
    %2233 = vmatpush.msra.mxu0 %v474
    %2234 = vmatpush.msra.mxu0 %v470
    %2235 = vmatpush.msra.mxu0 %v466
    %2236 = vmatpush.msra.mxu0 %v462
    %2237 = vmatpush.msra.mxu0 %v458
    %2238 = vmatpush.msra.mxu0 %v454
    %2239 = vmatpush.msra.mxu0 %v450
    %2240 = vmatpush.msra.mxu0 %v446
    %2241 = vmatpush.msra.mxu0 %v442
    %2242 = vmatpush.msra.mxu0 %v438
    %2243 = vmatpush.msra.mxu0 %v434
    %2244 = vmatpush.msra.mxu0 %v430
    %2245 = vmatpush.msra.mxu0 %v426
    %2246 = vmatmul.f32.gmra.mxu0 %v2229
    %v2247 = vpop.f32.mrf.mxu0
    %v2248 = vadd.f32 %v84, %v2247
    %2249 = vdwg.mxu0
    %2250 = vmatpush.msra.mxu0 %v550
    %2251 = vmatpush.msra.mxu0 %v546
    %2252 = vmatpush.msra.mxu0 %v542
    %2253 = vmatpush.msra.mxu0 %v538
    %2254 = vmatpush.msra.mxu0 %v534
    %2255 = vmatpush.msra.mxu0 %v530
    %2256 = vmatpush.msra.mxu0 %v526
    %2257 = vmatpush.msra.mxu0 %v522
    %2258 = vmatpush.msra.mxu0 %v518
    %2259 = vmatpush.msra.mxu0 %v514
    %2260 = vmatpush.msra.mxu0 %v510
    %2261 = vmatpush.msra.mxu0 %v506
    %2262 = vmatpush.msra.mxu0 %v502
    %2263 = vmatpush.msra.mxu0 %v498
    %2264 = vmatpush.msra.mxu0 %v494
    %2265 = vmatpush.msra.mxu0 %v490
    %2266 = vmatmul.f32.gmra.mxu0 %v2015
    %v2267 = vpop.f32.mrf.mxu0
    %v2268 = vadd.f32 %v2248, %v2267
    %2269 = vdwg.mxu0
    %2270 = vmatpush.msra.mxu0 %v487
    %2271 = vmatpush.msra.mxu0 %v483
    %2272 = vmatpush.msra.mxu0 %v479
    %2273 = vmatpush.msra.mxu0 %v475
    %2274 = vmatpush.msra.mxu0 %v471
    %2275 = vmatpush.msra.mxu0 %v467
    %2276 = vmatpush.msra.mxu0 %v463
    %2277 = vmatpush.msra.mxu0 %v459
    %2278 = vmatpush.msra.mxu0 %v455
    %2279 = vmatpush.msra.mxu0 %v451
    %2280 = vmatpush.msra.mxu0 %v447
    %2281 = vmatpush.msra.mxu0 %v443
    %2282 = vmatpush.msra.mxu0 %v439
    %2283 = vmatpush.msra.mxu0 %v435
    %2284 = vmatpush.msra.mxu0 %v431
    %2285 = vmatpush.msra.mxu0 %v427
    %2286 = vmatmul.f32.gmra.mxu0 %v2229
    %v2287 = vpop.f32.mrf.mxu0
    %v2288 = vadd.f32 %v85, %v2287
    %2289 = vdwg.mxu0
    %2290 = vmatpush.msra.mxu0 %v551
    %2291 = vmatpush.msra.mxu0 %v547
    %2292 = vmatpush.msra.mxu0 %v543
    %2293 = vmatpush.msra.mxu0 %v539
    %2294 = vmatpush.msra.mxu0 %v535
    %2295 = vmatpush.msra.mxu0 %v531
    %2296 = vmatpush.msra.mxu0 %v527
    %2297 = vmatpush.msra.mxu0 %v523
    %2298 = vmatpush.msra.mxu0 %v519
    %2299 = vmatpush.msra.mxu0 %v515
    %2300 = vmatpush.msra.mxu0 %v511
    %2301 = vmatpush.msra.mxu0 %v507
    %2302 = vmatpush.msra.mxu0 %v503
    %2303 = vmatpush.msra.mxu0 %v499
    %2304 = vmatpush.msra.mxu0 %v495
    %2305 = vmatpush.msra.mxu0 %v491
    %2306 = vmatmul.f32.gmra.mxu0 %v2015
    %v2307 = vpop.f32.mrf.mxu0
    %v2308 = vadd.f32 %v2288, %v2307
    %2309 = vdwg.mxu0
    %2310 = vmatpush.msra.mxu0 %v488
    %2311 = vmatpush.msra.mxu0 %v484
    %2312 = vmatpush.msra.mxu0 %v480
    %2313 = vmatpush.msra.mxu0 %v476
    %2314 = vmatpush.msra.mxu0 %v472
    %2315 = vmatpush.msra.mxu0 %v468
    %2316 = vmatpush.msra.mxu0 %v464
    %2317 = vmatpush.msra.mxu0 %v460
    %2318 = vmatpush.msra.mxu0 %v456
    %2319 = vmatpush.msra.mxu0 %v452
    %2320 = vmatpush.msra.mxu0 %v448
    %2321 = vmatpush.msra.mxu0 %v444
    %2322 = vmatpush.msra.mxu0 %v440
    %2323 = vmatpush.msra.mxu0 %v436
    %2324 = vmatpush.msra.mxu0 %v432
    %2325 = vmatpush.msra.mxu0 %v428
    %2326 = vmatmul.f32.gmra.mxu0 %v2229
    %v2327 = vpop.f32.mrf.mxu0
    %v2328 = vadd.f32 %v86, %v2327
    %2329 = vdwg.mxu0
    %2330 = vmatpush.msra.mxu0 %v552
    %2331 = vmatpush.msra.mxu0 %v548
    %2332 = vmatpush.msra.mxu0 %v544
    %2333 = vmatpush.msra.mxu0 %v540
    %2334 = vmatpush.msra.mxu0 %v536
    %2335 = vmatpush.msra.mxu0 %v532
    %2336 = vmatpush.msra.mxu0 %v528
    %2337 = vmatpush.msra.mxu0 %v524
    %2338 = vmatpush.msra.mxu0 %v520
    %2339 = vmatpush.msra.mxu0 %v516
    %2340 = vmatpush.msra.mxu0 %v512
    %2341 = vmatpush.msra.mxu0 %v508
    %2342 = vmatpush.msra.mxu0 %v504
    %2343 = vmatpush.msra.mxu0 %v500
    %2344 = vmatpush.msra.mxu0 %v496
    %2345 = vmatpush.msra.mxu0 %v492
    %2346 = vmatmul.f32.gmra.mxu0 %v2015
    %v2347 = vpop.f32.mrf.mxu0
    %v2348 = vadd.f32 %v2328, %v2347
    %2349 = vdwg.mxu0
    %2350 = vmatpush.msra.mxu0 %v489
    %2351 = vmatpush.msra.mxu0 %v485
    %2352 = vmatpush.msra.mxu0 %v481
    %2353 = vmatpush.msra.mxu0 %v477
    %2354 = vmatpush.msra.mxu0 %v473
    %2355 = vmatpush.msra.mxu0 %v469
    %2356 = vmatpush.msra.mxu0 %v465
    %2357 = vmatpush.msra.mxu0 %v461
    %2358 = vmatpush.msra.mxu0 %v457
    %2359 = vmatpush.msra.mxu0 %v453
    %2360 = vmatpush.msra.mxu0 %v449
    %2361 = vmatpush.msra.mxu0 %v445
    %2362 = vmatpush.msra.mxu0 %v441
    %2363 = vmatpush.msra.mxu0 %v437
    %2364 = vmatpush.msra.mxu0 %v433
    %2365 = vmatpush.msra.mxu0 %v429
    %2366 = vmatmul.f32.gmra.mxu0 %v2229
    %v2367 = vpop.f32.mrf.mxu0
    %v2368 = vadd.f32 %v87, %v2367
    %2369 = vdwg.mxu0
    %2370 = vmatpush.msra.mxu0 %v553
    %2371 = vmatpush.msra.mxu0 %v549
    %2372 = vmatpush.msra.mxu0 %v545
    %2373 = vmatpush.msra.mxu0 %v541
    %2374 = vmatpush.msra.mxu0 %v537
    %2375 = vmatpush.msra.mxu0 %v533
    %2376 = vmatpush.msra.mxu0 %v529
    %2377 = vmatpush.msra.mxu0 %v525
    %2378 = vmatpush.msra.mxu0 %v521
    %2379 = vmatpush.msra.mxu0 %v517
    %2380 = vmatpush.msra.mxu0 %v513
    %2381 = vmatpush.msra.mxu0 %v509
    %2382 = vmatpush.msra.mxu0 %v505
    %2383 = vmatpush.msra.mxu0 %v501
    %2384 = vmatpush.msra.mxu0 %v497
    %2385 = vmatpush.msra.mxu0 %v493
    %2386 = vmatmul.f32.gmra.mxu0 %v2015
    %v2387 = vpop.f32.mrf.mxu0
    %v2388 = vadd.f32 %v2368, %v2387
    %2389 = vdwg.mxu0
    %v2390 = vxor.u32 %v2268, 2147483648
    %v2391 = vxor.u32 %v2308, 2147483648
    %v2392 = vmul.f32 %v2390, 1.442695
    %v2393 = vpow.pop %v2392
    %v2394 = vmul.f32 %v2391, 1.442695
    %v2395 = vpow.pop %v2394
    %v2396 = vadd.f32 %v2393, 1.0
    %v2397 = vadd.f32 %v2395, 1.0
    %v2398 = vrcp.pop %v2396
    %v2399 = vmul.f32 %v2396, %v2398
    %v2400 = vsub.f32 1.0, %v2399
    %v2401 = vmul.f32 %v2398, %v2400
    %v2402 = vadd.f32 %v2398, %v2401
    %vm2403 = vweird.f32 %v2396
    %vm2404 = vweird.f32 %v2398
    %vm2405 = vmor %vm2403, %vm2404
    %v2406 = vsel %vm2405, %v2398, %v2402
    %v2407 = vand.u32 2147483647, %v2396
    %vm2408 = vcmp.eq.f32.partialorder %v2407, 8.507059e+37
    %v2409 = vand.u32 %v2396, 2147483648
    %v2410 = vor.u32 1.1754944e-38, %v2409
    %v2411 = vsel %vm2408, %v2410, %v2406
    %v2412 = vmul.f32 1.0, %v2411
    %v2413 = vrcp.pop %v2397
    %v2414 = vmul.f32 %v2397, %v2413
    %v2415 = vsub.f32 1.0, %v2414
    %v2416 = vmul.f32 %v2413, %v2415
    %v2417 = vadd.f32 %v2413, %v2416
    %vm2418 = vweird.f32 %v2397
    %vm2419 = vweird.f32 %v2413
    %vm2420 = vmor %vm2418, %vm2419
    %v2421 = vsel %vm2420, %v2413, %v2417
    %v2422 = vand.u32 2147483647, %v2397
    %vm2423 = vcmp.eq.f32.partialorder %v2422, 8.507059e+37
    %v2424 = vand.u32 %v2397, 2147483648
    %v2425 = vor.u32 1.1754944e-38, %v2424
    %v2426 = vsel %vm2423, %v2425, %v2421
    %v2427 = vmul.f32 1.0, %v2426
    %v2428 = vmul.f32 %v2412, %v2388
    %v2429 = vadd.f32 %v2348, %v2428
    %v2430 = vtanh.pop %v2429
    %v2431 = vsub.f32 1.0, %v2427
    %v2432 = vmul.f32 %v2431, %v2430
    %v2433 = vmul.f32 %v2427, %v2015
    %v2434 = vadd.f32 %v2432, %v2433
    %vm2435 = vcmp.eq.s32.totalorder %v71, 4
    %v2436 = vsel %vm2435, 1, 0
    %2437 = vset.pattern.permute.xlu0 0
    %2438 = vperm.xlu0 %2437, %v2436
    %v2439 = vpop.permute.xlu0 %2438
    %vm2440 = vcmp.eq.s32.totalorder %v2439, 1
    %v2441 = vsel %vm2440, %v2434, %v2022
    %s2442 = scalar_lea.vmem [#allocation2], 40
    %v2443 = vld [vmem:[%s2442] sm:$0xff]
    %2444 = vmatpush.msra.mxu0 %v153
    %2445 = vmatpush.msra.mxu0 %v149
    %2446 = vmatpush.msra.mxu0 %v145
    %2447 = vmatpush.msra.mxu0 %v141
    %2448 = vmatpush.msra.mxu0 %v137
    %2449 = vmatpush.msra.mxu0 %v133
    %2450 = vmatpush.msra.mxu0 %v129
    %2451 = vmatpush.msra.mxu0 %v125
    %2452 = vmatpush.msra.mxu0 %v121
    %2453 = vmatpush.msra.mxu0 %v117
    %2454 = vmatpush.msra.mxu0 %v113
    %2455 = vmatpush.msra.mxu0 %v109
    %2456 = vmatpush.msra.mxu0 %v105
    %2457 = vmatpush.msra.mxu0 %v101
    %2458 = vmatpush.msra.mxu0 %v97
    %2459 = vmatpush.msra.mxu0 %v93
    %2460 = vmatmul.f32.gmra.mxu0 %v2443
    %v2461 = vpop.f32.mrf.mxu0
    %v2462 = vadd.f32 %v74, %v2461
    %2463 = vdwg.mxu0
    %2464 = vmatpush.msra.mxu0 %v217
    %2465 = vmatpush.msra.mxu0 %v213
    %2466 = vmatpush.msra.mxu0 %v209
    %2467 = vmatpush.msra.mxu0 %v205
    %2468 = vmatpush.msra.mxu0 %v201
    %2469 = vmatpush.msra.mxu0 %v197
    %2470 = vmatpush.msra.mxu0 %v193
    %2471 = vmatpush.msra.mxu0 %v189
    %2472 = vmatpush.msra.mxu0 %v185
    %2473 = vmatpush.msra.mxu0 %v181
    %2474 = vmatpush.msra.mxu0 %v177
    %2475 = vmatpush.msra.mxu0 %v173
    %2476 = vmatpush.msra.mxu0 %v169
    %2477 = vmatpush.msra.mxu0 %v165
    %2478 = vmatpush.msra.mxu0 %v161
    %2479 = vmatpush.msra.mxu0 %v157
    %2480 = vmatmul.f32.gmra.mxu0 %v2229
    %v2481 = vpop.f32.mrf.mxu0
    %v2482 = vadd.f32 %v2462, %v2481
    %2483 = vdwg.mxu0
    %2484 = vmatpush.msra.mxu0 %v154
    %2485 = vmatpush.msra.mxu0 %v150
    %2486 = vmatpush.msra.mxu0 %v146
    %2487 = vmatpush.msra.mxu0 %v142
    %2488 = vmatpush.msra.mxu0 %v138
    %2489 = vmatpush.msra.mxu0 %v134
    %2490 = vmatpush.msra.mxu0 %v130
    %2491 = vmatpush.msra.mxu0 %v126
    %2492 = vmatpush.msra.mxu0 %v122
    %2493 = vmatpush.msra.mxu0 %v118
    %2494 = vmatpush.msra.mxu0 %v114
    %2495 = vmatpush.msra.mxu0 %v110
    %2496 = vmatpush.msra.mxu0 %v106
    %2497 = vmatpush.msra.mxu0 %v102
    %2498 = vmatpush.msra.mxu0 %v98
    %2499 = vmatpush.msra.mxu0 %v94
    %2500 = vmatmul.f32.gmra.mxu0 %v2443
    %v2501 = vpop.f32.mrf.mxu0
    %v2502 = vadd.f32 %v75, %v2501
    %2503 = vdwg.mxu0
    %2504 = vmatpush.msra.mxu0 %v218
    %2505 = vmatpush.msra.mxu0 %v214
    %2506 = vmatpush.msra.mxu0 %v210
    %2507 = vmatpush.msra.mxu0 %v206
    %2508 = vmatpush.msra.mxu0 %v202
    %2509 = vmatpush.msra.mxu0 %v198
    %2510 = vmatpush.msra.mxu0 %v194
    %2511 = vmatpush.msra.mxu0 %v190
    %2512 = vmatpush.msra.mxu0 %v186
    %2513 = vmatpush.msra.mxu0 %v182
    %2514 = vmatpush.msra.mxu0 %v178
    %2515 = vmatpush.msra.mxu0 %v174
    %2516 = vmatpush.msra.mxu0 %v170
    %2517 = vmatpush.msra.mxu0 %v166
    %2518 = vmatpush.msra.mxu0 %v162
    %2519 = vmatpush.msra.mxu0 %v158
    %2520 = vmatmul.f32.gmra.mxu0 %v2229
    %v2521 = vpop.f32.mrf.mxu0
    %v2522 = vadd.f32 %v2502, %v2521
    %2523 = vdwg.mxu0
    %2524 = vmatpush.msra.mxu0 %v155
    %2525 = vmatpush.msra.mxu0 %v151
    %2526 = vmatpush.msra.mxu0 %v147
    %2527 = vmatpush.msra.mxu0 %v143
    %2528 = vmatpush.msra.mxu0 %v139
    %2529 = vmatpush.msra.mxu0 %v135
    %2530 = vmatpush.msra.mxu0 %v131
    %2531 = vmatpush.msra.mxu0 %v127
    %2532 = vmatpush.msra.mxu0 %v123
    %2533 = vmatpush.msra.mxu0 %v119
    %2534 = vmatpush.msra.mxu0 %v115
    %2535 = vmatpush.msra.mxu0 %v111
    %2536 = vmatpush.msra.mxu0 %v107
    %2537 = vmatpush.msra.mxu0 %v103
    %2538 = vmatpush.msra.mxu0 %v99
    %2539 = vmatpush.msra.mxu0 %v95
    %2540 = vmatmul.f32.gmra.mxu0 %v2443
    %v2541 = vpop.f32.mrf.mxu0
    %v2542 = vadd.f32 %v76, %v2541
    %2543 = vdwg.mxu0
    %2544 = vmatpush.msra.mxu0 %v219
    %2545 = vmatpush.msra.mxu0 %v215
    %2546 = vmatpush.msra.mxu0 %v211
    %2547 = vmatpush.msra.mxu0 %v207
    %2548 = vmatpush.msra.mxu0 %v203
    %2549 = vmatpush.msra.mxu0 %v199
    %2550 = vmatpush.msra.mxu0 %v195
    %2551 = vmatpush.msra.mxu0 %v191
    %2552 = vmatpush.msra.mxu0 %v187
    %2553 = vmatpush.msra.mxu0 %v183
    %2554 = vmatpush.msra.mxu0 %v179
    %2555 = vmatpush.msra.mxu0 %v175
    %2556 = vmatpush.msra.mxu0 %v171
    %2557 = vmatpush.msra.mxu0 %v167
    %2558 = vmatpush.msra.mxu0 %v163
    %2559 = vmatpush.msra.mxu0 %v159
    %2560 = vmatmul.f32.gmra.mxu0 %v2229
    %v2561 = vpop.f32.mrf.mxu0
    %v2562 = vadd.f32 %v2542, %v2561
    %2563 = vdwg.mxu0
    %2564 = vmatpush.msra.mxu0 %v156
    %2565 = vmatpush.msra.mxu0 %v152
    %2566 = vmatpush.msra.mxu0 %v148
    %2567 = vmatpush.msra.mxu0 %v144
    %2568 = vmatpush.msra.mxu0 %v140
    %2569 = vmatpush.msra.mxu0 %v136
    %2570 = vmatpush.msra.mxu0 %v132
    %2571 = vmatpush.msra.mxu0 %v128
    %2572 = vmatpush.msra.mxu0 %v124
    %2573 = vmatpush.msra.mxu0 %v120
    %2574 = vmatpush.msra.mxu0 %v116
    %2575 = vmatpush.msra.mxu0 %v112
    %2576 = vmatpush.msra.mxu0 %v108
    %2577 = vmatpush.msra.mxu0 %v104
    %2578 = vmatpush.msra.mxu0 %v100
    %2579 = vmatpush.msra.mxu0 %v96
    %2580 = vmatmul.f32.gmra.mxu0 %v2443
    %v2581 = vpop.f32.mrf.mxu0
    %v2582 = vadd.f32 %v77, %v2581
    %2583 = vdwg.mxu0
    %2584 = vmatpush.msra.mxu0 %v220
    %2585 = vmatpush.msra.mxu0 %v216
    %2586 = vmatpush.msra.mxu0 %v212
    %2587 = vmatpush.msra.mxu0 %v208
    %2588 = vmatpush.msra.mxu0 %v204
    %2589 = vmatpush.msra.mxu0 %v200
    %2590 = vmatpush.msra.mxu0 %v196
    %2591 = vmatpush.msra.mxu0 %v192
    %2592 = vmatpush.msra.mxu0 %v188
    %2593 = vmatpush.msra.mxu0 %v184
    %2594 = vmatpush.msra.mxu0 %v180
    %2595 = vmatpush.msra.mxu0 %v176
    %2596 = vmatpush.msra.mxu0 %v172
    %2597 = vmatpush.msra.mxu0 %v168
    %2598 = vmatpush.msra.mxu0 %v164
    %2599 = vmatpush.msra.mxu0 %v160
    %2600 = vmatmul.f32.gmra.mxu0 %v2229
    %v2601 = vpop.f32.mrf.mxu0
    %v2602 = vadd.f32 %v2582, %v2601
    %2603 = vdwg.mxu0
    %v2604 = vxor.u32 %v2482, 2147483648
    %v2605 = vxor.u32 %v2522, 2147483648
    %v2606 = vmul.f32 %v2604, 1.442695
    %v2607 = vpow.pop %v2606
    %v2608 = vmul.f32 %v2605, 1.442695
    %v2609 = vpow.pop %v2608
    %v2610 = vadd.f32 %v2607, 1.0
    %v2611 = vadd.f32 %v2609, 1.0
    %v2612 = vrcp.pop %v2610
    %v2613 = vmul.f32 %v2610, %v2612
    %v2614 = vsub.f32 1.0, %v2613
    %v2615 = vmul.f32 %v2612, %v2614
    %v2616 = vadd.f32 %v2612, %v2615
    %vm2617 = vweird.f32 %v2610
    %vm2618 = vweird.f32 %v2612
    %vm2619 = vmor %vm2617, %vm2618
    %v2620 = vsel %vm2619, %v2612, %v2616
    %v2621 = vand.u32 2147483647, %v2610
    %vm2622 = vcmp.eq.f32.partialorder %v2621, 8.507059e+37
    %v2623 = vand.u32 %v2610, 2147483648
    %v2624 = vor.u32 1.1754944e-38, %v2623
    %v2625 = vsel %vm2622, %v2624, %v2620
    %v2626 = vmul.f32 1.0, %v2625
    %v2627 = vrcp.pop %v2611
    %v2628 = vmul.f32 %v2611, %v2627
    %v2629 = vsub.f32 1.0, %v2628
    %v2630 = vmul.f32 %v2627, %v2629
    %v2631 = vadd.f32 %v2627, %v2630
    %vm2632 = vweird.f32 %v2611
    %vm2633 = vweird.f32 %v2627
    %vm2634 = vmor %vm2632, %vm2633
    %v2635 = vsel %vm2634, %v2627, %v2631
    %v2636 = vand.u32 2147483647, %v2611
    %vm2637 = vcmp.eq.f32.partialorder %v2636, 8.507059e+37
    %v2638 = vand.u32 %v2611, 2147483648
    %v2639 = vor.u32 1.1754944e-38, %v2638
    %v2640 = vsel %vm2637, %v2639, %v2635
    %v2641 = vmul.f32 1.0, %v2640
    %v2642 = vmul.f32 %v2626, %v2602
    %v2643 = vadd.f32 %v2562, %v2642
    %v2644 = vtanh.pop %v2643
    %v2645 = vsub.f32 1.0, %v2641
    %v2646 = vmul.f32 %v2645, %v2644
    %v2647 = vmul.f32 %v2641, %v2229
    %v2648 = vadd.f32 %v2646, %v2647
    %2649 = vmatpush.msra.mxu0 %v486
    %2650 = vmatpush.msra.mxu0 %v482
    %2651 = vmatpush.msra.mxu0 %v478
    %2652 = vmatpush.msra.mxu0 %v474
    %2653 = vmatpush.msra.mxu0 %v470
    %2654 = vmatpush.msra.mxu0 %v466
    %2655 = vmatpush.msra.mxu0 %v462
    %2656 = vmatpush.msra.mxu0 %v458
    %2657 = vmatpush.msra.mxu0 %v454
    %2658 = vmatpush.msra.mxu0 %v450
    %2659 = vmatpush.msra.mxu0 %v446
    %2660 = vmatpush.msra.mxu0 %v442
    %2661 = vmatpush.msra.mxu0 %v438
    %2662 = vmatpush.msra.mxu0 %v434
    %2663 = vmatpush.msra.mxu0 %v430
    %2664 = vmatpush.msra.mxu0 %v426
    %2665 = vmatmul.f32.gmra.mxu0 %v2648
    %v2666 = vpop.f32.mrf.mxu0
    %v2667 = vadd.f32 %v84, %v2666
    %2668 = vdwg.mxu0
    %2669 = vmatpush.msra.mxu0 %v550
    %2670 = vmatpush.msra.mxu0 %v546
    %2671 = vmatpush.msra.mxu0 %v542
    %2672 = vmatpush.msra.mxu0 %v538
    %2673 = vmatpush.msra.mxu0 %v534
    %2674 = vmatpush.msra.mxu0 %v530
    %2675 = vmatpush.msra.mxu0 %v526
    %2676 = vmatpush.msra.mxu0 %v522
    %2677 = vmatpush.msra.mxu0 %v518
    %2678 = vmatpush.msra.mxu0 %v514
    %2679 = vmatpush.msra.mxu0 %v510
    %2680 = vmatpush.msra.mxu0 %v506
    %2681 = vmatpush.msra.mxu0 %v502
    %2682 = vmatpush.msra.mxu0 %v498
    %2683 = vmatpush.msra.mxu0 %v494
    %2684 = vmatpush.msra.mxu0 %v490
    %2685 = vmatmul.f32.gmra.mxu0 %v2434
    %v2686 = vpop.f32.mrf.mxu0
    %v2687 = vadd.f32 %v2667, %v2686
    %2688 = vdwg.mxu0
    %2689 = vmatpush.msra.mxu0 %v487
    %2690 = vmatpush.msra.mxu0 %v483
    %2691 = vmatpush.msra.mxu0 %v479
    %2692 = vmatpush.msra.mxu0 %v475
    %2693 = vmatpush.msra.mxu0 %v471
    %2694 = vmatpush.msra.mxu0 %v467
    %2695 = vmatpush.msra.mxu0 %v463
    %2696 = vmatpush.msra.mxu0 %v459
    %2697 = vmatpush.msra.mxu0 %v455
    %2698 = vmatpush.msra.mxu0 %v451
    %2699 = vmatpush.msra.mxu0 %v447
    %2700 = vmatpush.msra.mxu0 %v443
    %2701 = vmatpush.msra.mxu0 %v439
    %2702 = vmatpush.msra.mxu0 %v435
    %2703 = vmatpush.msra.mxu0 %v431
    %2704 = vmatpush.msra.mxu0 %v427
    %2705 = vmatmul.f32.gmra.mxu0 %v2648
    %v2706 = vpop.f32.mrf.mxu0
    %v2707 = vadd.f32 %v85, %v2706
    %2708 = vdwg.mxu0
    %2709 = vmatpush.msra.mxu0 %v551
    %2710 = vmatpush.msra.mxu0 %v547
    %2711 = vmatpush.msra.mxu0 %v543
    %2712 = vmatpush.msra.mxu0 %v539
    %2713 = vmatpush.msra.mxu0 %v535
    %2714 = vmatpush.msra.mxu0 %v531
    %2715 = vmatpush.msra.mxu0 %v527
    %2716 = vmatpush.msra.mxu0 %v523
    %2717 = vmatpush.msra.mxu0 %v519
    %2718 = vmatpush.msra.mxu0 %v515
    %2719 = vmatpush.msra.mxu0 %v511
    %2720 = vmatpush.msra.mxu0 %v507
    %2721 = vmatpush.msra.mxu0 %v503
    %2722 = vmatpush.msra.mxu0 %v499
    %2723 = vmatpush.msra.mxu0 %v495
    %2724 = vmatpush.msra.mxu0 %v491
    %2725 = vmatmul.f32.gmra.mxu0 %v2434
    %v2726 = vpop.f32.mrf.mxu0
    %v2727 = vadd.f32 %v2707, %v2726
    %2728 = vdwg.mxu0
    %2729 = vmatpush.msra.mxu0 %v488
    %2730 = vmatpush.msra.mxu0 %v484
    %2731 = vmatpush.msra.mxu0 %v480
    %2732 = vmatpush.msra.mxu0 %v476
    %2733 = vmatpush.msra.mxu0 %v472
    %2734 = vmatpush.msra.mxu0 %v468
    %2735 = vmatpush.msra.mxu0 %v464
    %2736 = vmatpush.msra.mxu0 %v460
    %2737 = vmatpush.msra.mxu0 %v456
    %2738 = vmatpush.msra.mxu0 %v452
    %2739 = vmatpush.msra.mxu0 %v448
    %2740 = vmatpush.msra.mxu0 %v444
    %2741 = vmatpush.msra.mxu0 %v440
    %2742 = vmatpush.msra.mxu0 %v436
    %2743 = vmatpush.msra.mxu0 %v432
    %2744 = vmatpush.msra.mxu0 %v428
    %2745 = vmatmul.f32.gmra.mxu0 %v2648
    %v2746 = vpop.f32.mrf.mxu0
    %v2747 = vadd.f32 %v86, %v2746
    %2748 = vdwg.mxu0
    %2749 = vmatpush.msra.mxu0 %v552
    %2750 = vmatpush.msra.mxu0 %v548
    %2751 = vmatpush.msra.mxu0 %v544
    %2752 = vmatpush.msra.mxu0 %v540
    %2753 = vmatpush.msra.mxu0 %v536
    %2754 = vmatpush.msra.mxu0 %v532
    %2755 = vmatpush.msra.mxu0 %v528
    %2756 = vmatpush.msra.mxu0 %v524
    %2757 = vmatpush.msra.mxu0 %v520
    %2758 = vmatpush.msra.mxu0 %v516
    %2759 = vmatpush.msra.mxu0 %v512
    %2760 = vmatpush.msra.mxu0 %v508
    %2761 = vmatpush.msra.mxu0 %v504
    %2762 = vmatpush.msra.mxu0 %v500
    %2763 = vmatpush.msra.mxu0 %v496
    %2764 = vmatpush.msra.mxu0 %v492
    %2765 = vmatmul.f32.gmra.mxu0 %v2434
    %v2766 = vpop.f32.mrf.mxu0
    %v2767 = vadd.f32 %v2747, %v2766
    %2768 = vdwg.mxu0
    %2769 = vmatpush.msra.mxu0 %v489
    %2770 = vmatpush.msra.mxu0 %v485
    %2771 = vmatpush.msra.mxu0 %v481
    %2772 = vmatpush.msra.mxu0 %v477
    %2773 = vmatpush.msra.mxu0 %v473
    %2774 = vmatpush.msra.mxu0 %v469
    %2775 = vmatpush.msra.mxu0 %v465
    %2776 = vmatpush.msra.mxu0 %v461
    %2777 = vmatpush.msra.mxu0 %v457
    %2778 = vmatpush.msra.mxu0 %v453
    %2779 = vmatpush.msra.mxu0 %v449
    %2780 = vmatpush.msra.mxu0 %v445
    %2781 = vmatpush.msra.mxu0 %v441
    %2782 = vmatpush.msra.mxu0 %v437
    %2783 = vmatpush.msra.mxu0 %v433
    %2784 = vmatpush.msra.mxu0 %v429
    %2785 = vmatmul.f32.gmra.mxu0 %v2648
    %v2786 = vpop.f32.mrf.mxu0
    %v2787 = vadd.f32 %v87, %v2786
    %2788 = vdwg.mxu0
    %2789 = vmatpush.msra.mxu0 %v553
    %2790 = vmatpush.msra.mxu0 %v549
    %2791 = vmatpush.msra.mxu0 %v545
    %2792 = vmatpush.msra.mxu0 %v541
    %2793 = vmatpush.msra.mxu0 %v537
    %2794 = vmatpush.msra.mxu0 %v533
    %2795 = vmatpush.msra.mxu0 %v529
    %2796 = vmatpush.msra.mxu0 %v525
    %2797 = vmatpush.msra.mxu0 %v521
    %2798 = vmatpush.msra.mxu0 %v517
    %2799 = vmatpush.msra.mxu0 %v513
    %2800 = vmatpush.msra.mxu0 %v509
    %2801 = vmatpush.msra.mxu0 %v505
    %2802 = vmatpush.msra.mxu0 %v501
    %2803 = vmatpush.msra.mxu0 %v497
    %2804 = vmatpush.msra.mxu0 %v493
    %2805 = vmatmul.f32.gmra.mxu0 %v2434
    %v2806 = vpop.f32.mrf.mxu0
    %v2807 = vadd.f32 %v2787, %v2806
    %2808 = vdwg.mxu0
    %v2809 = vxor.u32 %v2687, 2147483648
    %v2810 = vxor.u32 %v2727, 2147483648
    %v2811 = vmul.f32 %v2809, 1.442695
    %v2812 = vpow.pop %v2811
    %v2813 = vmul.f32 %v2810, 1.442695
    %v2814 = vpow.pop %v2813
    %v2815 = vadd.f32 %v2812, 1.0
    %v2816 = vadd.f32 %v2814, 1.0
    %v2817 = vrcp.pop %v2815
    %v2818 = vmul.f32 %v2815, %v2817
    %v2819 = vsub.f32 1.0, %v2818
    %v2820 = vmul.f32 %v2817, %v2819
    %v2821 = vadd.f32 %v2817, %v2820
    %vm2822 = vweird.f32 %v2815
    %vm2823 = vweird.f32 %v2817
    %vm2824 = vmor %vm2822, %vm2823
    %v2825 = vsel %vm2824, %v2817, %v2821
    %v2826 = vand.u32 2147483647, %v2815
    %vm2827 = vcmp.eq.f32.partialorder %v2826, 8.507059e+37
    %v2828 = vand.u32 %v2815, 2147483648
    %v2829 = vor.u32 1.1754944e-38, %v2828
    %v2830 = vsel %vm2827, %v2829, %v2825
    %v2831 = vmul.f32 1.0, %v2830
    %v2832 = vrcp.pop %v2816
    %v2833 = vmul.f32 %v2816, %v2832
    %v2834 = vsub.f32 1.0, %v2833
    %v2835 = vmul.f32 %v2832, %v2834
    %v2836 = vadd.f32 %v2832, %v2835
    %vm2837 = vweird.f32 %v2816
    %vm2838 = vweird.f32 %v2832
    %vm2839 = vmor %vm2837, %vm2838
    %v2840 = vsel %vm2839, %v2832, %v2836
    %v2841 = vand.u32 2147483647, %v2816
    %vm2842 = vcmp.eq.f32.partialorder %v2841, 8.507059e+37
    %v2843 = vand.u32 %v2816, 2147483648
    %v2844 = vor.u32 1.1754944e-38, %v2843
    %v2845 = vsel %vm2842, %v2844, %v2840
    %v2846 = vmul.f32 1.0, %v2845
    %v2847 = vmul.f32 %v2831, %v2807
    %v2848 = vadd.f32 %v2767, %v2847
    %v2849 = vtanh.pop %v2848
    %v2850 = vsub.f32 1.0, %v2846
    %v2851 = vmul.f32 %v2850, %v2849
    %v2852 = vmul.f32 %v2846, %v2434
    %v2853 = vadd.f32 %v2851, %v2852
    %vm2854 = vcmp.eq.s32.totalorder %v71, 5
    %v2855 = vsel %vm2854, 1, 0
    %2856 = vset.pattern.permute.xlu0 0
    %2857 = vperm.xlu0 %2856, %v2855
    %v2858 = vpop.permute.xlu0 %2857
    %vm2859 = vcmp.eq.s32.totalorder %v2858, 1
    %v2860 = vsel %vm2859, %v2853, %v2441
    %s2861 = scalar_lea.vmem [#allocation2], 48
    %v2862 = vld [vmem:[%s2861] sm:$0xff]
    %2863 = vmatpush.msra.mxu0 %v153
    %2864 = vmatpush.msra.mxu0 %v149
    %2865 = vmatpush.msra.mxu0 %v145
    %2866 = vmatpush.msra.mxu0 %v141
    %2867 = vmatpush.msra.mxu0 %v137
    %2868 = vmatpush.msra.mxu0 %v133
    %2869 = vmatpush.msra.mxu0 %v129
    %2870 = vmatpush.msra.mxu0 %v125
    %2871 = vmatpush.msra.mxu0 %v121
    %2872 = vmatpush.msra.mxu0 %v117
    %2873 = vmatpush.msra.mxu0 %v113
    %2874 = vmatpush.msra.mxu0 %v109
    %2875 = vmatpush.msra.mxu0 %v105
    %2876 = vmatpush.msra.mxu0 %v101
    %2877 = vmatpush.msra.mxu0 %v97
    %2878 = vmatpush.msra.mxu0 %v93
    %2879 = vmatmul.f32.gmra.mxu0 %v2862
    %v2880 = vpop.f32.mrf.mxu0
    %v2881 = vadd.f32 %v74, %v2880
    %2882 = vdwg.mxu0
    %2883 = vmatpush.msra.mxu0 %v217
    %2884 = vmatpush.msra.mxu0 %v213
    %2885 = vmatpush.msra.mxu0 %v209
    %2886 = vmatpush.msra.mxu0 %v205
    %2887 = vmatpush.msra.mxu0 %v201
    %2888 = vmatpush.msra.mxu0 %v197
    %2889 = vmatpush.msra.mxu0 %v193
    %2890 = vmatpush.msra.mxu0 %v189
    %2891 = vmatpush.msra.mxu0 %v185
    %2892 = vmatpush.msra.mxu0 %v181
    %2893 = vmatpush.msra.mxu0 %v177
    %2894 = vmatpush.msra.mxu0 %v173
    %2895 = vmatpush.msra.mxu0 %v169
    %2896 = vmatpush.msra.mxu0 %v165
    %2897 = vmatpush.msra.mxu0 %v161
    %2898 = vmatpush.msra.mxu0 %v157
    %2899 = vmatmul.f32.gmra.mxu0 %v2648
    %v2900 = vpop.f32.mrf.mxu0
    %v2901 = vadd.f32 %v2881, %v2900
    %2902 = vdwg.mxu0
    %2903 = vmatpush.msra.mxu0 %v154
    %2904 = vmatpush.msra.mxu0 %v150
    %2905 = vmatpush.msra.mxu0 %v146
    %2906 = vmatpush.msra.mxu0 %v142
    %2907 = vmatpush.msra.mxu0 %v138
    %2908 = vmatpush.msra.mxu0 %v134
    %2909 = vmatpush.msra.mxu0 %v130
    %2910 = vmatpush.msra.mxu0 %v126
    %2911 = vmatpush.msra.mxu0 %v122
    %2912 = vmatpush.msra.mxu0 %v118
    %2913 = vmatpush.msra.mxu0 %v114
    %2914 = vmatpush.msra.mxu0 %v110
    %2915 = vmatpush.msra.mxu0 %v106
    %2916 = vmatpush.msra.mxu0 %v102
    %2917 = vmatpush.msra.mxu0 %v98
    %2918 = vmatpush.msra.mxu0 %v94
    %2919 = vmatmul.f32.gmra.mxu0 %v2862
    %v2920 = vpop.f32.mrf.mxu0
    %v2921 = vadd.f32 %v75, %v2920
    %2922 = vdwg.mxu0
    %2923 = vmatpush.msra.mxu0 %v218
    %2924 = vmatpush.msra.mxu0 %v214
    %2925 = vmatpush.msra.mxu0 %v210
    %2926 = vmatpush.msra.mxu0 %v206
    %2927 = vmatpush.msra.mxu0 %v202
    %2928 = vmatpush.msra.mxu0 %v198
    %2929 = vmatpush.msra.mxu0 %v194
    %2930 = vmatpush.msra.mxu0 %v190
    %2931 = vmatpush.msra.mxu0 %v186
    %2932 = vmatpush.msra.mxu0 %v182
    %2933 = vmatpush.msra.mxu0 %v178
    %2934 = vmatpush.msra.mxu0 %v174
    %2935 = vmatpush.msra.mxu0 %v170
    %2936 = vmatpush.msra.mxu0 %v166
    %2937 = vmatpush.msra.mxu0 %v162
    %2938 = vmatpush.msra.mxu0 %v158
    %2939 = vmatmul.f32.gmra.mxu0 %v2648
    %v2940 = vpop.f32.mrf.mxu0
    %v2941 = vadd.f32 %v2921, %v2940
    %2942 = vdwg.mxu0
    %2943 = vmatpush.msra.mxu0 %v155
    %2944 = vmatpush.msra.mxu0 %v151
    %2945 = vmatpush.msra.mxu0 %v147
    %2946 = vmatpush.msra.mxu0 %v143
    %2947 = vmatpush.msra.mxu0 %v139
    %2948 = vmatpush.msra.mxu0 %v135
    %2949 = vmatpush.msra.mxu0 %v131
    %2950 = vmatpush.msra.mxu0 %v127
    %2951 = vmatpush.msra.mxu0 %v123
    %2952 = vmatpush.msra.mxu0 %v119
    %2953 = vmatpush.msra.mxu0 %v115
    %2954 = vmatpush.msra.mxu0 %v111
    %2955 = vmatpush.msra.mxu0 %v107
    %2956 = vmatpush.msra.mxu0 %v103
    %2957 = vmatpush.msra.mxu0 %v99
    %2958 = vmatpush.msra.mxu0 %v95
    %2959 = vmatmul.f32.gmra.mxu0 %v2862
    %v2960 = vpop.f32.mrf.mxu0
    %v2961 = vadd.f32 %v76, %v2960
    %2962 = vdwg.mxu0
    %2963 = vmatpush.msra.mxu0 %v219
    %2964 = vmatpush.msra.mxu0 %v215
    %2965 = vmatpush.msra.mxu0 %v211
    %2966 = vmatpush.msra.mxu0 %v207
    %2967 = vmatpush.msra.mxu0 %v203
    %2968 = vmatpush.msra.mxu0 %v199
    %2969 = vmatpush.msra.mxu0 %v195
    %2970 = vmatpush.msra.mxu0 %v191
    %2971 = vmatpush.msra.mxu0 %v187
    %2972 = vmatpush.msra.mxu0 %v183
    %2973 = vmatpush.msra.mxu0 %v179
    %2974 = vmatpush.msra.mxu0 %v175
    %2975 = vmatpush.msra.mxu0 %v171
    %2976 = vmatpush.msra.mxu0 %v167
    %2977 = vmatpush.msra.mxu0 %v163
    %2978 = vmatpush.msra.mxu0 %v159
    %2979 = vmatmul.f32.gmra.mxu0 %v2648
    %v2980 = vpop.f32.mrf.mxu0
    %v2981 = vadd.f32 %v2961, %v2980
    %2982 = vdwg.mxu0
    %2983 = vmatpush.msra.mxu0 %v156
    %2984 = vmatpush.msra.mxu0 %v152
    %2985 = vmatpush.msra.mxu0 %v148
    %2986 = vmatpush.msra.mxu0 %v144
    %2987 = vmatpush.msra.mxu0 %v140
    %2988 = vmatpush.msra.mxu0 %v136
    %2989 = vmatpush.msra.mxu0 %v132
    %2990 = vmatpush.msra.mxu0 %v128
    %2991 = vmatpush.msra.mxu0 %v124
    %2992 = vmatpush.msra.mxu0 %v120
    %2993 = vmatpush.msra.mxu0 %v116
    %2994 = vmatpush.msra.mxu0 %v112
    %2995 = vmatpush.msra.mxu0 %v108
    %2996 = vmatpush.msra.mxu0 %v104
    %2997 = vmatpush.msra.mxu0 %v100
    %2998 = vmatpush.msra.mxu0 %v96
    %2999 = vmatmul.f32.gmra.mxu0 %v2862
    %v3000 = vpop.f32.mrf.mxu0
    %v3001 = vadd.f32 %v77, %v3000
    %3002 = vdwg.mxu0
    %3003 = vmatpush.msra.mxu0 %v220
    %3004 = vmatpush.msra.mxu0 %v216
    %3005 = vmatpush.msra.mxu0 %v212
    %3006 = vmatpush.msra.mxu0 %v208
    %3007 = vmatpush.msra.mxu0 %v204
    %3008 = vmatpush.msra.mxu0 %v200
    %3009 = vmatpush.msra.mxu0 %v196
    %3010 = vmatpush.msra.mxu0 %v192
    %3011 = vmatpush.msra.mxu0 %v188
    %3012 = vmatpush.msra.mxu0 %v184
    %3013 = vmatpush.msra.mxu0 %v180
    %3014 = vmatpush.msra.mxu0 %v176
    %3015 = vmatpush.msra.mxu0 %v172
    %3016 = vmatpush.msra.mxu0 %v168
    %3017 = vmatpush.msra.mxu0 %v164
    %3018 = vmatpush.msra.mxu0 %v160
    %3019 = vmatmul.f32.gmra.mxu0 %v2648
    %v3020 = vpop.f32.mrf.mxu0
    %v3021 = vadd.f32 %v3001, %v3020
    %3022 = vdwg.mxu0
    %v3023 = vxor.u32 %v2901, 2147483648
    %v3024 = vxor.u32 %v2941, 2147483648
    %v3025 = vmul.f32 %v3023, 1.442695
    %v3026 = vpow.pop %v3025
    %v3027 = vmul.f32 %v3024, 1.442695
    %v3028 = vpow.pop %v3027
    %v3029 = vadd.f32 %v3026, 1.0
    %v3030 = vadd.f32 %v3028, 1.0
    %v3031 = vrcp.pop %v3029
    %v3032 = vmul.f32 %v3029, %v3031
    %v3033 = vsub.f32 1.0, %v3032
    %v3034 = vmul.f32 %v3031, %v3033
    %v3035 = vadd.f32 %v3031, %v3034
    %vm3036 = vweird.f32 %v3029
    %vm3037 = vweird.f32 %v3031
    %vm3038 = vmor %vm3036, %vm3037
    %v3039 = vsel %vm3038, %v3031, %v3035
    %v3040 = vand.u32 2147483647, %v3029
    %vm3041 = vcmp.eq.f32.partialorder %v3040, 8.507059e+37
    %v3042 = vand.u32 %v3029, 2147483648
    %v3043 = vor.u32 1.1754944e-38, %v3042
    %v3044 = vsel %vm3041, %v3043, %v3039
    %v3045 = vmul.f32 1.0, %v3044
    %v3046 = vrcp.pop %v3030
    %v3047 = vmul.f32 %v3030, %v3046
    %v3048 = vsub.f32 1.0, %v3047
    %v3049 = vmul.f32 %v3046, %v3048
    %v3050 = vadd.f32 %v3046, %v3049
    %vm3051 = vweird.f32 %v3030
    %vm3052 = vweird.f32 %v3046
    %vm3053 = vmor %vm3051, %vm3052
    %v3054 = vsel %vm3053, %v3046, %v3050
    %v3055 = vand.u32 2147483647, %v3030
    %vm3056 = vcmp.eq.f32.partialorder %v3055, 8.507059e+37
    %v3057 = vand.u32 %v3030, 2147483648
    %v3058 = vor.u32 1.1754944e-38, %v3057
    %v3059 = vsel %vm3056, %v3058, %v3054
    %v3060 = vmul.f32 1.0, %v3059
    %v3061 = vmul.f32 %v3045, %v3021
    %v3062 = vadd.f32 %v2981, %v3061
    %v3063 = vtanh.pop %v3062
    %v3064 = vsub.f32 1.0, %v3060
    %v3065 = vmul.f32 %v3064, %v3063
    %v3066 = vmul.f32 %v3060, %v2648
    %v3067 = vadd.f32 %v3065, %v3066
    %3068 = vmatpush.msra.mxu0 %v486
    %3069 = vmatpush.msra.mxu0 %v482
    %3070 = vmatpush.msra.mxu0 %v478
    %3071 = vmatpush.msra.mxu0 %v474
    %3072 = vmatpush.msra.mxu0 %v470
    %3073 = vmatpush.msra.mxu0 %v466
    %3074 = vmatpush.msra.mxu0 %v462
    %3075 = vmatpush.msra.mxu0 %v458
    %3076 = vmatpush.msra.mxu0 %v454
    %3077 = vmatpush.msra.mxu0 %v450
    %3078 = vmatpush.msra.mxu0 %v446
    %3079 = vmatpush.msra.mxu0 %v442
    %3080 = vmatpush.msra.mxu0 %v438
    %3081 = vmatpush.msra.mxu0 %v434
    %3082 = vmatpush.msra.mxu0 %v430
    %3083 = vmatpush.msra.mxu0 %v426
    %3084 = vmatmul.f32.gmra.mxu0 %v3067
    %v3085 = vpop.f32.mrf.mxu0
    %v3086 = vadd.f32 %v84, %v3085
    %3087 = vdwg.mxu0
    %3088 = vmatpush.msra.mxu0 %v550
    %3089 = vmatpush.msra.mxu0 %v546
    %3090 = vmatpush.msra.mxu0 %v542
    %3091 = vmatpush.msra.mxu0 %v538
    %3092 = vmatpush.msra.mxu0 %v534
    %3093 = vmatpush.msra.mxu0 %v530
    %3094 = vmatpush.msra.mxu0 %v526
    %3095 = vmatpush.msra.mxu0 %v522
    %3096 = vmatpush.msra.mxu0 %v518
    %3097 = vmatpush.msra.mxu0 %v514
    %3098 = vmatpush.msra.mxu0 %v510
    %3099 = vmatpush.msra.mxu0 %v506
    %3100 = vmatpush.msra.mxu0 %v502
    %3101 = vmatpush.msra.mxu0 %v498
    %3102 = vmatpush.msra.mxu0 %v494
    %3103 = vmatpush.msra.mxu0 %v490
    %3104 = vmatmul.f32.gmra.mxu0 %v2853
    %v3105 = vpop.f32.mrf.mxu0
    %v3106 = vadd.f32 %v3086, %v3105
    %3107 = vdwg.mxu0
    %3108 = vmatpush.msra.mxu0 %v487
    %3109 = vmatpush.msra.mxu0 %v483
    %3110 = vmatpush.msra.mxu0 %v479
    %3111 = vmatpush.msra.mxu0 %v475
    %3112 = vmatpush.msra.mxu0 %v471
    %3113 = vmatpush.msra.mxu0 %v467
    %3114 = vmatpush.msra.mxu0 %v463
    %3115 = vmatpush.msra.mxu0 %v459
    %3116 = vmatpush.msra.mxu0 %v455
    %3117 = vmatpush.msra.mxu0 %v451
    %3118 = vmatpush.msra.mxu0 %v447
    %3119 = vmatpush.msra.mxu0 %v443
    %3120 = vmatpush.msra.mxu0 %v439
    %3121 = vmatpush.msra.mxu0 %v435
    %3122 = vmatpush.msra.mxu0 %v431
    %3123 = vmatpush.msra.mxu0 %v427
    %3124 = vmatmul.f32.gmra.mxu0 %v3067
    %v3125 = vpop.f32.mrf.mxu0
    %v3126 = vadd.f32 %v85, %v3125
    %3127 = vdwg.mxu0
    %3128 = vmatpush.msra.mxu0 %v551
    %3129 = vmatpush.msra.mxu0 %v547
    %3130 = vmatpush.msra.mxu0 %v543
    %3131 = vmatpush.msra.mxu0 %v539
    %3132 = vmatpush.msra.mxu0 %v535
    %3133 = vmatpush.msra.mxu0 %v531
    %3134 = vmatpush.msra.mxu0 %v527
    %3135 = vmatpush.msra.mxu0 %v523
    %3136 = vmatpush.msra.mxu0 %v519
    %3137 = vmatpush.msra.mxu0 %v515
    %3138 = vmatpush.msra.mxu0 %v511
    %3139 = vmatpush.msra.mxu0 %v507
    %3140 = vmatpush.msra.mxu0 %v503
    %3141 = vmatpush.msra.mxu0 %v499
    %3142 = vmatpush.msra.mxu0 %v495
    %3143 = vmatpush.msra.mxu0 %v491
    %3144 = vmatmul.f32.gmra.mxu0 %v2853
    %v3145 = vpop.f32.mrf.mxu0
    %v3146 = vadd.f32 %v3126, %v3145
    %3147 = vdwg.mxu0
    %3148 = vmatpush.msra.mxu0 %v488
    %3149 = vmatpush.msra.mxu0 %v484
    %3150 = vmatpush.msra.mxu0 %v480
    %3151 = vmatpush.msra.mxu0 %v476
    %3152 = vmatpush.msra.mxu0 %v472
    %3153 = vmatpush.msra.mxu0 %v468
    %3154 = vmatpush.msra.mxu0 %v464
    %3155 = vmatpush.msra.mxu0 %v460
    %3156 = vmatpush.msra.mxu0 %v456
    %3157 = vmatpush.msra.mxu0 %v452
    %3158 = vmatpush.msra.mxu0 %v448
    %3159 = vmatpush.msra.mxu0 %v444
    %3160 = vmatpush.msra.mxu0 %v440
    %3161 = vmatpush.msra.mxu0 %v436
    %3162 = vmatpush.msra.mxu0 %v432
    %3163 = vmatpush.msra.mxu0 %v428
    %3164 = vmatmul.f32.gmra.mxu0 %v3067
    %v3165 = vpop.f32.mrf.mxu0
    %v3166 = vadd.f32 %v86, %v3165
    %3167 = vdwg.mxu0
    %3168 = vmatpush.msra.mxu0 %v552
    %3169 = vmatpush.msra.mxu0 %v548
    %3170 = vmatpush.msra.mxu0 %v544
    %3171 = vmatpush.msra.mxu0 %v540
    %3172 = vmatpush.msra.mxu0 %v536
    %3173 = vmatpush.msra.mxu0 %v532
    %3174 = vmatpush.msra.mxu0 %v528
    %3175 = vmatpush.msra.mxu0 %v524
    %3176 = vmatpush.msra.mxu0 %v520
    %3177 = vmatpush.msra.mxu0 %v516
    %3178 = vmatpush.msra.mxu0 %v512
    %3179 = vmatpush.msra.mxu0 %v508
    %3180 = vmatpush.msra.mxu0 %v504
    %3181 = vmatpush.msra.mxu0 %v500
    %3182 = vmatpush.msra.mxu0 %v496
    %3183 = vmatpush.msra.mxu0 %v492
    %3184 = vmatmul.f32.gmra.mxu0 %v2853
    %v3185 = vpop.f32.mrf.mxu0
    %v3186 = vadd.f32 %v3166, %v3185
    %3187 = vdwg.mxu0
    %3188 = vmatpush.msra.mxu0 %v489
    %3189 = vmatpush.msra.mxu0 %v485
    %3190 = vmatpush.msra.mxu0 %v481
    %3191 = vmatpush.msra.mxu0 %v477
    %3192 = vmatpush.msra.mxu0 %v473
    %3193 = vmatpush.msra.mxu0 %v469
    %3194 = vmatpush.msra.mxu0 %v465
    %3195 = vmatpush.msra.mxu0 %v461
    %3196 = vmatpush.msra.mxu0 %v457
    %3197 = vmatpush.msra.mxu0 %v453
    %3198 = vmatpush.msra.mxu0 %v449
    %3199 = vmatpush.msra.mxu0 %v445
    %3200 = vmatpush.msra.mxu0 %v441
    %3201 = vmatpush.msra.mxu0 %v437
    %3202 = vmatpush.msra.mxu0 %v433
    %3203 = vmatpush.msra.mxu0 %v429
    %3204 = vmatmul.f32.gmra.mxu0 %v3067
    %v3205 = vpop.f32.mrf.mxu0
    %v3206 = vadd.f32 %v87, %v3205
    %3207 = vdwg.mxu0
    %3208 = vmatpush.msra.mxu0 %v553
    %3209 = vmatpush.msra.mxu0 %v549
    %3210 = vmatpush.msra.mxu0 %v545
    %3211 = vmatpush.msra.mxu0 %v541
    %3212 = vmatpush.msra.mxu0 %v537
    %3213 = vmatpush.msra.mxu0 %v533
    %3214 = vmatpush.msra.mxu0 %v529
    %3215 = vmatpush.msra.mxu0 %v525
    %3216 = vmatpush.msra.mxu0 %v521
    %3217 = vmatpush.msra.mxu0 %v517
    %3218 = vmatpush.msra.mxu0 %v513
    %3219 = vmatpush.msra.mxu0 %v509
    %3220 = vmatpush.msra.mxu0 %v505
    %3221 = vmatpush.msra.mxu0 %v501
    %3222 = vmatpush.msra.mxu0 %v497
    %3223 = vmatpush.msra.mxu0 %v493
    %3224 = vmatmul.f32.gmra.mxu0 %v2853
    %v3225 = vpop.f32.mrf.mxu0
    %v3226 = vadd.f32 %v3206, %v3225
    %3227 = vdwg.mxu0
    %v3228 = vxor.u32 %v3106, 2147483648
    %v3229 = vxor.u32 %v3146, 2147483648
    %v3230 = vmul.f32 %v3228, 1.442695
    %v3231 = vpow.pop %v3230
    %v3232 = vmul.f32 %v3229, 1.442695
    %v3233 = vpow.pop %v3232
    %v3234 = vadd.f32 %v3231, 1.0
    %v3235 = vadd.f32 %v3233, 1.0
    %v3236 = vrcp.pop %v3234
    %v3237 = vmul.f32 %v3234, %v3236
    %v3238 = vsub.f32 1.0, %v3237
    %v3239 = vmul.f32 %v3236, %v3238
    %v3240 = vadd.f32 %v3236, %v3239
    %vm3241 = vweird.f32 %v3234
    %vm3242 = vweird.f32 %v3236
    %vm3243 = vmor %vm3241, %vm3242
    %v3244 = vsel %vm3243, %v3236, %v3240
    %v3245 = vand.u32 2147483647, %v3234
    %vm3246 = vcmp.eq.f32.partialorder %v3245, 8.507059e+37
    %v3247 = vand.u32 %v3234, 2147483648
    %v3248 = vor.u32 1.1754944e-38, %v3247
    %v3249 = vsel %vm3246, %v3248, %v3244
    %v3250 = vmul.f32 1.0, %v3249
    %v3251 = vrcp.pop %v3235
    %v3252 = vmul.f32 %v3235, %v3251
    %v3253 = vsub.f32 1.0, %v3252
    %v3254 = vmul.f32 %v3251, %v3253
    %v3255 = vadd.f32 %v3251, %v3254
    %vm3256 = vweird.f32 %v3235
    %vm3257 = vweird.f32 %v3251
    %vm3258 = vmor %vm3256, %vm3257
    %v3259 = vsel %vm3258, %v3251, %v3255
    %v3260 = vand.u32 2147483647, %v3235
    %vm3261 = vcmp.eq.f32.partialorder %v3260, 8.507059e+37
    %v3262 = vand.u32 %v3235, 2147483648
    %v3263 = vor.u32 1.1754944e-38, %v3262
    %v3264 = vsel %vm3261, %v3263, %v3259
    %v3265 = vmul.f32 1.0, %v3264
    %v3266 = vmul.f32 %v3250, %v3226
    %v3267 = vadd.f32 %v3186, %v3266
    %v3268 = vtanh.pop %v3267
    %v3269 = vsub.f32 1.0, %v3265
    %v3270 = vmul.f32 %v3269, %v3268
    %v3271 = vmul.f32 %v3265, %v2853
    %v3272 = vadd.f32 %v3270, %v3271
    %vm3273 = vcmp.eq.s32.totalorder %v71, 6
    %v3274 = vsel %vm3273, 1, 0
    %3275 = vset.pattern.permute.xlu0 0
    %3276 = vperm.xlu0 %3275, %v3274
    %v3277 = vpop.permute.xlu0 %3276
    %vm3278 = vcmp.eq.s32.totalorder %v3277, 1
    %v3279 = vsel %vm3278, %v3272, %v2860
    %s3280 = scalar_lea.vmem [#allocation2], 56
    %v3281 = vld [vmem:[%s3280] sm:$0xff]
    %3282 = vmatpush.msra.mxu0 %v153
    %3283 = vmatpush.msra.mxu0 %v149
    %3284 = vmatpush.msra.mxu0 %v145
    %3285 = vmatpush.msra.mxu0 %v141
    %3286 = vmatpush.msra.mxu0 %v137
    %3287 = vmatpush.msra.mxu0 %v133
    %3288 = vmatpush.msra.mxu0 %v129
    %3289 = vmatpush.msra.mxu0 %v125
    %3290 = vmatpush.msra.mxu0 %v121
    %3291 = vmatpush.msra.mxu0 %v117
    %3292 = vmatpush.msra.mxu0 %v113
    %3293 = vmatpush.msra.mxu0 %v109
    %3294 = vmatpush.msra.mxu0 %v105
    %3295 = vmatpush.msra.mxu0 %v101
    %3296 = vmatpush.msra.mxu0 %v97
    %3297 = vmatpush.msra.mxu0 %v93
    %3298 = vmatmul.f32.gmra.mxu0 %v3281
    %v3299 = vpop.f32.mrf.mxu0
    %v3300 = vadd.f32 %v74, %v3299
    %3301 = vdwg.mxu0
    %3302 = vmatpush.msra.mxu0 %v217
    %3303 = vmatpush.msra.mxu0 %v213
    %3304 = vmatpush.msra.mxu0 %v209
    %3305 = vmatpush.msra.mxu0 %v205
    %3306 = vmatpush.msra.mxu0 %v201
    %3307 = vmatpush.msra.mxu0 %v197
    %3308 = vmatpush.msra.mxu0 %v193
    %3309 = vmatpush.msra.mxu0 %v189
    %3310 = vmatpush.msra.mxu0 %v185
    %3311 = vmatpush.msra.mxu0 %v181
    %3312 = vmatpush.msra.mxu0 %v177
    %3313 = vmatpush.msra.mxu0 %v173
    %3314 = vmatpush.msra.mxu0 %v169
    %3315 = vmatpush.msra.mxu0 %v165
    %3316 = vmatpush.msra.mxu0 %v161
    %3317 = vmatpush.msra.mxu0 %v157
    %3318 = vmatmul.f32.gmra.mxu0 %v3067
    %v3319 = vpop.f32.mrf.mxu0
    %v3320 = vadd.f32 %v3300, %v3319
    %3321 = vdwg.mxu0
    %3322 = vmatpush.msra.mxu0 %v154
    %3323 = vmatpush.msra.mxu0 %v150
    %3324 = vmatpush.msra.mxu0 %v146
    %3325 = vmatpush.msra.mxu0 %v142
    %3326 = vmatpush.msra.mxu0 %v138
    %3327 = vmatpush.msra.mxu0 %v134
    %3328 = vmatpush.msra.mxu0 %v130
    %3329 = vmatpush.msra.mxu0 %v126
    %3330 = vmatpush.msra.mxu0 %v122
    %3331 = vmatpush.msra.mxu0 %v118
    %3332 = vmatpush.msra.mxu0 %v114
    %3333 = vmatpush.msra.mxu0 %v110
    %3334 = vmatpush.msra.mxu0 %v106
    %3335 = vmatpush.msra.mxu0 %v102
    %3336 = vmatpush.msra.mxu0 %v98
    %3337 = vmatpush.msra.mxu0 %v94
    %3338 = vmatmul.f32.gmra.mxu0 %v3281
    %v3339 = vpop.f32.mrf.mxu0
    %v3340 = vadd.f32 %v75, %v3339
    %3341 = vdwg.mxu0
    %3342 = vmatpush.msra.mxu0 %v218
    %3343 = vmatpush.msra.mxu0 %v214
    %3344 = vmatpush.msra.mxu0 %v210
    %3345 = vmatpush.msra.mxu0 %v206
    %3346 = vmatpush.msra.mxu0 %v202
    %3347 = vmatpush.msra.mxu0 %v198
    %3348 = vmatpush.msra.mxu0 %v194
    %3349 = vmatpush.msra.mxu0 %v190
    %3350 = vmatpush.msra.mxu0 %v186
    %3351 = vmatpush.msra.mxu0 %v182
    %3352 = vmatpush.msra.mxu0 %v178
    %3353 = vmatpush.msra.mxu0 %v174
    %3354 = vmatpush.msra.mxu0 %v170
    %3355 = vmatpush.msra.mxu0 %v166
    %3356 = vmatpush.msra.mxu0 %v162
    %3357 = vmatpush.msra.mxu0 %v158
    %3358 = vmatmul.f32.gmra.mxu0 %v3067
    %v3359 = vpop.f32.mrf.mxu0
    %v3360 = vadd.f32 %v3340, %v3359
    %3361 = vdwg.mxu0
    %3362 = vmatpush.msra.mxu0 %v155
    %3363 = vmatpush.msra.mxu0 %v151
    %3364 = vmatpush.msra.mxu0 %v147
    %3365 = vmatpush.msra.mxu0 %v143
    %3366 = vmatpush.msra.mxu0 %v139
    %3367 = vmatpush.msra.mxu0 %v135
    %3368 = vmatpush.msra.mxu0 %v131
    %3369 = vmatpush.msra.mxu0 %v127
    %3370 = vmatpush.msra.mxu0 %v123
    %3371 = vmatpush.msra.mxu0 %v119
    %3372 = vmatpush.msra.mxu0 %v115
    %3373 = vmatpush.msra.mxu0 %v111
    %3374 = vmatpush.msra.mxu0 %v107
    %3375 = vmatpush.msra.mxu0 %v103
    %3376 = vmatpush.msra.mxu0 %v99
    %3377 = vmatpush.msra.mxu0 %v95
    %3378 = vmatmul.f32.gmra.mxu0 %v3281
    %v3379 = vpop.f32.mrf.mxu0
    %v3380 = vadd.f32 %v76, %v3379
    %3381 = vdwg.mxu0
    %3382 = vmatpush.msra.mxu0 %v219
    %3383 = vmatpush.msra.mxu0 %v215
    %3384 = vmatpush.msra.mxu0 %v211
    %3385 = vmatpush.msra.mxu0 %v207
    %3386 = vmatpush.msra.mxu0 %v203
    %3387 = vmatpush.msra.mxu0 %v199
    %3388 = vmatpush.msra.mxu0 %v195
    %3389 = vmatpush.msra.mxu0 %v191
    %3390 = vmatpush.msra.mxu0 %v187
    %3391 = vmatpush.msra.mxu0 %v183
    %3392 = vmatpush.msra.mxu0 %v179
    %3393 = vmatpush.msra.mxu0 %v175
    %3394 = vmatpush.msra.mxu0 %v171
    %3395 = vmatpush.msra.mxu0 %v167
    %3396 = vmatpush.msra.mxu0 %v163
    %3397 = vmatpush.msra.mxu0 %v159
    %3398 = vmatmul.f32.gmra.mxu0 %v3067
    %v3399 = vpop.f32.mrf.mxu0
    %v3400 = vadd.f32 %v3380, %v3399
    %3401 = vdwg.mxu0
    %3402 = vmatpush.msra.mxu0 %v156
    %3403 = vmatpush.msra.mxu0 %v152
    %3404 = vmatpush.msra.mxu0 %v148
    %3405 = vmatpush.msra.mxu0 %v144
    %3406 = vmatpush.msra.mxu0 %v140
    %3407 = vmatpush.msra.mxu0 %v136
    %3408 = vmatpush.msra.mxu0 %v132
    %3409 = vmatpush.msra.mxu0 %v128
    %3410 = vmatpush.msra.mxu0 %v124
    %3411 = vmatpush.msra.mxu0 %v120
    %3412 = vmatpush.msra.mxu0 %v116
    %3413 = vmatpush.msra.mxu0 %v112
    %3414 = vmatpush.msra.mxu0 %v108
    %3415 = vmatpush.msra.mxu0 %v104
    %3416 = vmatpush.msra.mxu0 %v100
    %3417 = vmatpush.msra.mxu0 %v96
    %3418 = vmatmul.f32.gmra.mxu0 %v3281
    %v3419 = vpop.f32.mrf.mxu0
    %v3420 = vadd.f32 %v77, %v3419
    %3421 = vdwg.mxu0
    %3422 = vmatpush.msra.mxu0 %v220
    %3423 = vmatpush.msra.mxu0 %v216
    %3424 = vmatpush.msra.mxu0 %v212
    %3425 = vmatpush.msra.mxu0 %v208
    %3426 = vmatpush.msra.mxu0 %v204
    %3427 = vmatpush.msra.mxu0 %v200
    %3428 = vmatpush.msra.mxu0 %v196
    %3429 = vmatpush.msra.mxu0 %v192
    %3430 = vmatpush.msra.mxu0 %v188
    %3431 = vmatpush.msra.mxu0 %v184
    %3432 = vmatpush.msra.mxu0 %v180
    %3433 = vmatpush.msra.mxu0 %v176
    %3434 = vmatpush.msra.mxu0 %v172
    %3435 = vmatpush.msra.mxu0 %v168
    %3436 = vmatpush.msra.mxu0 %v164
    %3437 = vmatpush.msra.mxu0 %v160
    %3438 = vmatmul.f32.gmra.mxu0 %v3067
    %v3439 = vpop.f32.mrf.mxu0
    %v3440 = vadd.f32 %v3420, %v3439
    %3441 = vdwg.mxu0
    %v3442 = vxor.u32 %v3320, 2147483648
    %v3443 = vxor.u32 %v3360, 2147483648
    %v3444 = vmul.f32 %v3442, 1.442695
    %v3445 = vpow.pop %v3444
    %v3446 = vmul.f32 %v3443, 1.442695
    %v3447 = vpow.pop %v3446
    %v3448 = vadd.f32 %v3445, 1.0
    %v3449 = vadd.f32 %v3447, 1.0
    %v3450 = vrcp.pop %v3448
    %v3451 = vmul.f32 %v3448, %v3450
    %v3452 = vsub.f32 1.0, %v3451
    %v3453 = vmul.f32 %v3450, %v3452
    %v3454 = vadd.f32 %v3450, %v3453
    %vm3455 = vweird.f32 %v3448
    %vm3456 = vweird.f32 %v3450
    %vm3457 = vmor %vm3455, %vm3456
    %v3458 = vsel %vm3457, %v3450, %v3454
    %v3459 = vand.u32 2147483647, %v3448
    %vm3460 = vcmp.eq.f32.partialorder %v3459, 8.507059e+37
    %v3461 = vand.u32 %v3448, 2147483648
    %v3462 = vor.u32 1.1754944e-38, %v3461
    %v3463 = vsel %vm3460, %v3462, %v3458
    %v3464 = vmul.f32 1.0, %v3463
    %v3465 = vrcp.pop %v3449
    %v3466 = vmul.f32 %v3449, %v3465
    %v3467 = vsub.f32 1.0, %v3466
    %v3468 = vmul.f32 %v3465, %v3467
    %v3469 = vadd.f32 %v3465, %v3468
    %vm3470 = vweird.f32 %v3449
    %vm3471 = vweird.f32 %v3465
    %vm3472 = vmor %vm3470, %vm3471
    %v3473 = vsel %vm3472, %v3465, %v3469
    %v3474 = vand.u32 2147483647, %v3449
    %vm3475 = vcmp.eq.f32.partialorder %v3474, 8.507059e+37
    %v3476 = vand.u32 %v3449, 2147483648
    %v3477 = vor.u32 1.1754944e-38, %v3476
    %v3478 = vsel %vm3475, %v3477, %v3473
    %v3479 = vmul.f32 1.0, %v3478
    %v3480 = vmul.f32 %v3464, %v3440
    %v3481 = vadd.f32 %v3400, %v3480
    %v3482 = vtanh.pop %v3481
    %v3483 = vsub.f32 1.0, %v3479
    %v3484 = vmul.f32 %v3483, %v3482
    %v3485 = vmul.f32 %v3479, %v3067
    %v3486 = vadd.f32 %v3484, %v3485
    %3487 = vmatpush.msra.mxu0 %v486
    %3488 = vmatpush.msra.mxu0 %v482
    %3489 = vmatpush.msra.mxu0 %v478
    %3490 = vmatpush.msra.mxu0 %v474
    %3491 = vmatpush.msra.mxu0 %v470
    %3492 = vmatpush.msra.mxu0 %v466
    %3493 = vmatpush.msra.mxu0 %v462
    %3494 = vmatpush.msra.mxu0 %v458
    %3495 = vmatpush.msra.mxu0 %v454
    %3496 = vmatpush.msra.mxu0 %v450
    %3497 = vmatpush.msra.mxu0 %v446
    %3498 = vmatpush.msra.mxu0 %v442
    %3499 = vmatpush.msra.mxu0 %v438
    %3500 = vmatpush.msra.mxu0 %v434
    %3501 = vmatpush.msra.mxu0 %v430
    %3502 = vmatpush.msra.mxu0 %v426
    %3503 = vmatmul.f32.gmra.mxu0 %v3486
    %v3504 = vpop.f32.mrf.mxu0
    %v3505 = vadd.f32 %v84, %v3504
    %3506 = vdwg.mxu0
    %3507 = vmatpush.msra.mxu0 %v550
    %3508 = vmatpush.msra.mxu0 %v546
    %3509 = vmatpush.msra.mxu0 %v542
    %3510 = vmatpush.msra.mxu0 %v538
    %3511 = vmatpush.msra.mxu0 %v534
    %3512 = vmatpush.msra.mxu0 %v530
    %3513 = vmatpush.msra.mxu0 %v526
    %3514 = vmatpush.msra.mxu0 %v522
    %3515 = vmatpush.msra.mxu0 %v518
    %3516 = vmatpush.msra.mxu0 %v514
    %3517 = vmatpush.msra.mxu0 %v510
    %3518 = vmatpush.msra.mxu0 %v506
    %3519 = vmatpush.msra.mxu0 %v502
    %3520 = vmatpush.msra.mxu0 %v498
    %3521 = vmatpush.msra.mxu0 %v494
    %3522 = vmatpush.msra.mxu0 %v490
    %3523 = vmatmul.f32.gmra.mxu0 %v3272
    %v3524 = vpop.f32.mrf.mxu0
    %v3525 = vadd.f32 %v3505, %v3524
    %3526 = vdwg.mxu0
    %3527 = vmatpush.msra.mxu0 %v487
    %3528 = vmatpush.msra.mxu0 %v483
    %3529 = vmatpush.msra.mxu0 %v479
    %3530 = vmatpush.msra.mxu0 %v475
    %3531 = vmatpush.msra.mxu0 %v471
    %3532 = vmatpush.msra.mxu0 %v467
    %3533 = vmatpush.msra.mxu0 %v463
    %3534 = vmatpush.msra.mxu0 %v459
    %3535 = vmatpush.msra.mxu0 %v455
    %3536 = vmatpush.msra.mxu0 %v451
    %3537 = vmatpush.msra.mxu0 %v447
    %3538 = vmatpush.msra.mxu0 %v443
    %3539 = vmatpush.msra.mxu0 %v439
    %3540 = vmatpush.msra.mxu0 %v435
    %3541 = vmatpush.msra.mxu0 %v431
    %3542 = vmatpush.msra.mxu0 %v427
    %3543 = vmatmul.f32.gmra.mxu0 %v3486
    %v3544 = vpop.f32.mrf.mxu0
    %v3545 = vadd.f32 %v85, %v3544
    %3546 = vdwg.mxu0
    %3547 = vmatpush.msra.mxu0 %v551
    %3548 = vmatpush.msra.mxu0 %v547
    %3549 = vmatpush.msra.mxu0 %v543
    %3550 = vmatpush.msra.mxu0 %v539
    %3551 = vmatpush.msra.mxu0 %v535
    %3552 = vmatpush.msra.mxu0 %v531
    %3553 = vmatpush.msra.mxu0 %v527
    %3554 = vmatpush.msra.mxu0 %v523
    %3555 = vmatpush.msra.mxu0 %v519
    %3556 = vmatpush.msra.mxu0 %v515
    %3557 = vmatpush.msra.mxu0 %v511
    %3558 = vmatpush.msra.mxu0 %v507
    %3559 = vmatpush.msra.mxu0 %v503
    %3560 = vmatpush.msra.mxu0 %v499
    %3561 = vmatpush.msra.mxu0 %v495
    %3562 = vmatpush.msra.mxu0 %v491
    %3563 = vmatmul.f32.gmra.mxu0 %v3272
    %v3564 = vpop.f32.mrf.mxu0
    %v3565 = vadd.f32 %v3545, %v3564
    %3566 = vdwg.mxu0
    %3567 = vmatpush.msra.mxu0 %v488
    %3568 = vmatpush.msra.mxu0 %v484
    %3569 = vmatpush.msra.mxu0 %v480
    %3570 = vmatpush.msra.mxu0 %v476
    %3571 = vmatpush.msra.mxu0 %v472
    %3572 = vmatpush.msra.mxu0 %v468
    %3573 = vmatpush.msra.mxu0 %v464
    %3574 = vmatpush.msra.mxu0 %v460
    %3575 = vmatpush.msra.mxu0 %v456
    %3576 = vmatpush.msra.mxu0 %v452
    %3577 = vmatpush.msra.mxu0 %v448
    %3578 = vmatpush.msra.mxu0 %v444
    %3579 = vmatpush.msra.mxu0 %v440
    %3580 = vmatpush.msra.mxu0 %v436
    %3581 = vmatpush.msra.mxu0 %v432
    %3582 = vmatpush.msra.mxu0 %v428
    %3583 = vmatmul.f32.gmra.mxu0 %v3486
    %v3584 = vpop.f32.mrf.mxu0
    %v3585 = vadd.f32 %v86, %v3584
    %3586 = vdwg.mxu0
    %3587 = vmatpush.msra.mxu0 %v552
    %3588 = vmatpush.msra.mxu0 %v548
    %3589 = vmatpush.msra.mxu0 %v544
    %3590 = vmatpush.msra.mxu0 %v540
    %3591 = vmatpush.msra.mxu0 %v536
    %3592 = vmatpush.msra.mxu0 %v532
    %3593 = vmatpush.msra.mxu0 %v528
    %3594 = vmatpush.msra.mxu0 %v524
    %3595 = vmatpush.msra.mxu0 %v520
    %3596 = vmatpush.msra.mxu0 %v516
    %3597 = vmatpush.msra.mxu0 %v512
    %3598 = vmatpush.msra.mxu0 %v508
    %3599 = vmatpush.msra.mxu0 %v504
    %3600 = vmatpush.msra.mxu0 %v500
    %3601 = vmatpush.msra.mxu0 %v496
    %3602 = vmatpush.msra.mxu0 %v492
    %3603 = vmatmul.f32.gmra.mxu0 %v3272
    %v3604 = vpop.f32.mrf.mxu0
    %v3605 = vadd.f32 %v3585, %v3604
    %3606 = vdwg.mxu0
    %3607 = vmatpush.msra.mxu0 %v489
    %3608 = vmatpush.msra.mxu0 %v485
    %3609 = vmatpush.msra.mxu0 %v481
    %3610 = vmatpush.msra.mxu0 %v477
    %3611 = vmatpush.msra.mxu0 %v473
    %3612 = vmatpush.msra.mxu0 %v469
    %3613 = vmatpush.msra.mxu0 %v465
    %3614 = vmatpush.msra.mxu0 %v461
    %3615 = vmatpush.msra.mxu0 %v457
    %3616 = vmatpush.msra.mxu0 %v453
    %3617 = vmatpush.msra.mxu0 %v449
    %3618 = vmatpush.msra.mxu0 %v445
    %3619 = vmatpush.msra.mxu0 %v441
    %3620 = vmatpush.msra.mxu0 %v437
    %3621 = vmatpush.msra.mxu0 %v433
    %3622 = vmatpush.msra.mxu0 %v429
    %3623 = vmatmul.f32.gmra.mxu0 %v3486
    %v3624 = vpop.f32.mrf.mxu0
    %v3625 = vadd.f32 %v87, %v3624
    %3626 = vdwg.mxu0
    %3627 = vmatpush.msra.mxu0 %v553
    %3628 = vmatpush.msra.mxu0 %v549
    %3629 = vmatpush.msra.mxu0 %v545
    %3630 = vmatpush.msra.mxu0 %v541
    %3631 = vmatpush.msra.mxu0 %v537
    %3632 = vmatpush.msra.mxu0 %v533
    %3633 = vmatpush.msra.mxu0 %v529
    %3634 = vmatpush.msra.mxu0 %v525
    %3635 = vmatpush.msra.mxu0 %v521
    %3636 = vmatpush.msra.mxu0 %v517
    %3637 = vmatpush.msra.mxu0 %v513
    %3638 = vmatpush.msra.mxu0 %v509
    %3639 = vmatpush.msra.mxu0 %v505
    %3640 = vmatpush.msra.mxu0 %v501
    %3641 = vmatpush.msra.mxu0 %v497
    %3642 = vmatpush.msra.mxu0 %v493
    %3643 = vmatmul.f32.gmra.mxu0 %v3272
    %v3644 = vpop.f32.mrf.mxu0
    %v3645 = vadd.f32 %v3625, %v3644
    %3646 = vdwg.mxu0
    %v3647 = vxor.u32 %v3525, 2147483648
    %v3648 = vxor.u32 %v3565, 2147483648
    %v3649 = vmul.f32 %v3647, 1.442695
    %v3650 = vpow.pop %v3649
    %v3651 = vmul.f32 %v3648, 1.442695
    %v3652 = vpow.pop %v3651
    %v3653 = vadd.f32 %v3650, 1.0
    %v3654 = vadd.f32 %v3652, 1.0
    %v3655 = vrcp.pop %v3653
    %v3656 = vmul.f32 %v3653, %v3655
    %v3657 = vsub.f32 1.0, %v3656
    %v3658 = vmul.f32 %v3655, %v3657
    %v3659 = vadd.f32 %v3655, %v3658
    %vm3660 = vweird.f32 %v3653
    %vm3661 = vweird.f32 %v3655
    %vm3662 = vmor %vm3660, %vm3661
    %v3663 = vsel %vm3662, %v3655, %v3659
    %v3664 = vand.u32 2147483647, %v3653
    %vm3665 = vcmp.eq.f32.partialorder %v3664, 8.507059e+37
    %v3666 = vand.u32 %v3653, 2147483648
    %v3667 = vor.u32 1.1754944e-38, %v3666
    %v3668 = vsel %vm3665, %v3667, %v3663
    %v3669 = vmul.f32 1.0, %v3668
    %v3670 = vrcp.pop %v3654
    %v3671 = vmul.f32 %v3654, %v3670
    %v3672 = vsub.f32 1.0, %v3671
    %v3673 = vmul.f32 %v3670, %v3672
    %v3674 = vadd.f32 %v3670, %v3673
    %vm3675 = vweird.f32 %v3654
    %vm3676 = vweird.f32 %v3670
    %vm3677 = vmor %vm3675, %vm3676
    %v3678 = vsel %vm3677, %v3670, %v3674
    %v3679 = vand.u32 2147483647, %v3654
    %vm3680 = vcmp.eq.f32.partialorder %v3679, 8.507059e+37
    %v3681 = vand.u32 %v3654, 2147483648
    %v3682 = vor.u32 1.1754944e-38, %v3681
    %v3683 = vsel %vm3680, %v3682, %v3678
    %v3684 = vmul.f32 1.0, %v3683
    %v3685 = vmul.f32 %v3669, %v3645
    %v3686 = vadd.f32 %v3605, %v3685
    %v3687 = vtanh.pop %v3686
    %v3688 = vsub.f32 1.0, %v3684
    %v3689 = vmul.f32 %v3688, %v3687
    %v3690 = vmul.f32 %v3684, %v3272
    %v3691 = vadd.f32 %v3689, %v3690
    %vm3692 = vcmp.eq.s32.totalorder %v71, 7
    %v3693 = vsel %vm3692, 1, 0
    %3694 = vset.pattern.permute.xlu0 0
    %3695 = vperm.xlu0 %3694, %v3693
    %v3696 = vpop.permute.xlu0 %3695
    %vm3697 = vcmp.eq.s32.totalorder %v3696, 1
    %v3698 = vsel %vm3697, %v3691, %v3279
    %3699 = vst [vmem:[#allocation8] sm:$0xff] %v3698
    // Predicated region
    $region38: #{tpu_custom_call.1} parent=1 // pred_check
      _
    $region39: #{tpu_custom_call.1} parent=1 // pred_check_branch
      %3701 = sbr.rel (0) target = $region41
    $region40: #{tpu_custom_call.1} parent=1 // pred_region
      %3703 = vsyncadd [#allocation4], 0
      %s3705 = sshll.u32 [#allocation8], 4
      %s3706 = int_to_ptr.vmem [resolvable:$true] %s3705
      %s3707 = sshll.u32 %s6, 4
      %s3708 = int_to_ptr.hbm [resolvable:$true] %s3707
      %3710 = dma.vmem_to_hbm [thread:$0]  %s3706, 128, %s3708, [#allocation4]
    $region41: #{tpu_custom_call.1} parent=1 // pred_fallthru
      _
    // Predicated region
    $region42: #{tpu_custom_call.1} parent=1 // pred_check
      _
    $region43: #{tpu_custom_call.1} parent=1 // pred_check_branch
      %3712 = sbr.rel (0) target = $region45
    $region44: #{tpu_custom_call.1} parent=1 // pred_region
      %3714 = dma.done [#allocation4], 128
    $region45: #{tpu_custom_call.1} parent=1 // pred_fallthru
      _
    %3715 = vsyncpa [#allocation3], 1
    %3716 = vsyncpa [#allocation6], 1
    %3717 = vsyncpa [#allocation4], 1

</llo_original>
